<compile_context>
chip_gen: v5e
topology: v5e:2x2
jax: 0.10.0
libtpu: 0.0.40
codegen_flags: <defaults>
</compile_context>

<pallas_src>
import functools

import numpy as np
import jax
import jax.numpy as jnp
from jax.experimental import pallas as pl
from jax.experimental.pallas import tpu as pltpu

CP = 128   # padded conv-channel width (lane-dense)
FC = 512   # fc hidden width


# ---------------------------------------------------------------------------
# Geometry helpers
# ---------------------------------------------------------------------------
def _round_up(x, m):
    return (x + m - 1) // m * m


def _conv_out(n, k, s):
    return (n - k) // s + 1


def _geometry(h, w):
    h1, w1 = _conv_out(h, 8, 4), _conv_out(w, 8, 4)
    h2, w2 = _conv_out(h1, 4, 2), _conv_out(w1, 4, 2)
    h3, w3 = _conv_out(h2, 3, 1), _conv_out(w2, 3, 1)
    assert min(h1, w1, h2, w2, h3, w3) >= 1, "obs too small for the DQN cnn"
    return (h1, w1), (h2, w2), (h3, w3)


# ---------------------------------------------------------------------------
# Fused network kernel (one grid step == B_TILE batch elements)
# ---------------------------------------------------------------------------
def _dqn_fused_kernel(patches_ref, w1_ref, b1_ref,
                      sel2_ref, w2_ref, b2_ref,
                      sel3_ref, w3_ref, b3_ref,
                      selfc_ref, wfc_ref, bfc_ref,
                      wh_ref, bh_ref, out_ref):
    f32, bf16 = jnp.float32, jnp.bfloat16
    bt, p1p, k1p = patches_ref.shape
    cp = w1_ref.shape[1]
    t2 = w2_ref.shape[0]
    r2 = sel2_ref.shape[0] // t2
    t3 = w3_ref.shape[0]
    r3 = sel3_ref.shape[0] // t3
    p3, _, fcw = wfc_ref.shape
    btp = selfc_ref.shape[0] // p3

    # ---- conv1: all B_TILE*P1 im2col rows in one matmul ----------------------
    # obs streamed as int8 (bit-cast uint8); undo the sign reinterpretation.
    # 1/255 is folded into w1.
    x1 = patches_ref[...].astype(f32).reshape(bt * p1p, k1p)
    x1 = (x1 + jnp.where(x1 < 0.0, 256.0, 0.0)).astype(bf16)
    h1 = jnp.dot(x1, w1_ref[...], preferred_element_type=f32) + b1_ref[...]
    h1 = jnp.maximum(h1, 0.0).astype(bf16)                 # (bt*p1p, 128)

    # ---- conv2: one stacked block-diag gather matmul, then per-tap weights ---
    g2 = jnp.dot(sel2_ref[...], h1, preferred_element_type=f32).astype(bf16)
    acc2 = jnp.zeros((r2, cp), f32)
    for t in range(t2):
        acc2 = acc2 + jnp.dot(g2[t * r2:(t + 1) * r2], w2_ref[t],
                              preferred_element_type=f32)
    h2 = jnp.maximum(acc2 + b2_ref[...], 0.0).astype(bf16)  # (r2, 128)

    # ---- conv3 (no trailing ReLU here: fc applies ReLU first) ----------------
    g3 = jnp.dot(sel3_ref[...], h2, preferred_element_type=f32).astype(bf16)
    acc3 = jnp.zeros((r3, cp), f32)
    for t in range(t3):
        acc3 = acc3 + jnp.dot(g3[t * r3:(t + 1) * r3], w3_ref[t],
                              preferred_element_type=f32)
    emb_cnn = acc3 + b3_ref[...]                             # (r3, 128)

    # ---- fc: ReLU -> Linear(flat, 512) -> ReLU --------------------------------
    x_fc = jnp.maximum(emb_cnn, 0.0).astype(bf16)
    if p3 == 1:
        acc_fc = jnp.dot(x_fc, wfc_ref[0], preferred_element_type=f32)
    else:
        # regroup rows from (batch, pos) to (pos, batch) with a 0/1 matmul,
        # then one (btp x CP x FC) matmul per conv3 position.
        gf = jnp.dot(selfc_ref[...], x_fc, preferred_element_type=f32).astype(bf16)
        acc_fc = jnp.zeros((btp, fcw), f32)
        for pos in range(p3):
            acc_fc = acc_fc + jnp.dot(gf[pos * btp:(pos + 1) * btp], wfc_ref[pos],
                                      preferred_element_type=f32)
    emb_fc = jnp.maximum(acc_fc + bfc_ref[...], 0.0).astype(bf16)   # (btp, 512)

    # ---- fused heads: [pi | v | 0-pad] as one lane-dense matmul ---------------
    out_ref[0] = (jnp.dot(emb_fc, wh_ref[...], preferred_element_type=f32)
                  + bh_ref[...])


# ---------------------------------------------------------------------------
# XLA glue: conv1 im2col on the raw 8-bit NHWC observation (HWIO column order)
# ---------------------------------------------------------------------------
def _im2col_nhwc(x, k, s):
    n, h, w, c = x.shape
    ho, wo = _conv_out(h, k, s), _conv_out(w, k, s)
    taps = []
    for p in range(k):
        for q in range(k):
            taps.append(x[:, p:p + s * ho:s, q:q + s * wo:s, :])
    t = jnp.stack(taps, axis=0).reshape(k, k, n, ho, wo, c)
    t = t.transpose(2, 3, 4, 0, 1, 5)                    # (n, ho, wo, kh, kw, c)
    return t.reshape(n, ho * wo, k * k * c)


# ---------------------------------------------------------------------------
# Forward pass == TorchDQNModel.forward
# ---------------------------------------------------------------------------
def dqn_forward(prep, obs_nhwc, *, num_outputs, bt):
    n = obs_nhwc.shape[0]

    # Static geometry recovered from the (traced) weight shapes.
    p3 = prep["wfc"].shape[0]
    btp = prep["selfc"].shape[0] // p3
    p1p = prep["sel2"].shape[1] // bt
    k1p = prep["w1"].shape[0]
    hp = prep["whead"].shape[1]
    t2, t3 = prep["w2"].shape[0], prep["w3"].shape[0]
    r2 = prep["sel2"].shape[0] // t2
    r3 = prep["sel3"].shape[0] // t3
    fcw = prep["wfc"].shape[2]

    steps = max(1, -(-n // bt))
    n_pad = steps * bt

    # uint8 -> int8 bitcast (free) keeps the streamed operand at 1 B/elem;
    # the sign fixup happens inside the kernel.
    obs_i8 = jax.lax.bitcast_convert_type(obs_nhwc, jnp.int8)
    patches = _im2col_nhwc(obs_i8, 8, 4)                  # (n, p1, k1) int8
    p1, k1 = patches.shape[1], patches.shape[2]
    patches = jnp.pad(patches, ((0, n_pad - n), (0, p1p - p1), (0, k1p - k1)))

    # Advisory cost estimate so XLA schedules the im2col glue around the call.
    macs = (bt * p1p * k1p * CP
            + prep["sel2"].shape[0] * (bt * p1p) * CP + t2 * r2 * CP * CP
            + prep["sel3"].shape[0] * r2 * CP + t3 * r3 * CP * CP
            + (r3 * CP * fcw if p3 == 1
               else prep["selfc"].shape[0] * r3 * CP + p3 * btp * CP * fcw)
            + btp * fcw * hp)
    weight_bytes = sum(int(np.prod(v.shape)) * v.dtype.itemsize
                       for v in prep.values())
    cost = pl.CostEstimate(
        flops=int(2 * macs * steps),
        transcendentals=0,
        bytes_accessed=int(np.prod(patches.shape)) + steps * btp * hp * 4
                       + weight_bytes)

    out = pl.pallas_call(
        _dqn_fused_kernel,
        out_shape=jax.ShapeDtypeStruct((steps, btp, hp), jnp.float32),
        grid=(steps,),
        in_specs=[
            pl.BlockSpec((bt, p1p, k1p), lambda i: (i, 0, 0)),        # patches i8
            pl.BlockSpec(prep["w1"].shape, lambda i: (0, 0)),         # w1
            pl.BlockSpec(prep["b1"].shape, lambda i: (0, 0)),         # b1
            pl.BlockSpec(prep["sel2"].shape, lambda i: (0, 0)),       # sel2 (stacked bd)
            pl.BlockSpec(prep["w2"].shape, lambda i: (0, 0, 0)),      # w2
            pl.BlockSpec(prep["b2"].shape, lambda i: (0, 0)),         # b2
            pl.BlockSpec(prep["sel3"].shape, lambda i: (0, 0)),       # sel3 (stacked bd)
            pl.BlockSpec(prep["w3"].shape, lambda i: (0, 0, 0)),      # w3
            pl.BlockSpec(prep["b3"].shape, lambda i: (0, 0)),         # b3
            pl.BlockSpec(prep["selfc"].shape, lambda i: (0, 0)),      # fc regroup sel
            pl.BlockSpec(prep["wfc"].shape, lambda i: (0, 0, 0)),     # wfc
            pl.BlockSpec(prep["bfc"].shape, lambda i: (0, 0)),        # bfc
            pl.BlockSpec(prep["whead"].shape, lambda i: (0, 0)),      # whead (pi|v)
            pl.BlockSpec(prep["bhead"].shape, lambda i: (0, 0)),      # bhead
        ],
        out_specs=pl.BlockSpec((1, btp, hp), lambda i: (i, 0, 0)),
        compiler_params=pltpu.CompilerParams(
            dimension_semantics=("parallel",)),
        cost_estimate=cost,
    )(patches, prep["w1"], prep["b1"],
      prep["sel2"], prep["w2"], prep["b2"],
      prep["sel3"], prep["w3"], prep["b3"],
      prep["selfc"], prep["wfc"], prep["bfc"],
      prep["whead"], prep["bhead"])

    out = out[:, :bt, :].reshape(steps * bt, hp)[:n]
    logits = out[:, :num_outputs]
    value = out[:, num_outputs]                 # v_layer(...).squeeze(1)
    return logits, value


# ---------------------------------------------------------------------------
# Parameters: synthetic PyTorch-layout init + one-time kernel-layout prep
# ---------------------------------------------------------------------------
def init_torch_params(key, obs_hwc, num_outputs):
    """Deterministic synthetic weights in PyTorch layouts (OIHW, (out,in))."""
    h, w, c = obs_hwc
    _, _, (h3, w3) = _geometry(h, w)
    flat = 64 * h3 * w3
    ks = jax.random.split(key, 12)

    def u(k, shape, fan_in):
        b = float(1.0 / np.sqrt(fan_in))
        return jax.random.uniform(k, shape, jnp.float32, -b, b)

    return dict(
        c1_w=u(ks[0], (32, c, 8, 8), c * 64),   c1_b=u(ks[1], (32,), c * 64),
        c2_w=u(ks[2], (64, 32, 4, 4), 32 * 16), c2_b=u(ks[3], (64,), 32 * 16),
        c3_w=u(ks[4], (64, 64, 3, 3), 64 * 9),  c3_b=u(ks[5], (64,), 64 * 9),
        fc_w=u(ks[6], (FC, flat), flat),        fc_b=u(ks[7], (FC,), flat),
        pi_w=u(ks[8], (num_outputs, FC), FC),   pi_b=u(ks[9], (num_outputs,), FC),
        v_w=u(ks[10], (1, FC), FC),             v_b=u(ks[11], (1,), FC),
    )


def _prep_conv_taps(w_oihw, b):
    """OIHW -> per-tap (kh*kw, CP, CP) bf16 with zero-padded channels."""
    o, i, kh, kw = w_oihw.shape
    wt = jnp.transpose(w_oihw, (2, 3, 1, 0))                  # (kh, kw, cin, cout)
    wt = jnp.pad(wt, ((0, 0), (0, 0), (0, CP - i), (0, CP - o)))
    wt = wt.reshape(kh * kw, CP, CP).astype(jnp.bfloat16)
    bp = jnp.pad(b, (0, CP - o)).reshape(1, CP).astype(jnp.float32)
    return wt, bp


def _sel_block_diag(h_in, w_in, k, s, bt, in_pitch, in_cols, out_pad):
    """Stacked block-diagonal 0/1 gather matrix for one conv layer.

    Row (t*out_pad + b*p_out + o) selects input column (b*in_pitch + inpos(t,o)).
    Rows in [bt*p_out, out_pad) of each tap block are zero (8-row alignment pad).
    """
    h_out, w_out = _conv_out(h_in, k, s), _conv_out(w_in, k, s)
    p_out = h_out * w_out
    sel = np.zeros((k * k * out_pad, in_cols), np.float32)
    for p in range(k):
        for q in range(k):
            t = p * k + q
            for b in range(bt):
                for oh in range(h_out):
                    for ow in range(w_out):
                        o = oh * w_out + ow
                        ip = (oh * s + p) * w_in + (ow * s + q)
                        sel[t * out_pad + b * p_out + o, b * in_pitch + ip] = 1.0
    return sel


def prepare_params(tp, obs_hwc, num_outputs, bt):
    """One-time host-side conversion into lane-dense, B_TILE-specific layouts."""
    h, w, c = obs_hwc
    (h1s, w1s), (h2s, w2s), (h3s, w3s) = _geometry(h, w)
    p1, p2, p3 = h1s * w1s, h2s * w2s, h3s * w3s
    p1p = _round_up(p1, 32)                   # 8-bit-friendly sublane pitch
    k1 = 8 * 8 * c
    k1p = _round_up(k1, 128)
    r2 = _round_up(bt * p2, 8)
    r3 = _round_up(bt * p3, 8)
    btp = _round_up(bt, 8)

    # conv1: HWIO-flattened columns, 1/255 folded, rows/channels zero-padded.
    w1m = (jnp.transpose(tp["c1_w"], (2, 3, 1, 0)) / 255.0).reshape(k1, 32)
    w1m = jnp.pad(w1m, ((0, k1p - k1), (0, CP - 32))).astype(jnp.bfloat16)
    b1 = jnp.pad(tp["c1_b"], (0, CP - 32)).reshape(1, CP).astype(jnp.float32)

    w2m, b2 = _prep_conv_taps(tp["c2_w"], tp["c2_b"])          # (16, 128, 128)
    w3m, b3 = _prep_conv_taps(tp["c3_w"], tp["c3_b"])          # (9, 128, 128)

    sel2 = _sel_block_diag(h1s, w1s, 4, 2, bt, p1p, bt * p1p, r2)
    sel3 = _sel_block_diag(h2s, w2s, 3, 1, bt, p2, r2, r3)

    # fc regroup gather (only read by the kernel when p3 > 1).
    selfc = np.zeros((p3 * btp, r3), np.float32)
    for pos in range(p3):
        for b in range(bt):
            selfc[pos * btp + b, b * p3 + pos] = 1.0

    # fc: absorb PyTorch's NCHW flatten order (index = ch*p3 + pos) into one
    # (CP, 512) block per conv3 spatial position (zero rows for padded chans).
    wfc = jnp.transpose(tp["fc_w"].reshape(FC, 64, p3), (2, 1, 0))
    wfc = jnp.pad(wfc, ((0, 0), (0, CP - 64), (0, 0))).astype(jnp.bfloat16)
    bfc = tp["fc_b"].reshape(1, FC).astype(jnp.float32)

    # fused pi/v head: columns [0:A] = pi, column A = v, rest zero (lane-dense).
    hp = _round_up(num_outputs + 1, 128)
    whead = jnp.zeros((FC, hp), jnp.float32)
    whead = whead.at[:, :num_outputs].set(tp["pi_w"].T)
    whead = whead.at[:, num_outputs].set(tp["v_w"][0])
    bhead = jnp.zeros((1, hp), jnp.float32)
    bhead = bhead.at[0, :num_outputs].set(tp["pi_b"])
    bhead = bhead.at[0, num_outputs].set(tp["v_b"][0])

    return dict(
        w1=w1m, b1=b1,
        sel2=jnp.asarray(sel2, jnp.bfloat16), w2=w2m, b2=b2,
        sel3=jnp.asarray(sel3, jnp.bfloat16), w3=w3m, b3=b3,
        selfc=jnp.asarray(selfc, jnp.bfloat16),
        wfc=wfc, bfc=bfc,
        whead=whead.astype(jnp.bfloat16), bhead=bhead,
    )


# ---------------------------------------------------------------------------
# Pure-JAX f32 reference (PyTorch layouts) for a sanity check
# ---------------------------------------------------------------------------
def _reference_forward(tp, obs_nhwc, num_outputs):
    hi = jax.lax.Precision.HIGHEST
    y = obs_nhwc.astype(jnp.float32).transpose(0, 3, 1, 2) / 255.0
    for wk, bk, s, act in (("c1_w", "c1_b", 4, True),
                           ("c2_w", "c2_b", 2, True),
                           ("c3_w", "c3_b", 1, False)):
        y = jax.lax.conv_general_dilated(
            y, tp[wk], window_strides=(s, s), padding="VALID",
            dimension_numbers=("NCHW", "OIHW", "NCHW"), precision=hi)
        y = y + tp[bk].reshape(1, -1, 1, 1)
        if act:
            y = jnp.maximum(y, 0.0)
    flat = y.reshape(y.shape[0], -1)
    e = jnp.dot(jnp.maximum(flat, 0.0), tp["fc_w"].T, precision=hi) + tp["fc_b"]
    e = jnp.maximum(e, 0.0)
    logits = jnp.dot(e, tp["pi_w"].T, precision=hi) + tp["pi_b"]
    value = (jnp.dot(e, tp["v_w"].T, precision=hi) + tp["v_b"])[:, 0]
    return logits, value


if __name__ == "__main__":
    # Small shapes consistent with the module: 36x36 frames (smallest spatial
    # size the 8/4/3 conv stack supports: 36 -> 8 -> 3 -> 1), 4 stacked
    # channels, 6 discrete actions.  batch=8 with B_TILE=4 gives a 2-step
    # grid so v7x's two TensorCores each get a step; on v5e/v6e a bigger
    # B_TILE (8-16) with fewer steps is preferred for large batches.
    batch, height, width, channels = 8, 36, 36, 4
    num_outputs = 6
    b_tile = 4

    key = jax.random.PRNGKey(0)
    k_obs, k_par = jax.random.split(key)
    obs = jax.random.randint(k_obs, (batch, height, width, channels), 0, 256,
                             dtype=jnp.int32).astype(jnp.uint8)

    torch_params = init_torch_params(k_par, (height, width, channels),
                                     num_outputs)
    prep = prepare_params(torch_params, (height, width, channels),
                          num_outputs, b_tile)

    fwd = jax.jit(functools.partial(dqn_forward, num_outputs=num_outputs,
                                    bt=b_tile))
    logits, value = fwd(prep, obs)
    jax.block_until_ready((logits, value))

    assert logits.shape == (batch, num_outputs), logits.shape
    assert value.shape == (batch,), value.shape

    # Check against the plain-JAX f32 reference (bf16-kernel tolerance).
    ref_logits, ref_value = _reference_forward(torch_params, obs, num_outputs)
    assert float(jnp.max(jnp.abs(logits - ref_logits))) < 3e-2
    assert float(jnp.max(jnp.abs(value - ref_value))) < 3e-2

    print("KERNEL_OK")
</pallas_src>

<mosaic_0001>
module attributes {stable_mosaic.version = 11 : i64} {
  func.func @_dqn_fused_kernel(%arg0: i32, %arg1: memref<4x64x256xi8, #tpu.memory_space<vmem>>, %arg2: memref<256x128xbf16, #tpu.memory_space<vmem>>, %arg3: memref<1x128xf32, #tpu.memory_space<vmem>>, %arg4: memref<640x256xbf16, #tpu.memory_space<vmem>>, %arg5: memref<16x128x128xbf16, #tpu.memory_space<vmem>>, %arg6: memref<1x128xf32, #tpu.memory_space<vmem>>, %arg7: memref<72x40xbf16, #tpu.memory_space<vmem>>, %arg8: memref<9x128x128xbf16, #tpu.memory_space<vmem>>, %arg9: memref<1x128xf32, #tpu.memory_space<vmem>>, %arg10: memref<8x8xbf16, #tpu.memory_space<vmem>>, %arg11: memref<1x128x512xbf16, #tpu.memory_space<vmem>>, %arg12: memref<1x512xf32, #tpu.memory_space<vmem>>, %arg13: memref<512x128xbf16, #tpu.memory_space<vmem>>, %arg14: memref<1x128xf32, #tpu.memory_space<vmem>>, %arg15: memref<1x8x128xf32, #tpu.memory_space<vmem>>) attributes {dimension_semantics = [#tpu.dimension_semantics<parallel>], iteration_bounds = array<i64: 2>, scalar_prefetch = 0 : i64, scratch_operands = 0 : i64, tpu.core_type = #tpu.core_type<tc>, window_params = [{transform_indices = @transform_0, window_bounds = array<i64: 4, 64, 256>}, {pipeline_mode = #tpu.pipeline_mode<synchronous>, transform_indices = @transform_1, window_bounds = array<i64: 256, 128>}, {pipeline_mode = #tpu.pipeline_mode<synchronous>, transform_indices = @transform_2, window_bounds = array<i64: 1, 128>}, {pipeline_mode = #tpu.pipeline_mode<synchronous>, transform_indices = @transform_3, window_bounds = array<i64: 640, 256>}, {pipeline_mode = #tpu.pipeline_mode<synchronous>, transform_indices = @transform_4, window_bounds = array<i64: 16, 128, 128>}, {pipeline_mode = #tpu.pipeline_mode<synchronous>, transform_indices = @transform_5, window_bounds = array<i64: 1, 128>}, {pipeline_mode = #tpu.pipeline_mode<synchronous>, transform_indices = @transform_6, window_bounds = array<i64: 72, 40>}, {pipeline_mode = #tpu.pipeline_mode<synchronous>, transform_indices = @transform_7, window_bounds = array<i64: 9, 128, 128>}, {pipeline_mode = #tpu.pipeline_mode<synchronous>, transform_indices = @transform_8, window_bounds = array<i64: 1, 128>}, {pipeline_mode = #tpu.pipeline_mode<synchronous>, transform_indices = @transform_9, window_bounds = array<i64: 8, 8>}, {pipeline_mode = #tpu.pipeline_mode<synchronous>, transform_indices = @transform_10, window_bounds = array<i64: 1, 128, 512>}, {pipeline_mode = #tpu.pipeline_mode<synchronous>, transform_indices = @transform_11, window_bounds = array<i64: 1, 512>}, {pipeline_mode = #tpu.pipeline_mode<synchronous>, transform_indices = @transform_12, window_bounds = array<i64: 512, 128>}, {pipeline_mode = #tpu.pipeline_mode<synchronous>, transform_indices = @transform_13, window_bounds = array<i64: 1, 128>}, {transform_indices = @transform_14, window_bounds = array<i64: 1, 8, 128>}]} {
    %c0 = arith.constant 0 : index
    %c0_0 = arith.constant 0 : index
    %c0_1 = arith.constant 0 : index
    %0 = vector.load %arg1[%c0, %c0_0, %c0_1] : memref<4x64x256xi8, #tpu.memory_space<vmem>>, vector<4x64x256xi8>
    %1 = arith.sitofp %0 : vector<4x64x256xi8> to vector<4x64x256xf32>
    %2 = vector.shape_cast %1 : vector<4x64x256xf32> to vector<256x256xf32>
    %cst = arith.constant 0.000000e+00 : f32
    %3 = vector.broadcast %cst : f32 to vector<256x256xf32>
    %4 = arith.cmpf olt, %2, %3 : vector<256x256xf32>
    %cst_2 = arith.constant 2.560000e+02 : f32
    %cst_3 = arith.constant 0.000000e+00 : f32
    %5 = vector.broadcast %cst_2 : f32 to vector<256x256xf32>
    %6 = vector.broadcast %cst_3 : f32 to vector<256x256xf32>
    %7 = arith.select %4, %5, %6 : vector<256x256xi1>, vector<256x256xf32>
    %8 = arith.addf %2, %7 : vector<256x256xf32>
    %9 = arith.truncf %8 : vector<256x256xf32> to vector<256x256xbf16>
    %c0_4 = arith.constant 0 : index
    %c0_5 = arith.constant 0 : index
    %10 = vector.load %arg2[%c0_4, %c0_5] : memref<256x128xbf16, #tpu.memory_space<vmem>>, vector<256x128xbf16>
    %cst_6 = arith.constant dense<0.000000e+00> : vector<256x128xf32>
    %11 = tpu.matmul %9, %10, %cst_6 {dimension_numbers = #tpu.dot_dimension_numbers<[1], [0], [0], [1], [0, 0, 1, 1], [], []>} : vector<256x256xbf16>, vector<256x128xbf16>, vector<256x128xf32> -> vector<256x128xf32>
    %c0_7 = arith.constant 0 : index
    %c0_8 = arith.constant 0 : index
    %12 = vector.load %arg3[%c0_7, %c0_8] : memref<1x128xf32, #tpu.memory_space<vmem>>, vector<1x128xf32>
    %13 = vector.broadcast %12 : vector<1x128xf32> to vector<256x128xf32>
    %14 = arith.addf %11, %13 : vector<256x128xf32>
    %cst_9 = arith.constant 0.000000e+00 : f32
    %15 = vector.broadcast %cst_9 : f32 to vector<256x128xf32>
    %16 = arith.maximumf %14, %15 : vector<256x128xf32>
    %17 = arith.truncf %16 : vector<256x128xf32> to vector<256x128xbf16>
    %c0_10 = arith.constant 0 : index
    %c0_11 = arith.constant 0 : index
    %18 = vector.load %arg4[%c0_10, %c0_11] : memref<640x256xbf16, #tpu.memory_space<vmem>>, vector<640x256xbf16>
    %cst_12 = arith.constant dense<0.000000e+00> : vector<640x128xf32>
    %19 = tpu.matmul %18, %17, %cst_12 {dimension_numbers = #tpu.dot_dimension_numbers<[1], [0], [0], [1], [0, 0, 1, 1], [], []>} : vector<640x256xbf16>, vector<256x128xbf16>, vector<640x128xf32> -> vector<640x128xf32>
    %20 = arith.truncf %19 : vector<640x128xf32> to vector<640x128xbf16>
    %cst_13 = arith.constant 0.000000e+00 : f32
    %21 = vector.broadcast %cst_13 : f32 to vector<40x128xf32>
    %22 = vector.extract_strided_slice %20 {offsets = [0, 0], sizes = [40, 128], strides = [1, 1]} : vector<640x128xbf16> to vector<40x128xbf16>
    %c0_14 = arith.constant 0 : index
    %c0_15 = arith.constant 0 : index
    %c0_16 = arith.constant 0 : index
    %23 = vector.load %arg5[%c0_14, %c0_15, %c0_16] : memref<16x128x128xbf16, #tpu.memory_space<vmem>>, vector<1x128x128xbf16>
    %24 = vector.shape_cast %23 : vector<1x128x128xbf16> to vector<128x128xbf16>
    %cst_17 = arith.constant dense<0.000000e+00> : vector<40x128xf32>
    %25 = tpu.matmul %22, %24, %cst_17 {dimension_numbers = #tpu.dot_dimension_numbers<[1], [0], [0], [1], [0, 0, 1, 1], [], []>} : vector<40x128xbf16>, vector<128x128xbf16>, vector<40x128xf32> -> vector<40x128xf32>
    %26 = arith.addf %21, %25 : vector<40x128xf32>
    %27 = vector.extract_strided_slice %20 {offsets = [40, 0], sizes = [40, 128], strides = [1, 1]} : vector<640x128xbf16> to vector<40x128xbf16>
    %c1 = arith.constant 1 : index
    %c0_18 = arith.constant 0 : index
    %c0_19 = arith.constant 0 : index
    %28 = vector.load %arg5[%c1, %c0_18, %c0_19] : memref<16x128x128xbf16, #tpu.memory_space<vmem>>, vector<1x128x128xbf16>
    %29 = vector.shape_cast %28 : vector<1x128x128xbf16> to vector<128x128xbf16>
    %cst_20 = arith.constant dense<0.000000e+00> : vector<40x128xf32>
    %30 = tpu.matmul %27, %29, %cst_20 {dimension_numbers = #tpu.dot_dimension_numbers<[1], [0], [0], [1], [0, 0, 1, 1], [], []>} : vector<40x128xbf16>, vector<128x128xbf16>, vector<40x128xf32> -> vector<40x128xf32>
    %31 = arith.addf %26, %30 : vector<40x128xf32>
    %32 = vector.extract_strided_slice %20 {offsets = [80, 0], sizes = [40, 128], strides = [1, 1]} : vector<640x128xbf16> to vector<40x128xbf16>
    %c2 = arith.constant 2 : index
    %c0_21 = arith.constant 0 : index
    %c0_22 = arith.constant 0 : index
    %33 = vector.load %arg5[%c2, %c0_21, %c0_22] : memref<16x128x128xbf16, #tpu.memory_space<vmem>>, vector<1x128x128xbf16>
    %34 = vector.shape_cast %33 : vector<1x128x128xbf16> to vector<128x128xbf16>
    %cst_23 = arith.constant dense<0.000000e+00> : vector<40x128xf32>
    %35 = tpu.matmul %32, %34, %cst_23 {dimension_numbers = #tpu.dot_dimension_numbers<[1], [0], [0], [1], [0, 0, 1, 1], [], []>} : vector<40x128xbf16>, vector<128x128xbf16>, vector<40x128xf32> -> vector<40x128xf32>
    %36 = arith.addf %31, %35 : vector<40x128xf32>
    %37 = vector.extract_strided_slice %20 {offsets = [120, 0], sizes = [40, 128], strides = [1, 1]} : vector<640x128xbf16> to vector<40x128xbf16>
    %c3 = arith.constant 3 : index
    %c0_24 = arith.constant 0 : index
    %c0_25 = arith.constant 0 : index
    %38 = vector.load %arg5[%c3, %c0_24, %c0_25] : memref<16x128x128xbf16, #tpu.memory_space<vmem>>, vector<1x128x128xbf16>
    %39 = vector.shape_cast %38 : vector<1x128x128xbf16> to vector<128x128xbf16>
    %cst_26 = arith.constant dense<0.000000e+00> : vector<40x128xf32>
    %40 = tpu.matmul %37, %39, %cst_26 {dimension_numbers = #tpu.dot_dimension_numbers<[1], [0], [0], [1], [0, 0, 1, 1], [], []>} : vector<40x128xbf16>, vector<128x128xbf16>, vector<40x128xf32> -> vector<40x128xf32>
    %41 = arith.addf %36, %40 : vector<40x128xf32>
    %42 = vector.extract_strided_slice %20 {offsets = [160, 0], sizes = [40, 128], strides = [1, 1]} : vector<640x128xbf16> to vector<40x128xbf16>
    %c4 = arith.constant 4 : index
    %c0_27 = arith.constant 0 : index
    %c0_28 = arith.constant 0 : index
    %43 = vector.load %arg5[%c4, %c0_27, %c0_28] : memref<16x128x128xbf16, #tpu.memory_space<vmem>>, vector<1x128x128xbf16>
    %44 = vector.shape_cast %43 : vector<1x128x128xbf16> to vector<128x128xbf16>
    %cst_29 = arith.constant dense<0.000000e+00> : vector<40x128xf32>
    %45 = tpu.matmul %42, %44, %cst_29 {dimension_numbers = #tpu.dot_dimension_numbers<[1], [0], [0], [1], [0, 0, 1, 1], [], []>} : vector<40x128xbf16>, vector<128x128xbf16>, vector<40x128xf32> -> vector<40x128xf32>
    %46 = arith.addf %41, %45 : vector<40x128xf32>
    %47 = vector.extract_strided_slice %20 {offsets = [200, 0], sizes = [40, 128], strides = [1, 1]} : vector<640x128xbf16> to vector<40x128xbf16>
    %c5 = arith.constant 5 : index
    %c0_30 = arith.constant 0 : index
    %c0_31 = arith.constant 0 : index
    %48 = vector.load %arg5[%c5, %c0_30, %c0_31] : memref<16x128x128xbf16, #tpu.memory_space<vmem>>, vector<1x128x128xbf16>
    %49 = vector.shape_cast %48 : vector<1x128x128xbf16> to vector<128x128xbf16>
    %cst_32 = arith.constant dense<0.000000e+00> : vector<40x128xf32>
    %50 = tpu.matmul %47, %49, %cst_32 {dimension_numbers = #tpu.dot_dimension_numbers<[1], [0], [0], [1], [0, 0, 1, 1], [], []>} : vector<40x128xbf16>, vector<128x128xbf16>, vector<40x128xf32> -> vector<40x128xf32>
    %51 = arith.addf %46, %50 : vector<40x128xf32>
    %52 = vector.extract_strided_slice %20 {offsets = [240, 0], sizes = [40, 128], strides = [1, 1]} : vector<640x128xbf16> to vector<40x128xbf16>
    %c6 = arith.constant 6 : index
    %c0_33 = arith.constant 0 : index
    %c0_34 = arith.constant 0 : index
    %53 = vector.load %arg5[%c6, %c0_33, %c0_34] : memref<16x128x128xbf16, #tpu.memory_space<vmem>>, vector<1x128x128xbf16>
    %54 = vector.shape_cast %53 : vector<1x128x128xbf16> to vector<128x128xbf16>
    %cst_35 = arith.constant dense<0.000000e+00> : vector<40x128xf32>
    %55 = tpu.matmul %52, %54, %cst_35 {dimension_numbers = #tpu.dot_dimension_numbers<[1], [0], [0], [1], [0, 0, 1, 1], [], []>} : vector<40x128xbf16>, vector<128x128xbf16>, vector<40x128xf32> -> vector<40x128xf32>
    %56 = arith.addf %51, %55 : vector<40x128xf32>
    %57 = vector.extract_strided_slice %20 {offsets = [280, 0], sizes = [40, 128], strides = [1, 1]} : vector<640x128xbf16> to vector<40x128xbf16>
    %c7 = arith.constant 7 : index
    %c0_36 = arith.constant 0 : index
    %c0_37 = arith.constant 0 : index
    %58 = vector.load %arg5[%c7, %c0_36, %c0_37] : memref<16x128x128xbf16, #tpu.memory_space<vmem>>, vector<1x128x128xbf16>
    %59 = vector.shape_cast %58 : vector<1x128x128xbf16> to vector<128x128xbf16>
    %cst_38 = arith.constant dense<0.000000e+00> : vector<40x128xf32>
    %60 = tpu.matmul %57, %59, %cst_38 {dimension_numbers = #tpu.dot_dimension_numbers<[1], [0], [0], [1], [0, 0, 1, 1], [], []>} : vector<40x128xbf16>, vector<128x128xbf16>, vector<40x128xf32> -> vector<40x128xf32>
    %61 = arith.addf %56, %60 : vector<40x128xf32>
    %62 = vector.extract_strided_slice %20 {offsets = [320, 0], sizes = [40, 128], strides = [1, 1]} : vector<640x128xbf16> to vector<40x128xbf16>
    %c8 = arith.constant 8 : index
    %c0_39 = arith.constant 0 : index
    %c0_40 = arith.constant 0 : index
    %63 = vector.load %arg5[%c8, %c0_39, %c0_40] : memref<16x128x128xbf16, #tpu.memory_space<vmem>>, vector<1x128x128xbf16>
    %64 = vector.shape_cast %63 : vector<1x128x128xbf16> to vector<128x128xbf16>
    %cst_41 = arith.constant dense<0.000000e+00> : vector<40x128xf32>
    %65 = tpu.matmul %62, %64, %cst_41 {dimension_numbers = #tpu.dot_dimension_numbers<[1], [0], [0], [1], [0, 0, 1, 1], [], []>} : vector<40x128xbf16>, vector<128x128xbf16>, vector<40x128xf32> -> vector<40x128xf32>
    %66 = arith.addf %61, %65 : vector<40x128xf32>
    %67 = vector.extract_strided_slice %20 {offsets = [360, 0], sizes = [40, 128], strides = [1, 1]} : vector<640x128xbf16> to vector<40x128xbf16>
    %c9 = arith.constant 9 : index
    %c0_42 = arith.constant 0 : index
    %c0_43 = arith.constant 0 : index
    %68 = vector.load %arg5[%c9, %c0_42, %c0_43] : memref<16x128x128xbf16, #tpu.memory_space<vmem>>, vector<1x128x128xbf16>
    %69 = vector.shape_cast %68 : vector<1x128x128xbf16> to vector<128x128xbf16>
    %cst_44 = arith.constant dense<0.000000e+00> : vector<40x128xf32>
    %70 = tpu.matmul %67, %69, %cst_44 {dimension_numbers = #tpu.dot_dimension_numbers<[1], [0], [0], [1], [0, 0, 1, 1], [], []>} : vector<40x128xbf16>, vector<128x128xbf16>, vector<40x128xf32> -> vector<40x128xf32>
    %71 = arith.addf %66, %70 : vector<40x128xf32>
    %72 = vector.extract_strided_slice %20 {offsets = [400, 0], sizes = [40, 128], strides = [1, 1]} : vector<640x128xbf16> to vector<40x128xbf16>
    %c10 = arith.constant 10 : index
    %c0_45 = arith.constant 0 : index
    %c0_46 = arith.constant 0 : index
    %73 = vector.load %arg5[%c10, %c0_45, %c0_46] : memref<16x128x128xbf16, #tpu.memory_space<vmem>>, vector<1x128x128xbf16>
    %74 = vector.shape_cast %73 : vector<1x128x128xbf16> to vector<128x128xbf16>
    %cst_47 = arith.constant dense<0.000000e+00> : vector<40x128xf32>
    %75 = tpu.matmul %72, %74, %cst_47 {dimension_numbers = #tpu.dot_dimension_numbers<[1], [0], [0], [1], [0, 0, 1, 1], [], []>} : vector<40x128xbf16>, vector<128x128xbf16>, vector<40x128xf32> -> vector<40x128xf32>
    %76 = arith.addf %71, %75 : vector<40x128xf32>
    %77 = vector.extract_strided_slice %20 {offsets = [440, 0], sizes = [40, 128], strides = [1, 1]} : vector<640x128xbf16> to vector<40x128xbf16>
    %c11 = arith.constant 11 : index
    %c0_48 = arith.constant 0 : index
    %c0_49 = arith.constant 0 : index
    %78 = vector.load %arg5[%c11, %c0_48, %c0_49] : memref<16x128x128xbf16, #tpu.memory_space<vmem>>, vector<1x128x128xbf16>
    %79 = vector.shape_cast %78 : vector<1x128x128xbf16> to vector<128x128xbf16>
    %cst_50 = arith.constant dense<0.000000e+00> : vector<40x128xf32>
    %80 = tpu.matmul %77, %79, %cst_50 {dimension_numbers = #tpu.dot_dimension_numbers<[1], [0], [0], [1], [0, 0, 1, 1], [], []>} : vector<40x128xbf16>, vector<128x128xbf16>, vector<40x128xf32> -> vector<40x128xf32>
    %81 = arith.addf %76, %80 : vector<40x128xf32>
    %82 = vector.extract_strided_slice %20 {offsets = [480, 0], sizes = [40, 128], strides = [1, 1]} : vector<640x128xbf16> to vector<40x128xbf16>
    %c12 = arith.constant 12 : index
    %c0_51 = arith.constant 0 : index
    %c0_52 = arith.constant 0 : index
    %83 = vector.load %arg5[%c12, %c0_51, %c0_52] : memref<16x128x128xbf16, #tpu.memory_space<vmem>>, vector<1x128x128xbf16>
    %84 = vector.shape_cast %83 : vector<1x128x128xbf16> to vector<128x128xbf16>
    %cst_53 = arith.constant dense<0.000000e+00> : vector<40x128xf32>
    %85 = tpu.matmul %82, %84, %cst_53 {dimension_numbers = #tpu.dot_dimension_numbers<[1], [0], [0], [1], [0, 0, 1, 1], [], []>} : vector<40x128xbf16>, vector<128x128xbf16>, vector<40x128xf32> -> vector<40x128xf32>
    %86 = arith.addf %81, %85 : vector<40x128xf32>
    %87 = vector.extract_strided_slice %20 {offsets = [520, 0], sizes = [40, 128], strides = [1, 1]} : vector<640x128xbf16> to vector<40x128xbf16>
    %c13 = arith.constant 13 : index
    %c0_54 = arith.constant 0 : index
    %c0_55 = arith.constant 0 : index
    %88 = vector.load %arg5[%c13, %c0_54, %c0_55] : memref<16x128x128xbf16, #tpu.memory_space<vmem>>, vector<1x128x128xbf16>
    %89 = vector.shape_cast %88 : vector<1x128x128xbf16> to vector<128x128xbf16>
    %cst_56 = arith.constant dense<0.000000e+00> : vector<40x128xf32>
    %90 = tpu.matmul %87, %89, %cst_56 {dimension_numbers = #tpu.dot_dimension_numbers<[1], [0], [0], [1], [0, 0, 1, 1], [], []>} : vector<40x128xbf16>, vector<128x128xbf16>, vector<40x128xf32> -> vector<40x128xf32>
    %91 = arith.addf %86, %90 : vector<40x128xf32>
    %92 = vector.extract_strided_slice %20 {offsets = [560, 0], sizes = [40, 128], strides = [1, 1]} : vector<640x128xbf16> to vector<40x128xbf16>
    %c14 = arith.constant 14 : index
    %c0_57 = arith.constant 0 : index
    %c0_58 = arith.constant 0 : index
    %93 = vector.load %arg5[%c14, %c0_57, %c0_58] : memref<16x128x128xbf16, #tpu.memory_space<vmem>>, vector<1x128x128xbf16>
    %94 = vector.shape_cast %93 : vector<1x128x128xbf16> to vector<128x128xbf16>
    %cst_59 = arith.constant dense<0.000000e+00> : vector<40x128xf32>
    %95 = tpu.matmul %92, %94, %cst_59 {dimension_numbers = #tpu.dot_dimension_numbers<[1], [0], [0], [1], [0, 0, 1, 1], [], []>} : vector<40x128xbf16>, vector<128x128xbf16>, vector<40x128xf32> -> vector<40x128xf32>
    %96 = arith.addf %91, %95 : vector<40x128xf32>
    %97 = vector.extract_strided_slice %20 {offsets = [600, 0], sizes = [40, 128], strides = [1, 1]} : vector<640x128xbf16> to vector<40x128xbf16>
    %c15 = arith.constant 15 : index
    %c0_60 = arith.constant 0 : index
    %c0_61 = arith.constant 0 : index
    %98 = vector.load %arg5[%c15, %c0_60, %c0_61] : memref<16x128x128xbf16, #tpu.memory_space<vmem>>, vector<1x128x128xbf16>
    %99 = vector.shape_cast %98 : vector<1x128x128xbf16> to vector<128x128xbf16>
    %cst_62 = arith.constant dense<0.000000e+00> : vector<40x128xf32>
    %100 = tpu.matmul %97, %99, %cst_62 {dimension_numbers = #tpu.dot_dimension_numbers<[1], [0], [0], [1], [0, 0, 1, 1], [], []>} : vector<40x128xbf16>, vector<128x128xbf16>, vector<40x128xf32> -> vector<40x128xf32>
    %101 = arith.addf %96, %100 : vector<40x128xf32>
    %c0_63 = arith.constant 0 : index
    %c0_64 = arith.constant 0 : index
    %102 = vector.load %arg6[%c0_63, %c0_64] : memref<1x128xf32, #tpu.memory_space<vmem>>, vector<1x128xf32>
    %103 = vector.broadcast %102 : vector<1x128xf32> to vector<40x128xf32>
    %104 = arith.addf %101, %103 : vector<40x128xf32>
    %cst_65 = arith.constant 0.000000e+00 : f32
    %105 = vector.broadcast %cst_65 : f32 to vector<40x128xf32>
    %106 = arith.maximumf %104, %105 : vector<40x128xf32>
    %107 = arith.truncf %106 : vector<40x128xf32> to vector<40x128xbf16>
    %c0_66 = arith.constant 0 : index
    %c0_67 = arith.constant 0 : index
    %108 = vector.load %arg7[%c0_66, %c0_67] : memref<72x40xbf16, #tpu.memory_space<vmem>>, vector<72x40xbf16>
    %cst_68 = arith.constant dense<0.000000e+00> : vector<72x128xf32>
    %109 = tpu.matmul %108, %107, %cst_68 {dimension_numbers = #tpu.dot_dimension_numbers<[1], [0], [0], [1], [0, 0, 1, 1], [], []>} : vector<72x40xbf16>, vector<40x128xbf16>, vector<72x128xf32> -> vector<72x128xf32>
    %110 = arith.truncf %109 : vector<72x128xf32> to vector<72x128xbf16>
    %cst_69 = arith.constant 0.000000e+00 : f32
    %111 = vector.broadcast %cst_69 : f32 to vector<8x128xf32>
    %112 = vector.extract_strided_slice %110 {offsets = [0, 0], sizes = [8, 128], strides = [1, 1]} : vector<72x128xbf16> to vector<8x128xbf16>
    %c0_70 = arith.constant 0 : index
    %c0_71 = arith.constant 0 : index
    %c0_72 = arith.constant 0 : index
    %113 = vector.load %arg8[%c0_70, %c0_71, %c0_72] : memref<9x128x128xbf16, #tpu.memory_space<vmem>>, vector<1x128x128xbf16>
    %114 = vector.shape_cast %113 : vector<1x128x128xbf16> to vector<128x128xbf16>
    %cst_73 = arith.constant dense<0.000000e+00> : vector<8x128xf32>
    %115 = tpu.matmul %112, %114, %cst_73 {dimension_numbers = #tpu.dot_dimension_numbers<[1], [0], [0], [1], [0, 0, 1, 1], [], []>} : vector<8x128xbf16>, vector<128x128xbf16>, vector<8x128xf32> -> vector<8x128xf32>
    %116 = arith.addf %111, %115 : vector<8x128xf32>
    %117 = vector.extract_strided_slice %110 {offsets = [8, 0], sizes = [8, 128], strides = [1, 1]} : vector<72x128xbf16> to vector<8x128xbf16>
    %c1_74 = arith.constant 1 : index
    %c0_75 = arith.constant 0 : index
    %c0_76 = arith.constant 0 : index
    %118 = vector.load %arg8[%c1_74, %c0_75, %c0_76] : memref<9x128x128xbf16, #tpu.memory_space<vmem>>, vector<1x128x128xbf16>
    %119 = vector.shape_cast %118 : vector<1x128x128xbf16> to vector<128x128xbf16>
    %cst_77 = arith.constant dense<0.000000e+00> : vector<8x128xf32>
    %120 = tpu.matmul %117, %119, %cst_77 {dimension_numbers = #tpu.dot_dimension_numbers<[1], [0], [0], [1], [0, 0, 1, 1], [], []>} : vector<8x128xbf16>, vector<128x128xbf16>, vector<8x128xf32> -> vector<8x128xf32>
    %121 = arith.addf %116, %120 : vector<8x128xf32>
    %122 = vector.extract_strided_slice %110 {offsets = [16, 0], sizes = [8, 128], strides = [1, 1]} : vector<72x128xbf16> to vector<8x128xbf16>
    %c2_78 = arith.constant 2 : index
    %c0_79 = arith.constant 0 : index
    %c0_80 = arith.constant 0 : index
    %123 = vector.load %arg8[%c2_78, %c0_79, %c0_80] : memref<9x128x128xbf16, #tpu.memory_space<vmem>>, vector<1x128x128xbf16>
    %124 = vector.shape_cast %123 : vector<1x128x128xbf16> to vector<128x128xbf16>
    %cst_81 = arith.constant dense<0.000000e+00> : vector<8x128xf32>
    %125 = tpu.matmul %122, %124, %cst_81 {dimension_numbers = #tpu.dot_dimension_numbers<[1], [0], [0], [1], [0, 0, 1, 1], [], []>} : vector<8x128xbf16>, vector<128x128xbf16>, vector<8x128xf32> -> vector<8x128xf32>
    %126 = arith.addf %121, %125 : vector<8x128xf32>
    %127 = vector.extract_strided_slice %110 {offsets = [24, 0], sizes = [8, 128], strides = [1, 1]} : vector<72x128xbf16> to vector<8x128xbf16>
    %c3_82 = arith.constant 3 : index
    %c0_83 = arith.constant 0 : index
    %c0_84 = arith.constant 0 : index
    %128 = vector.load %arg8[%c3_82, %c0_83, %c0_84] : memref<9x128x128xbf16, #tpu.memory_space<vmem>>, vector<1x128x128xbf16>
    %129 = vector.shape_cast %128 : vector<1x128x128xbf16> to vector<128x128xbf16>
    %cst_85 = arith.constant dense<0.000000e+00> : vector<8x128xf32>
    %130 = tpu.matmul %127, %129, %cst_85 {dimension_numbers = #tpu.dot_dimension_numbers<[1], [0], [0], [1], [0, 0, 1, 1], [], []>} : vector<8x128xbf16>, vector<128x128xbf16>, vector<8x128xf32> -> vector<8x128xf32>
    %131 = arith.addf %126, %130 : vector<8x128xf32>
    %132 = vector.extract_strided_slice %110 {offsets = [32, 0], sizes = [8, 128], strides = [1, 1]} : vector<72x128xbf16> to vector<8x128xbf16>
    %c4_86 = arith.constant 4 : index
    %c0_87 = arith.constant 0 : index
    %c0_88 = arith.constant 0 : index
    %133 = vector.load %arg8[%c4_86, %c0_87, %c0_88] : memref<9x128x128xbf16, #tpu.memory_space<vmem>>, vector<1x128x128xbf16>
    %134 = vector.shape_cast %133 : vector<1x128x128xbf16> to vector<128x128xbf16>
    %cst_89 = arith.constant dense<0.000000e+00> : vector<8x128xf32>
    %135 = tpu.matmul %132, %134, %cst_89 {dimension_numbers = #tpu.dot_dimension_numbers<[1], [0], [0], [1], [0, 0, 1, 1], [], []>} : vector<8x128xbf16>, vector<128x128xbf16>, vector<8x128xf32> -> vector<8x128xf32>
    %136 = arith.addf %131, %135 : vector<8x128xf32>
    %137 = vector.extract_strided_slice %110 {offsets = [40, 0], sizes = [8, 128], strides = [1, 1]} : vector<72x128xbf16> to vector<8x128xbf16>
    %c5_90 = arith.constant 5 : index
    %c0_91 = arith.constant 0 : index
    %c0_92 = arith.constant 0 : index
    %138 = vector.load %arg8[%c5_90, %c0_91, %c0_92] : memref<9x128x128xbf16, #tpu.memory_space<vmem>>, vector<1x128x128xbf16>
    %139 = vector.shape_cast %138 : vector<1x128x128xbf16> to vector<128x128xbf16>
    %cst_93 = arith.constant dense<0.000000e+00> : vector<8x128xf32>
    %140 = tpu.matmul %137, %139, %cst_93 {dimension_numbers = #tpu.dot_dimension_numbers<[1], [0], [0], [1], [0, 0, 1, 1], [], []>} : vector<8x128xbf16>, vector<128x128xbf16>, vector<8x128xf32> -> vector<8x128xf32>
    %141 = arith.addf %136, %140 : vector<8x128xf32>
    %142 = vector.extract_strided_slice %110 {offsets = [48, 0], sizes = [8, 128], strides = [1, 1]} : vector<72x128xbf16> to vector<8x128xbf16>
    %c6_94 = arith.constant 6 : index
    %c0_95 = arith.constant 0 : index
    %c0_96 = arith.constant 0 : index
    %143 = vector.load %arg8[%c6_94, %c0_95, %c0_96] : memref<9x128x128xbf16, #tpu.memory_space<vmem>>, vector<1x128x128xbf16>
    %144 = vector.shape_cast %143 : vector<1x128x128xbf16> to vector<128x128xbf16>
    %cst_97 = arith.constant dense<0.000000e+00> : vector<8x128xf32>
    %145 = tpu.matmul %142, %144, %cst_97 {dimension_numbers = #tpu.dot_dimension_numbers<[1], [0], [0], [1], [0, 0, 1, 1], [], []>} : vector<8x128xbf16>, vector<128x128xbf16>, vector<8x128xf32> -> vector<8x128xf32>
    %146 = arith.addf %141, %145 : vector<8x128xf32>
    %147 = vector.extract_strided_slice %110 {offsets = [56, 0], sizes = [8, 128], strides = [1, 1]} : vector<72x128xbf16> to vector<8x128xbf16>
    %c7_98 = arith.constant 7 : index
    %c0_99 = arith.constant 0 : index
    %c0_100 = arith.constant 0 : index
    %148 = vector.load %arg8[%c7_98, %c0_99, %c0_100] : memref<9x128x128xbf16, #tpu.memory_space<vmem>>, vector<1x128x128xbf16>
    %149 = vector.shape_cast %148 : vector<1x128x128xbf16> to vector<128x128xbf16>
    %cst_101 = arith.constant dense<0.000000e+00> : vector<8x128xf32>
    %150 = tpu.matmul %147, %149, %cst_101 {dimension_numbers = #tpu.dot_dimension_numbers<[1], [0], [0], [1], [0, 0, 1, 1], [], []>} : vector<8x128xbf16>, vector<128x128xbf16>, vector<8x128xf32> -> vector<8x128xf32>
    %151 = arith.addf %146, %150 : vector<8x128xf32>
    %152 = vector.extract_strided_slice %110 {offsets = [64, 0], sizes = [8, 128], strides = [1, 1]} : vector<72x128xbf16> to vector<8x128xbf16>
    %c8_102 = arith.constant 8 : index
    %c0_103 = arith.constant 0 : index
    %c0_104 = arith.constant 0 : index
    %153 = vector.load %arg8[%c8_102, %c0_103, %c0_104] : memref<9x128x128xbf16, #tpu.memory_space<vmem>>, vector<1x128x128xbf16>
    %154 = vector.shape_cast %153 : vector<1x128x128xbf16> to vector<128x128xbf16>
    %cst_105 = arith.constant dense<0.000000e+00> : vector<8x128xf32>
    %155 = tpu.matmul %152, %154, %cst_105 {dimension_numbers = #tpu.dot_dimension_numbers<[1], [0], [0], [1], [0, 0, 1, 1], [], []>} : vector<8x128xbf16>, vector<128x128xbf16>, vector<8x128xf32> -> vector<8x128xf32>
    %156 = arith.addf %151, %155 : vector<8x128xf32>
    %c0_106 = arith.constant 0 : index
    %c0_107 = arith.constant 0 : index
    %157 = vector.load %arg9[%c0_106, %c0_107] : memref<1x128xf32, #tpu.memory_space<vmem>>, vector<1x128xf32>
    %158 = vector.broadcast %157 : vector<1x128xf32> to vector<8x128xf32>
    %159 = arith.addf %156, %158 : vector<8x128xf32>
    %cst_108 = arith.constant 0.000000e+00 : f32
    %160 = vector.broadcast %cst_108 : f32 to vector<8x128xf32>
    %161 = arith.maximumf %159, %160 : vector<8x128xf32>
    %162 = arith.truncf %161 : vector<8x128xf32> to vector<8x128xbf16>
    %c0_109 = arith.constant 0 : index
    %c0_110 = arith.constant 0 : index
    %c0_111 = arith.constant 0 : index
    %163 = vector.load %arg11[%c0_109, %c0_110, %c0_111] : memref<1x128x512xbf16, #tpu.memory_space<vmem>>, vector<1x128x512xbf16>
    %164 = vector.shape_cast %163 : vector<1x128x512xbf16> to vector<128x512xbf16>
    %cst_112 = arith.constant dense<0.000000e+00> : vector<8x512xf32>
    %165 = tpu.matmul %162, %164, %cst_112 {dimension_numbers = #tpu.dot_dimension_numbers<[1], [0], [0], [1], [0, 0, 1, 1], [], []>} : vector<8x128xbf16>, vector<128x512xbf16>, vector<8x512xf32> -> vector<8x512xf32>
    %c0_113 = arith.constant 0 : index
    %c0_114 = arith.constant 0 : index
    %166 = vector.load %arg12[%c0_113, %c0_114] : memref<1x512xf32, #tpu.memory_space<vmem>>, vector<1x512xf32>
    %167 = vector.broadcast %166 : vector<1x512xf32> to vector<8x512xf32>
    %168 = arith.addf %165, %167 : vector<8x512xf32>
    %cst_115 = arith.constant 0.000000e+00 : f32
    %169 = vector.broadcast %cst_115 : f32 to vector<8x512xf32>
    %170 = arith.maximumf %168, %169 : vector<8x512xf32>
    %171 = arith.truncf %170 : vector<8x512xf32> to vector<8x512xbf16>
    %c0_116 = arith.constant 0 : index
    %c0_117 = arith.constant 0 : index
    %172 = vector.load %arg13[%c0_116, %c0_117] : memref<512x128xbf16, #tpu.memory_space<vmem>>, vector<512x128xbf16>
    %cst_118 = arith.constant dense<0.000000e+00> : vector<8x128xf32>
    %173 = tpu.matmul %171, %172, %cst_118 {dimension_numbers = #tpu.dot_dimension_numbers<[1], [0], [0], [1], [0, 0, 1, 1], [], []>} : vector<8x512xbf16>, vector<512x128xbf16>, vector<8x128xf32> -> vector<8x128xf32>
    %c0_119 = arith.constant 0 : index
    %c0_120 = arith.constant 0 : index
    %174 = vector.load %arg14[%c0_119, %c0_120] : memref<1x128xf32, #tpu.memory_space<vmem>>, vector<1x128xf32>
    %175 = vector.broadcast %174 : vector<1x128xf32> to vector<8x128xf32>
    %176 = arith.addf %173, %175 : vector<8x128xf32>
    %c0_121 = arith.constant 0 : index
    %c0_122 = arith.constant 0 : index
    %c0_123 = arith.constant 0 : index
    %177 = vector.load %arg15[%c0_121, %c0_122, %c0_123] : memref<1x8x128xf32, #tpu.memory_space<vmem>>, vector<1x8x128xf32>
    %178 = vector.shape_cast %177 : vector<1x8x128xf32> to vector<8x128xf32>
    %179 = vector.shape_cast %176 : vector<8x128xf32> to vector<1x8x128xf32>
    tpu.vector_store %arg15[%c0_121, %c0_122, %c0_123], %179 {strides = array<i32>} : memref<1x8x128xf32, #tpu.memory_space<vmem>>, vector<1x8x128xf32>,
    return
  }
  func.func @transform_0(%arg0: i32) -> (i32, i32, i32) {
    %c0_i32 = arith.constant 0 : i32
    %c0_i32_0 = arith.constant 0 : i32
    %c0_i32_1 = arith.constant 0 : i32
    return %arg0, %c0_i32, %c0_i32_0 : i32, i32, i32
  }
  func.func @transform_1(%arg0: i32) -> (i32, i32) {
    %c0_i32 = arith.constant 0 : i32
    %c0_i32_0 = arith.constant 0 : i32
    %c0_i32_1 = arith.constant 0 : i32
    return %c0_i32, %c0_i32_0 : i32, i32
  }
  func.func @transform_2(%arg0: i32) -> (i32, i32) {
    %c0_i32 = arith.constant 0 : i32
    %c0_i32_0 = arith.constant 0 : i32
    %c0_i32_1 = arith.constant 0 : i32
    return %c0_i32, %c0_i32_0 : i32, i32
  }
  func.func @transform_3(%arg0: i32) -> (i32, i32) {
    %c0_i32 = arith.constant 0 : i32
    %c0_i32_0 = arith.constant 0 : i32
    %c0_i32_1 = arith.constant 0 : i32
    return %c0_i32, %c0_i32_0 : i32, i32
  }
  func.func @transform_4(%arg0: i32) -> (i32, i32, i32) {
    %c0_i32 = arith.constant 0 : i32
    %c0_i32_0 = arith.constant 0 : i32
    %c0_i32_1 = arith.constant 0 : i32
    %c0_i32_2 = arith.constant 0 : i32
    return %c0_i32, %c0_i32_0, %c0_i32_1 : i32, i32, i32
  }
  func.func @transform_5(%arg0: i32) -> (i32, i32) {
    %c0_i32 = arith.constant 0 : i32
    %c0_i32_0 = arith.constant 0 : i32
    %c0_i32_1 = arith.constant 0 : i32
    return %c0_i32, %c0_i32_0 : i32, i32
  }
  func.func @transform_6(%arg0: i32) -> (i32, i32) {
    %c0_i32 = arith.constant 0 : i32
    %c0_i32_0 = arith.constant 0 : i32
    %c0_i32_1 = arith.constant 0 : i32
    return %c0_i32, %c0_i32_0 : i32, i32
  }
  func.func @transform_7(%arg0: i32) -> (i32, i32, i32) {
    %c0_i32 = arith.constant 0 : i32
    %c0_i32_0 = arith.constant 0 : i32
    %c0_i32_1 = arith.constant 0 : i32
    %c0_i32_2 = arith.constant 0 : i32
    return %c0_i32, %c0_i32_0, %c0_i32_1 : i32, i32, i32
  }
  func.func @transform_8(%arg0: i32) -> (i32, i32) {
    %c0_i32 = arith.constant 0 : i32
    %c0_i32_0 = arith.constant 0 : i32
    %c0_i32_1 = arith.constant 0 : i32
    return %c0_i32, %c0_i32_0 : i32, i32
  }
  func.func @transform_9(%arg0: i32) -> (i32, i32) {
    %c0_i32 = arith.constant 0 : i32
    %c0_i32_0 = arith.constant 0 : i32
    %c0_i32_1 = arith.constant 0 : i32
    return %c0_i32, %c0_i32_0 : i32, i32
  }
  func.func @transform_10(%arg0: i32) -> (i32, i32, i32) {
    %c0_i32 = arith.constant 0 : i32
    %c0_i32_0 = arith.constant 0 : i32
    %c0_i32_1 = arith.constant 0 : i32
    %c0_i32_2 = arith.constant 0 : i32
    return %c0_i32, %c0_i32_0, %c0_i32_1 : i32, i32, i32
  }
  func.func @transform_11(%arg0: i32) -> (i32, i32) {
    %c0_i32 = arith.constant 0 : i32
    %c0_i32_0 = arith.constant 0 : i32
    %c0_i32_1 = arith.constant 0 : i32
    return %c0_i32, %c0_i32_0 : i32, i32
  }
  func.func @transform_12(%arg0: i32) -> (i32, i32) {
    %c0_i32 = arith.constant 0 : i32
    %c0_i32_0 = arith.constant 0 : i32
    %c0_i32_1 = arith.constant 0 : i32
    return %c0_i32, %c0_i32_0 : i32, i32
  }
  func.func @transform_13(%arg0: i32) -> (i32, i32) {
    %c0_i32 = arith.constant 0 : i32
    %c0_i32_0 = arith.constant 0 : i32
    %c0_i32_1 = arith.constant 0 : i32
    return %c0_i32, %c0_i32_0 : i32, i32
  }
  func.func @transform_14(%arg0: i32) -> (i32, i32, i32) {
    %c0_i32 = arith.constant 0 : i32
    %c0_i32_0 = arith.constant 0 : i32
    %c0_i32_1 = arith.constant 0 : i32
    return %arg0, %c0_i32, %c0_i32_0 : i32, i32, i32
  }
}

</mosaic_0001>

<llo_original>
// kernel: dqn_forward.1
$region0: #{dqn_forward.1}
  #allocation0 [shape = 'u32[]', space=smem, size = 0x4, offset = 0x4, fixed_abs, tag = 'smem constant byte address 0x4 - core index']
  #allocation1 [shape = 'u32[72,128]{1,0:T(1,128)}', space=vmem, size = 0x9000, scoped, tag = 'internal scratch']
  %s0 = inlined_call_operand.vmem [shape: s8[8,64,256], index: 0, kind: input, shape index: {}]
  %s1 = inlined_call_operand.vmem [shape: bf16[256,128], index: 1, kind: input, shape index: {}]
  %s2 = inlined_call_operand.vmem [shape: f32[1,128], index: 2, kind: input, shape index: {}]
  %s3 = inlined_call_operand.vmem [shape: bf16[640,256], index: 3, kind: input, shape index: {}]
  %s4 = inlined_call_operand.vmem [shape: bf16[16,128,128], index: 4, kind: input, shape index: {}]
  %s5 = inlined_call_operand.vmem [shape: f32[1,128], index: 5, kind: input, shape index: {}]
  %s6 = inlined_call_operand.vmem [shape: bf16[72,40], index: 6, kind: input, shape index: {}]
  %s7 = inlined_call_operand.vmem [shape: bf16[9,128,128], index: 7, kind: input, shape index: {}]
  %s8 = inlined_call_operand.vmem [shape: f32[1,128], index: 8, kind: input, shape index: {}]
  %s9 = inlined_call_operand.vmem [shape: bf16[8,8], index: 9, kind: input, shape index: {}]
  %s10 = inlined_call_operand.vmem [shape: bf16[1,128,512], index: 10, kind: input, shape index: {}]
  %s11 = inlined_call_operand.vmem [shape: f32[1,512], index: 11, kind: input, shape index: {}]
  %s12 = inlined_call_operand.vmem [shape: bf16[512,128], index: 12, kind: input, shape index: {}]
  %s13 = inlined_call_operand.vmem [shape: f32[1,128], index: 13, kind: input, shape index: {}]
  %s14 = inlined_call_operand.vmem [shape: f32[2,8,128], index: 14, kind: output, shape index: {}]
  %s15 = sld [smem:[#allocation0]]
  $region89: #{dqn_forward.1} parent=0
    _
  %s17 = ssub.s32 1, %s15
  %s18 = scalar_select 0, %s17, %s15
  loop: start=0, step=1, limit=4
  $region2: #{dqn_forward.1} parent=0 // loop_pre_header
    _
  $region3: #{dqn_forward.1} parent=0 // loop_header
    %s20 = sphi 0, %s24
    %p21 = scmp.ge.s32.totalorder %s20, 4
    %s30 = sphi 0, %s32
    %s33 = sphi 0, %s30
    %s34 = sphi 0, %s33
    %s50 = sphi 0, %s34
    %s54 = sphi 0, %s54
    %s56 = sphi 0, %s54
    %s57 = sphi 0, %s56
    %s71 = sphi 0, %s57
    %s75 = sphi 0, %s75
    %s77 = sphi 0, %s75
    %s78 = sphi 0, %s77
    %s92 = sphi 0, %s78
    %s96 = sphi 0, %s96
    %s98 = sphi 0, %s96
    %s99 = sphi 0, %s98
    %s113 = sphi 0, %s99
    %s117 = sphi 0, %s117
    %s119 = sphi 0, %s117
    %s120 = sphi 0, %s119
    %s134 = sphi 0, %s120
    %s138 = sphi 0, %s138
    %s140 = sphi 0, %s138
    %s141 = sphi 0, %s140
    %s155 = sphi 0, %s141
    %s159 = sphi 0, %s159
    %s161 = sphi 0, %s159
    %s162 = sphi 0, %s161
    %s176 = sphi 0, %s162
    %s180 = sphi 0, %s180
    %s182 = sphi 0, %s180
    %s183 = sphi 0, %s182
    %s197 = sphi 0, %s183
    %s201 = sphi 0, %s201
    %s203 = sphi 0, %s201
    %s204 = sphi 0, %s203
    %s218 = sphi 0, %s204
    %s222 = sphi 0, %s222
    %s224 = sphi 0, %s222
    %s225 = sphi 0, %s224
    %s239 = sphi 0, %s225
    %s243 = sphi 0, %s243
    %s245 = sphi 0, %s243
    %s246 = sphi 0, %s245
    %s260 = sphi 0, %s246
    %s264 = sphi 0, %s264
    %s266 = sphi 0, %s264
    %s267 = sphi 0, %s266
    %s281 = sphi 0, %s267
    %s285 = sphi 0, %s285
    %s287 = sphi 0, %s285
    %s288 = sphi 0, %s287
    %s302 = sphi 0, %s288
    %s306 = sphi 0, %s306
    %s308 = sphi 0, %s306
    %s309 = sphi 0, %s308
    %s323 = sphi 0, %s309
    %s329 = sphi 0, %s331
    %s332 = sphi 0, %s329
    %s333 = sphi 0, %s332
    %s349 = sphi 0, %s333
  $region4: #{dqn_forward.1} parent=0 // loop_header_branch
    %23 = sbr.rel (%p21) target = $region8
  $region5: #{dqn_forward.1} parent=0 // loop_body
    %s25 = ssub.s32 %s20, 1
    %s26 = ssub.s32 %s20, 2
    %s27 = sadd.s32 %s20, 1
    %s28 = ssub.s32 %s20, %s27
    %p29 = scmp.eq.s32.totalorder %s28, 0
    %s31 = sadd.s32 %s30, 1
    %s32 = scalar_select %p29, %s30, %s31
    %p35 = pneg %p29
    %p36 = scmp.eq.s32.totalorder %s20, 1
    %p37 = por %p35, %p36
    %p38 = scmp.ne.s32.totalorder %s30, %s33
    %p39 = scmp.eq.s32.totalorder %s20, 0
    %p40 = por %p38, %p39
    %p41 = scmp.ne.s32.totalorder %s30, %s33
    %p42 = scmp.eq.s32.totalorder %s25, 1
    %p43 = por %p41, %p42
    %p44 = scmp.ne.s32.totalorder %s33, %s34
    %p45 = scmp.eq.s32.totalorder %s25, 0
    %p46 = por %p44, %p45
    %p47 = scmp.ne.s32.totalorder %s33, %s34
    %p48 = scmp.eq.s32.totalorder %s26, 1
    %p49 = por %p47, %p48
    %p51 = scmp.ne.s32.totalorder %s34, %s50
    %p52 = scmp.eq.s32.totalorder %s26, 0
    %p53 = por %p51, %p52
    %s55 = sadd.s32 %s54, 1
    %p58 = scmp.eq.s32.totalorder %s20, 1
    %p59 = scmp.ne.s32.totalorder %s54, %s56
    %p60 = scmp.eq.s32.totalorder %s20, 0
    %p61 = por %p59, %p60
    %p62 = scmp.ne.s32.totalorder %s54, %s56
    %p63 = scmp.eq.s32.totalorder %s25, 1
    %p64 = por %p62, %p63
    %p65 = scmp.ne.s32.totalorder %s56, %s57
    %p66 = scmp.eq.s32.totalorder %s25, 0
    %p67 = por %p65, %p66
    %p68 = scmp.ne.s32.totalorder %s56, %s57
    %p69 = scmp.eq.s32.totalorder %s26, 1
    %p70 = por %p68, %p69
    %p72 = scmp.ne.s32.totalorder %s57, %s71
    %p73 = scmp.eq.s32.totalorder %s26, 0
    %p74 = por %p72, %p73
    %s76 = sadd.s32 %s75, 1
    %p79 = scmp.eq.s32.totalorder %s20, 1
    %p80 = scmp.ne.s32.totalorder %s75, %s77
    %p81 = scmp.eq.s32.totalorder %s20, 0
    %p82 = por %p80, %p81
    %p83 = scmp.ne.s32.totalorder %s75, %s77
    %p84 = scmp.eq.s32.totalorder %s25, 1
    %p85 = por %p83, %p84
    %p86 = scmp.ne.s32.totalorder %s77, %s78
    %p87 = scmp.eq.s32.totalorder %s25, 0
    %p88 = por %p86, %p87
    %p89 = scmp.ne.s32.totalorder %s77, %s78
    %p90 = scmp.eq.s32.totalorder %s26, 1
    %p91 = por %p89, %p90
    %p93 = scmp.ne.s32.totalorder %s78, %s92
    %p94 = scmp.eq.s32.totalorder %s26, 0
    %p95 = por %p93, %p94
    %s97 = sadd.s32 %s96, 1
    %p100 = scmp.eq.s32.totalorder %s20, 1
    %p101 = scmp.ne.s32.totalorder %s96, %s98
    %p102 = scmp.eq.s32.totalorder %s20, 0
    %p103 = por %p101, %p102
    %p104 = scmp.ne.s32.totalorder %s96, %s98
    %p105 = scmp.eq.s32.totalorder %s25, 1
    %p106 = por %p104, %p105
    %p107 = scmp.ne.s32.totalorder %s98, %s99
    %p108 = scmp.eq.s32.totalorder %s25, 0
    %p109 = por %p107, %p108
    %p110 = scmp.ne.s32.totalorder %s98, %s99
    %p111 = scmp.eq.s32.totalorder %s26, 1
    %p112 = por %p110, %p111
    %p114 = scmp.ne.s32.totalorder %s99, %s113
    %p115 = scmp.eq.s32.totalorder %s26, 0
    %p116 = por %p114, %p115
    %s118 = sadd.s32 %s117, 1
    %p121 = scmp.eq.s32.totalorder %s20, 1
    %p122 = scmp.ne.s32.totalorder %s117, %s119
    %p123 = scmp.eq.s32.totalorder %s20, 0
    %p124 = por %p122, %p123
    %p125 = scmp.ne.s32.totalorder %s117, %s119
    %p126 = scmp.eq.s32.totalorder %s25, 1
    %p127 = por %p125, %p126
    %p128 = scmp.ne.s32.totalorder %s119, %s120
    %p129 = scmp.eq.s32.totalorder %s25, 0
    %p130 = por %p128, %p129
    %p131 = scmp.ne.s32.totalorder %s119, %s120
    %p132 = scmp.eq.s32.totalorder %s26, 1
    %p133 = por %p131, %p132
    %p135 = scmp.ne.s32.totalorder %s120, %s134
    %p136 = scmp.eq.s32.totalorder %s26, 0
    %p137 = por %p135, %p136
    %s139 = sadd.s32 %s138, 1
    %p142 = scmp.eq.s32.totalorder %s20, 1
    %p143 = scmp.ne.s32.totalorder %s138, %s140
    %p144 = scmp.eq.s32.totalorder %s20, 0
    %p145 = por %p143, %p144
    %p146 = scmp.ne.s32.totalorder %s138, %s140
    %p147 = scmp.eq.s32.totalorder %s25, 1
    %p148 = por %p146, %p147
    %p149 = scmp.ne.s32.totalorder %s140, %s141
    %p150 = scmp.eq.s32.totalorder %s25, 0
    %p151 = por %p149, %p150
    %p152 = scmp.ne.s32.totalorder %s140, %s141
    %p153 = scmp.eq.s32.totalorder %s26, 1
    %p154 = por %p152, %p153
    %p156 = scmp.ne.s32.totalorder %s141, %s155
    %p157 = scmp.eq.s32.totalorder %s26, 0
    %p158 = por %p156, %p157
    %s160 = sadd.s32 %s159, 1
    %p163 = scmp.eq.s32.totalorder %s20, 1
    %p164 = scmp.ne.s32.totalorder %s159, %s161
    %p165 = scmp.eq.s32.totalorder %s20, 0
    %p166 = por %p164, %p165
    %p167 = scmp.ne.s32.totalorder %s159, %s161
    %p168 = scmp.eq.s32.totalorder %s25, 1
    %p169 = por %p167, %p168
    %p170 = scmp.ne.s32.totalorder %s161, %s162
    %p171 = scmp.eq.s32.totalorder %s25, 0
    %p172 = por %p170, %p171
    %p173 = scmp.ne.s32.totalorder %s161, %s162
    %p174 = scmp.eq.s32.totalorder %s26, 1
    %p175 = por %p173, %p174
    %p177 = scmp.ne.s32.totalorder %s162, %s176
    %p178 = scmp.eq.s32.totalorder %s26, 0
    %p179 = por %p177, %p178
    %s181 = sadd.s32 %s180, 1
    %p184 = scmp.eq.s32.totalorder %s20, 1
    %p185 = scmp.ne.s32.totalorder %s180, %s182
    %p186 = scmp.eq.s32.totalorder %s20, 0
    %p187 = por %p185, %p186
    %p188 = scmp.ne.s32.totalorder %s180, %s182
    %p189 = scmp.eq.s32.totalorder %s25, 1
    %p190 = por %p188, %p189
    %p191 = scmp.ne.s32.totalorder %s182, %s183
    %p192 = scmp.eq.s32.totalorder %s25, 0
    %p193 = por %p191, %p192
    %p194 = scmp.ne.s32.totalorder %s182, %s183
    %p195 = scmp.eq.s32.totalorder %s26, 1
    %p196 = por %p194, %p195
    %p198 = scmp.ne.s32.totalorder %s183, %s197
    %p199 = scmp.eq.s32.totalorder %s26, 0
    %p200 = por %p198, %p199
    %s202 = sadd.s32 %s201, 1
    %p205 = scmp.eq.s32.totalorder %s20, 1
    %p206 = scmp.ne.s32.totalorder %s201, %s203
    %p207 = scmp.eq.s32.totalorder %s20, 0
    %p208 = por %p206, %p207
    %p209 = scmp.ne.s32.totalorder %s201, %s203
    %p210 = scmp.eq.s32.totalorder %s25, 1
    %p211 = por %p209, %p210
    %p212 = scmp.ne.s32.totalorder %s203, %s204
    %p213 = scmp.eq.s32.totalorder %s25, 0
    %p214 = por %p212, %p213
    %p215 = scmp.ne.s32.totalorder %s203, %s204
    %p216 = scmp.eq.s32.totalorder %s26, 1
    %p217 = por %p215, %p216
    %p219 = scmp.ne.s32.totalorder %s204, %s218
    %p220 = scmp.eq.s32.totalorder %s26, 0
    %p221 = por %p219, %p220
    %s223 = sadd.s32 %s222, 1
    %p226 = scmp.eq.s32.totalorder %s20, 1
    %p227 = scmp.ne.s32.totalorder %s222, %s224
    %p228 = scmp.eq.s32.totalorder %s20, 0
    %p229 = por %p227, %p228
    %p230 = scmp.ne.s32.totalorder %s222, %s224
    %p231 = scmp.eq.s32.totalorder %s25, 1
    %p232 = por %p230, %p231
    %p233 = scmp.ne.s32.totalorder %s224, %s225
    %p234 = scmp.eq.s32.totalorder %s25, 0
    %p235 = por %p233, %p234
    %p236 = scmp.ne.s32.totalorder %s224, %s225
    %p237 = scmp.eq.s32.totalorder %s26, 1
    %p238 = por %p236, %p237
    %p240 = scmp.ne.s32.totalorder %s225, %s239
    %p241 = scmp.eq.s32.totalorder %s26, 0
    %p242 = por %p240, %p241
    %s244 = sadd.s32 %s243, 1
    %p247 = scmp.eq.s32.totalorder %s20, 1
    %p248 = scmp.ne.s32.totalorder %s243, %s245
    %p249 = scmp.eq.s32.totalorder %s20, 0
    %p250 = por %p248, %p249
    %p251 = scmp.ne.s32.totalorder %s243, %s245
    %p252 = scmp.eq.s32.totalorder %s25, 1
    %p253 = por %p251, %p252
    %p254 = scmp.ne.s32.totalorder %s245, %s246
    %p255 = scmp.eq.s32.totalorder %s25, 0
    %p256 = por %p254, %p255
    %p257 = scmp.ne.s32.totalorder %s245, %s246
    %p258 = scmp.eq.s32.totalorder %s26, 1
    %p259 = por %p257, %p258
    %p261 = scmp.ne.s32.totalorder %s246, %s260
    %p262 = scmp.eq.s32.totalorder %s26, 0
    %p263 = por %p261, %p262
    %s265 = sadd.s32 %s264, 1
    %p268 = scmp.eq.s32.totalorder %s20, 1
    %p269 = scmp.ne.s32.totalorder %s264, %s266
    %p270 = scmp.eq.s32.totalorder %s20, 0
    %p271 = por %p269, %p270
    %p272 = scmp.ne.s32.totalorder %s264, %s266
    %p273 = scmp.eq.s32.totalorder %s25, 1
    %p274 = por %p272, %p273
    %p275 = scmp.ne.s32.totalorder %s266, %s267
    %p276 = scmp.eq.s32.totalorder %s25, 0
    %p277 = por %p275, %p276
    %p278 = scmp.ne.s32.totalorder %s266, %s267
    %p279 = scmp.eq.s32.totalorder %s26, 1
    %p280 = por %p278, %p279
    %p282 = scmp.ne.s32.totalorder %s267, %s281
    %p283 = scmp.eq.s32.totalorder %s26, 0
    %p284 = por %p282, %p283
    %s286 = sadd.s32 %s285, 1
    %p289 = scmp.eq.s32.totalorder %s20, 1
    %p290 = scmp.ne.s32.totalorder %s285, %s287
    %p291 = scmp.eq.s32.totalorder %s20, 0
    %p292 = por %p290, %p291
    %p293 = scmp.ne.s32.totalorder %s285, %s287
    %p294 = scmp.eq.s32.totalorder %s25, 1
    %p295 = por %p293, %p294
    %p296 = scmp.ne.s32.totalorder %s287, %s288
    %p297 = scmp.eq.s32.totalorder %s25, 0
    %p298 = por %p296, %p297
    %p299 = scmp.ne.s32.totalorder %s287, %s288
    %p300 = scmp.eq.s32.totalorder %s26, 1
    %p301 = por %p299, %p300
    %p303 = scmp.ne.s32.totalorder %s288, %s302
    %p304 = scmp.eq.s32.totalorder %s26, 0
    %p305 = por %p303, %p304
    %s307 = sadd.s32 %s306, 1
    %p310 = scmp.eq.s32.totalorder %s20, 1
    %p311 = scmp.ne.s32.totalorder %s306, %s308
    %p312 = scmp.eq.s32.totalorder %s20, 0
    %p313 = por %p311, %p312
    %p314 = scmp.ne.s32.totalorder %s306, %s308
    %p315 = scmp.eq.s32.totalorder %s25, 1
    %p316 = por %p314, %p315
    %p317 = scmp.ne.s32.totalorder %s308, %s309
    %p318 = scmp.eq.s32.totalorder %s25, 0
    %p319 = por %p317, %p318
    %p320 = scmp.ne.s32.totalorder %s308, %s309
    %p321 = scmp.eq.s32.totalorder %s26, 1
    %p322 = por %p320, %p321
    %p324 = scmp.ne.s32.totalorder %s309, %s323
    %p325 = scmp.eq.s32.totalorder %s26, 0
    %p326 = por %p324, %p325
    %s327 = ssub.s32 %s20, %s27
    %p328 = scmp.eq.s32.totalorder %s327, 0
    %s330 = sadd.s32 %s329, 1
    %s331 = scalar_select %p328, %s329, %s330
    %p334 = pneg %p328
    %p335 = scmp.eq.s32.totalorder %s20, 1
    %p336 = por %p334, %p335
    %p337 = scmp.ne.s32.totalorder %s329, %s332
    %p338 = scmp.eq.s32.totalorder %s20, 0
    %p339 = por %p337, %p338
    %p340 = scmp.ne.s32.totalorder %s329, %s332
    %p341 = scmp.eq.s32.totalorder %s25, 1
    %p342 = por %p340, %p341
    %p343 = scmp.ne.s32.totalorder %s332, %s333
    %p344 = scmp.eq.s32.totalorder %s25, 0
    %p345 = por %p343, %p344
    %p346 = scmp.ne.s32.totalorder %s332, %s333
    %p347 = scmp.eq.s32.totalorder %s26, 1
    %p348 = por %p346, %p347
    %p350 = scmp.ne.s32.totalorder %s333, %s349
    %p351 = scmp.eq.s32.totalorder %s26, 0
    %p352 = por %p350, %p351
    %p353 = scmp.le.s32.totalorder 1, %s20
    %p354 = scmp.lt.s32.totalorder %s20, 3
    %p355 = pnand %p353, %p354
    %p356 = pneg %p355
    // Predicated region
    $region9: #{dqn_forward.1} parent=5 // pred_check
      _
    $region10: #{dqn_forward.1} parent=5 // pred_check_branch
      %358 = sbr.rel (%p355) target = $region12
    $region11: #{dqn_forward.1} parent=5 // pred_region
      %s359 = ssub.s32 %s20, 1
      // Predicated region
      $region13: #{dqn_forward.1} parent=11 // pred_check
        %p360 = pneg %p67
      $region14: #{dqn_forward.1} parent=11 // pred_check_branch
        %362 = sbr.rel (%p360) target = $region16
      $region15: #{dqn_forward.1} parent=11 // pred_region
        _
      $region16: #{dqn_forward.1} parent=11 // pred_fallthru
        _
      // Predicated region
      $region17: #{dqn_forward.1} parent=11 // pred_check
        %p363 = pneg %p88
      $region18: #{dqn_forward.1} parent=11 // pred_check_branch
        %365 = sbr.rel (%p363) target = $region20
      $region19: #{dqn_forward.1} parent=11 // pred_region
        _
      $region20: #{dqn_forward.1} parent=11 // pred_fallthru
        _
      // Predicated region
      $region21: #{dqn_forward.1} parent=11 // pred_check
        %p366 = pneg %p109
      $region22: #{dqn_forward.1} parent=11 // pred_check_branch
        %368 = sbr.rel (%p366) target = $region24
      $region23: #{dqn_forward.1} parent=11 // pred_region
        _
      $region24: #{dqn_forward.1} parent=11 // pred_fallthru
        _
      // Predicated region
      $region25: #{dqn_forward.1} parent=11 // pred_check
        %p369 = pneg %p130
      $region26: #{dqn_forward.1} parent=11 // pred_check_branch
        %371 = sbr.rel (%p369) target = $region28
      $region27: #{dqn_forward.1} parent=11 // pred_region
        _
      $region28: #{dqn_forward.1} parent=11 // pred_fallthru
        _
      // Predicated region
      $region29: #{dqn_forward.1} parent=11 // pred_check
        %p372 = pneg %p151
      $region30: #{dqn_forward.1} parent=11 // pred_check_branch
        %374 = sbr.rel (%p372) target = $region32
      $region31: #{dqn_forward.1} parent=11 // pred_region
        _
      $region32: #{dqn_forward.1} parent=11 // pred_fallthru
        _
      // Predicated region
      $region33: #{dqn_forward.1} parent=11 // pred_check
        %p375 = pneg %p172
      $region34: #{dqn_forward.1} parent=11 // pred_check_branch
        %377 = sbr.rel (%p375) target = $region36
      $region35: #{dqn_forward.1} parent=11 // pred_region
        _
      $region36: #{dqn_forward.1} parent=11 // pred_fallthru
        _
      // Predicated region
      $region37: #{dqn_forward.1} parent=11 // pred_check
        %p378 = pneg %p193
      $region38: #{dqn_forward.1} parent=11 // pred_check_branch
        %380 = sbr.rel (%p378) target = $region40
      $region39: #{dqn_forward.1} parent=11 // pred_region
        _
      $region40: #{dqn_forward.1} parent=11 // pred_fallthru
        _
      // Predicated region
      $region41: #{dqn_forward.1} parent=11 // pred_check
        %p381 = pneg %p214
      $region42: #{dqn_forward.1} parent=11 // pred_check_branch
        %383 = sbr.rel (%p381) target = $region44
      $region43: #{dqn_forward.1} parent=11 // pred_region
        _
      $region44: #{dqn_forward.1} parent=11 // pred_fallthru
        _
      // Predicated region
      $region45: #{dqn_forward.1} parent=11 // pred_check
        %p384 = pneg %p235
      $region46: #{dqn_forward.1} parent=11 // pred_check_branch
        %386 = sbr.rel (%p384) target = $region48
      $region47: #{dqn_forward.1} parent=11 // pred_region
        _
      $region48: #{dqn_forward.1} parent=11 // pred_fallthru
        _
      // Predicated region
      $region49: #{dqn_forward.1} parent=11 // pred_check
        %p387 = pneg %p256
      $region50: #{dqn_forward.1} parent=11 // pred_check_branch
        %389 = sbr.rel (%p387) target = $region52
      $region51: #{dqn_forward.1} parent=11 // pred_region
        _
      $region52: #{dqn_forward.1} parent=11 // pred_fallthru
        _
      // Predicated region
      $region53: #{dqn_forward.1} parent=11 // pred_check
        %p390 = pneg %p277
      $region54: #{dqn_forward.1} parent=11 // pred_check_branch
        %392 = sbr.rel (%p390) target = $region56
      $region55: #{dqn_forward.1} parent=11 // pred_region
        _
      $region56: #{dqn_forward.1} parent=11 // pred_fallthru
        _
      // Predicated region
      $region57: #{dqn_forward.1} parent=11 // pred_check
        %p393 = pneg %p298
      $region58: #{dqn_forward.1} parent=11 // pred_check_branch
        %395 = sbr.rel (%p393) target = $region60
      $region59: #{dqn_forward.1} parent=11 // pred_region
        _
      $region60: #{dqn_forward.1} parent=11 // pred_fallthru
        _
      // Predicated region
      $region61: #{dqn_forward.1} parent=11 // pred_check
        %p396 = pneg %p319
      $region62: #{dqn_forward.1} parent=11 // pred_check_branch
        %398 = sbr.rel (%p396) target = $region64
      $region63: #{dqn_forward.1} parent=11 // pred_region
        _
      $region64: #{dqn_forward.1} parent=11 // pred_fallthru
        _
    $region12: #{dqn_forward.1} parent=5 // pred_fallthru
      _
    %p399 = scmp.lt.s32.totalorder %s20, 2
    // Predicated region
    $region65: #{dqn_forward.1} parent=5 // pred_check
      %p400 = pneg %p399
    $region66: #{dqn_forward.1} parent=5 // pred_check_branch
      %402 = sbr.rel (%p400) target = $region68
    $region67: #{dqn_forward.1} parent=5 // pred_region
      // Predicated region
      $region69: #{dqn_forward.1} parent=67 // pred_check
        %p403 = pneg %p40
      $region70: #{dqn_forward.1} parent=67 // pred_check_branch
        %405 = sbr.rel (%p403) target = $region72
      $region71: #{dqn_forward.1} parent=67 // pred_region
        %s406 = smul.u32 4, %s20
        %p407 = scmp.lt.s32.totalorder %s406, 7
        %s408 = scalar_select %p407, %s406, 7
        %s409 = smul.addr %s408, 4
        %s410 = smul.addr %s409, 8
        %s411 = scalar_lea.vmem %s0, %s410
        %s412 = smul.u32 4, %s20
      $region72: #{dqn_forward.1} parent=67 // pred_fallthru
        _
    $region68: #{dqn_forward.1} parent=5 // pred_fallthru
      _
    %p413 = scmp.le.s32.totalorder 1, %s20
    %p414 = scmp.lt.s32.totalorder %s20, 3
    %p415 = pnand %p413, %p414
    %p416 = pneg %p415
    // Predicated region
    $region73: #{dqn_forward.1} parent=5 // pred_check
      _
    $region74: #{dqn_forward.1} parent=5 // pred_check_branch
      %418 = sbr.rel (%p415) target = $region76
    $region75: #{dqn_forward.1} parent=5 // pred_region
      %s419 = ssub.s32 %s20, 1
      %s420 = smul.u32 4, %s25
      %p421 = scmp.lt.s32.totalorder %s420, 7
      %s422 = scalar_select %p421, %s420, 7
      %s423 = smul.addr %s422, 4
      %s424 = smul.addr %s423, 8
      %s425 = scalar_lea.vmem %s0, %s424
      %p426 = pneg %p46
      %p427 = pneg %p43
      %p428 = pneg %p67
      %p429 = pneg %p64
      %p430 = pneg %p88
      %p431 = pneg %p85
      %p432 = pneg %p109
      %p433 = pneg %p106
      %p434 = pneg %p130
      %p435 = pneg %p127
      %p436 = pneg %p151
      %p437 = pneg %p148
      %p438 = pneg %p172
      %p439 = pneg %p169
      %p440 = pneg %p193
      %p441 = pneg %p190
      %p442 = pneg %p214
      %p443 = pneg %p211
      %p444 = pneg %p235
      %p445 = pneg %p232
      %p446 = pneg %p256
      %p447 = pneg %p253
      %p448 = pneg %p277
      %p449 = pneg %p274
      %p450 = pneg %p298
      %p451 = pneg %p295
      %p452 = pneg %p319
      %p453 = pneg %p316
      %p454 = pneg %p345
      %p455 = pneg %p342
      %p456 = scmp.lt.s32.totalorder %s25, 1
      %s457 = scalar_select %p456, %s25, 1
      %s458 = smul.addr %s457, 8
      %s459 = scalar_lea.vmem %s14, %s458
      %s460 = smul.u32 4, %s25
      %p461 = scmp.lt.s32.totalorder %s460, 7
      %s462 = scalar_select %p461, %s460, 7
      %s463 = smul.addr %s462, 4
      %s464 = smul.addr %s463, 8
      %s465 = scalar_lea.vmem %s0, %s464
      %s466 = smul.u32 4, %s25
      %p467 = scmp.lt.s32.totalorder %s25, 1
      %s468 = scalar_select %p467, %s25, 1
      %s469 = smul.addr %s468, 8
      %s470 = scalar_lea.vmem %s14, %s469
      %v472 = vld [vmem:[%s465] sm:$0xff]
      %v473 = vld [vmem:[%s465 + $0x8] sm:$0xff]
      %v474 = vld [vmem:[%s465 + $0x10] sm:$0xff]
      %v475 = vld [vmem:[%s465 + $0x18] sm:$0xff]
      %v476 = vld [vmem:[%s465 + $0x20] sm:$0xff]
      %v477 = vld [vmem:[%s465 + $0x28] sm:$0xff]
      %v478 = vld [vmem:[%s465 + $0x30] sm:$0xff]
      %v479 = vld [vmem:[%s465 + $0x38] sm:$0xff]
      %v480 = vld [vmem:[%s465 + $0x40] sm:$0xff]
      %v481 = vld [vmem:[%s465 + $0x48] sm:$0xff]
      %v482 = vld [vmem:[%s465 + $0x50] sm:$0xff]
      %v483 = vld [vmem:[%s465 + $0x58] sm:$0xff]
      %v484 = vld [vmem:[%s465 + $0x60] sm:$0xff]
      %v485 = vld [vmem:[%s465 + $0x68] sm:$0xff]
      %v486 = vld [vmem:[%s465 + $0x70] sm:$0xff]
      %v487 = vld [vmem:[%s465 + $0x78] sm:$0xff]
      %v488 = vunpack.c.0.s8 %v472
      %v489 = vunpack.c.0.s8 %v473
      %v490 = vunpack.c.1.s8 %v472
      %v491 = vunpack.c.1.s8 %v473
      %v492 = vunpack.c.2.s8 %v472
      %v493 = vunpack.c.2.s8 %v473
      %v494 = vunpack.c.3.s8 %v472
      %v495 = vunpack.c.3.s8 %v473
      %v496 = vunpack.c.0.s8 %v474
      %v497 = vunpack.c.0.s8 %v475
      %v498 = vunpack.c.1.s8 %v474
      %v499 = vunpack.c.1.s8 %v475
      %v500 = vunpack.c.2.s8 %v474
      %v501 = vunpack.c.2.s8 %v475
      %v502 = vunpack.c.3.s8 %v474
      %v503 = vunpack.c.3.s8 %v475
      %v504 = vunpack.c.0.s8 %v476
      %v505 = vunpack.c.0.s8 %v477
      %v506 = vunpack.c.1.s8 %v476
      %v507 = vunpack.c.1.s8 %v477
      %v508 = vunpack.c.2.s8 %v476
      %v509 = vunpack.c.2.s8 %v477
      %v510 = vunpack.c.3.s8 %v476
      %v511 = vunpack.c.3.s8 %v477
      %v512 = vunpack.c.0.s8 %v478
      %v513 = vunpack.c.0.s8 %v479
      %v514 = vunpack.c.1.s8 %v478
      %v515 = vunpack.c.1.s8 %v479
      %v516 = vunpack.c.2.s8 %v478
      %v517 = vunpack.c.2.s8 %v479
      %v518 = vunpack.c.3.s8 %v478
      %v519 = vunpack.c.3.s8 %v479
      %v520 = vunpack.c.0.s8 %v480
      %v521 = vunpack.c.0.s8 %v481
      %v522 = vunpack.c.1.s8 %v480
      %v523 = vunpack.c.1.s8 %v481
      %v524 = vunpack.c.2.s8 %v480
      %v525 = vunpack.c.2.s8 %v481
      %v526 = vunpack.c.3.s8 %v480
      %v527 = vunpack.c.3.s8 %v481
      %v528 = vunpack.c.0.s8 %v482
      %v529 = vunpack.c.0.s8 %v483
      %v530 = vunpack.c.1.s8 %v482
      %v531 = vunpack.c.1.s8 %v483
      %v532 = vunpack.c.2.s8 %v482
      %v533 = vunpack.c.2.s8 %v483
      %v534 = vunpack.c.3.s8 %v482
      %v535 = vunpack.c.3.s8 %v483
      %v536 = vunpack.c.0.s8 %v484
      %v537 = vunpack.c.0.s8 %v485
      %v538 = vunpack.c.1.s8 %v484
      %v539 = vunpack.c.1.s8 %v485
      %v540 = vunpack.c.2.s8 %v484
      %v541 = vunpack.c.2.s8 %v485
      %v542 = vunpack.c.3.s8 %v484
      %v543 = vunpack.c.3.s8 %v485
      %v544 = vunpack.c.0.s8 %v486
      %v545 = vunpack.c.0.s8 %v487
      %v546 = vunpack.c.1.s8 %v486
      %v547 = vunpack.c.1.s8 %v487
      %v548 = vunpack.c.2.s8 %v486
      %v549 = vunpack.c.2.s8 %v487
      %v550 = vunpack.c.3.s8 %v486
      %v551 = vunpack.c.3.s8 %v487
      %v552 = vcvt.s32.f32 %v488
      %v553 = vcvt.s32.f32 %v489
      %v554 = vcvt.s32.f32 %v490
      %v555 = vcvt.s32.f32 %v491
      %v556 = vcvt.s32.f32 %v492
      %v557 = vcvt.s32.f32 %v493
      %v558 = vcvt.s32.f32 %v494
      %v559 = vcvt.s32.f32 %v495
      %v560 = vcvt.s32.f32 %v496
      %v561 = vcvt.s32.f32 %v497
      %v562 = vcvt.s32.f32 %v498
      %v563 = vcvt.s32.f32 %v499
      %v564 = vcvt.s32.f32 %v500
      %v565 = vcvt.s32.f32 %v501
      %v566 = vcvt.s32.f32 %v502
      %v567 = vcvt.s32.f32 %v503
      %v568 = vcvt.s32.f32 %v504
      %v569 = vcvt.s32.f32 %v505
      %v570 = vcvt.s32.f32 %v506
      %v571 = vcvt.s32.f32 %v507
      %v572 = vcvt.s32.f32 %v508
      %v573 = vcvt.s32.f32 %v509
      %v574 = vcvt.s32.f32 %v510
      %v575 = vcvt.s32.f32 %v511
      %v576 = vcvt.s32.f32 %v512
      %v577 = vcvt.s32.f32 %v513
      %v578 = vcvt.s32.f32 %v514
      %v579 = vcvt.s32.f32 %v515
      %v580 = vcvt.s32.f32 %v516
      %v581 = vcvt.s32.f32 %v517
      %v582 = vcvt.s32.f32 %v518
      %v583 = vcvt.s32.f32 %v519
      %v584 = vcvt.s32.f32 %v520
      %v585 = vcvt.s32.f32 %v521
      %v586 = vcvt.s32.f32 %v522
      %v587 = vcvt.s32.f32 %v523
      %v588 = vcvt.s32.f32 %v524
      %v589 = vcvt.s32.f32 %v525
      %v590 = vcvt.s32.f32 %v526
      %v591 = vcvt.s32.f32 %v527
      %v592 = vcvt.s32.f32 %v528
      %v593 = vcvt.s32.f32 %v529
      %v594 = vcvt.s32.f32 %v530
      %v595 = vcvt.s32.f32 %v531
      %v596 = vcvt.s32.f32 %v532
      %v597 = vcvt.s32.f32 %v533
      %v598 = vcvt.s32.f32 %v534
      %v599 = vcvt.s32.f32 %v535
      %v600 = vcvt.s32.f32 %v536
      %v601 = vcvt.s32.f32 %v537
      %v602 = vcvt.s32.f32 %v538
      %v603 = vcvt.s32.f32 %v539
      %v604 = vcvt.s32.f32 %v540
      %v605 = vcvt.s32.f32 %v541
      %v606 = vcvt.s32.f32 %v542
      %v607 = vcvt.s32.f32 %v543
      %v608 = vcvt.s32.f32 %v544
      %v609 = vcvt.s32.f32 %v545
      %v610 = vcvt.s32.f32 %v546
      %v611 = vcvt.s32.f32 %v547
      %v612 = vcvt.s32.f32 %v548
      %v613 = vcvt.s32.f32 %v549
      %v614 = vcvt.s32.f32 %v550
      %v615 = vcvt.s32.f32 %v551
      %vm616 = vcmp.lt.f32.partialorder %v552, 0.0
      %vm617 = vcmp.lt.f32.partialorder %v553, 0.0
      %vm618 = vcmp.lt.f32.partialorder %v554, 0.0
      %vm619 = vcmp.lt.f32.partialorder %v555, 0.0
      %vm620 = vcmp.lt.f32.partialorder %v556, 0.0
      %vm621 = vcmp.lt.f32.partialorder %v557, 0.0
      %vm622 = vcmp.lt.f32.partialorder %v558, 0.0
      %vm623 = vcmp.lt.f32.partialorder %v559, 0.0
      %vm624 = vcmp.lt.f32.partialorder %v560, 0.0
      %vm625 = vcmp.lt.f32.partialorder %v561, 0.0
      %vm626 = vcmp.lt.f32.partialorder %v562, 0.0
      %vm627 = vcmp.lt.f32.partialorder %v563, 0.0
      %vm628 = vcmp.lt.f32.partialorder %v564, 0.0
      %vm629 = vcmp.lt.f32.partialorder %v565, 0.0
      %vm630 = vcmp.lt.f32.partialorder %v566, 0.0
      %vm631 = vcmp.lt.f32.partialorder %v567, 0.0
      %vm632 = vcmp.lt.f32.partialorder %v568, 0.0
      %vm633 = vcmp.lt.f32.partialorder %v569, 0.0
      %vm634 = vcmp.lt.f32.partialorder %v570, 0.0
      %vm635 = vcmp.lt.f32.partialorder %v571, 0.0
      %vm636 = vcmp.lt.f32.partialorder %v572, 0.0
      %vm637 = vcmp.lt.f32.partialorder %v573, 0.0
      %vm638 = vcmp.lt.f32.partialorder %v574, 0.0
      %vm639 = vcmp.lt.f32.partialorder %v575, 0.0
      %vm640 = vcmp.lt.f32.partialorder %v576, 0.0
      %vm641 = vcmp.lt.f32.partialorder %v577, 0.0
      %vm642 = vcmp.lt.f32.partialorder %v578, 0.0
      %vm643 = vcmp.lt.f32.partialorder %v579, 0.0
      %vm644 = vcmp.lt.f32.partialorder %v580, 0.0
      %vm645 = vcmp.lt.f32.partialorder %v581, 0.0
      %vm646 = vcmp.lt.f32.partialorder %v582, 0.0
      %vm647 = vcmp.lt.f32.partialorder %v583, 0.0
      %vm648 = vcmp.lt.f32.partialorder %v584, 0.0
      %vm649 = vcmp.lt.f32.partialorder %v585, 0.0
      %vm650 = vcmp.lt.f32.partialorder %v586, 0.0
      %vm651 = vcmp.lt.f32.partialorder %v587, 0.0
      %vm652 = vcmp.lt.f32.partialorder %v588, 0.0
      %vm653 = vcmp.lt.f32.partialorder %v589, 0.0
      %vm654 = vcmp.lt.f32.partialorder %v590, 0.0
      %vm655 = vcmp.lt.f32.partialorder %v591, 0.0
      %vm656 = vcmp.lt.f32.partialorder %v592, 0.0
      %vm657 = vcmp.lt.f32.partialorder %v593, 0.0
      %vm658 = vcmp.lt.f32.partialorder %v594, 0.0
      %vm659 = vcmp.lt.f32.partialorder %v595, 0.0
      %vm660 = vcmp.lt.f32.partialorder %v596, 0.0
      %vm661 = vcmp.lt.f32.partialorder %v597, 0.0
      %vm662 = vcmp.lt.f32.partialorder %v598, 0.0
      %vm663 = vcmp.lt.f32.partialorder %v599, 0.0
      %vm664 = vcmp.lt.f32.partialorder %v600, 0.0
      %vm665 = vcmp.lt.f32.partialorder %v601, 0.0
      %vm666 = vcmp.lt.f32.partialorder %v602, 0.0
      %vm667 = vcmp.lt.f32.partialorder %v603, 0.0
      %vm668 = vcmp.lt.f32.partialorder %v604, 0.0
      %vm669 = vcmp.lt.f32.partialorder %v605, 0.0
      %vm670 = vcmp.lt.f32.partialorder %v606, 0.0
      %vm671 = vcmp.lt.f32.partialorder %v607, 0.0
      %vm672 = vcmp.lt.f32.partialorder %v608, 0.0
      %vm673 = vcmp.lt.f32.partialorder %v609, 0.0
      %vm674 = vcmp.lt.f32.partialorder %v610, 0.0
      %vm675 = vcmp.lt.f32.partialorder %v611, 0.0
      %vm676 = vcmp.lt.f32.partialorder %v612, 0.0
      %vm677 = vcmp.lt.f32.partialorder %v613, 0.0
      %vm678 = vcmp.lt.f32.partialorder %v614, 0.0
      %vm679 = vcmp.lt.f32.partialorder %v615, 0.0
      %v680 = vsel %vm616, 256.0, 0.0
      %v681 = vsel %vm617, 256.0, 0.0
      %v682 = vsel %vm618, 256.0, 0.0
      %v683 = vsel %vm619, 256.0, 0.0
      %v684 = vsel %vm620, 256.0, 0.0
      %v685 = vsel %vm621, 256.0, 0.0
      %v686 = vsel %vm622, 256.0, 0.0
      %v687 = vsel %vm623, 256.0, 0.0
      %v688 = vsel %vm624, 256.0, 0.0
      %v689 = vsel %vm625, 256.0, 0.0
      %v690 = vsel %vm626, 256.0, 0.0
      %v691 = vsel %vm627, 256.0, 0.0
      %v692 = vsel %vm628, 256.0, 0.0
      %v693 = vsel %vm629, 256.0, 0.0
      %v694 = vsel %vm630, 256.0, 0.0
      %v695 = vsel %vm631, 256.0, 0.0
      %v696 = vsel %vm632, 256.0, 0.0
      %v697 = vsel %vm633, 256.0, 0.0
      %v698 = vsel %vm634, 256.0, 0.0
      %v699 = vsel %vm635, 256.0, 0.0
      %v700 = vsel %vm636, 256.0, 0.0
      %v701 = vsel %vm637, 256.0, 0.0
      %v702 = vsel %vm638, 256.0, 0.0
      %v703 = vsel %vm639, 256.0, 0.0
      %v704 = vsel %vm640, 256.0, 0.0
      %v705 = vsel %vm641, 256.0, 0.0
      %v706 = vsel %vm642, 256.0, 0.0
      %v707 = vsel %vm643, 256.0, 0.0
      %v708 = vsel %vm644, 256.0, 0.0
      %v709 = vsel %vm645, 256.0, 0.0
      %v710 = vsel %vm646, 256.0, 0.0
      %v711 = vsel %vm647, 256.0, 0.0
      %v712 = vsel %vm648, 256.0, 0.0
      %v713 = vsel %vm649, 256.0, 0.0
      %v714 = vsel %vm650, 256.0, 0.0
      %v715 = vsel %vm651, 256.0, 0.0
      %v716 = vsel %vm652, 256.0, 0.0
      %v717 = vsel %vm653, 256.0, 0.0
      %v718 = vsel %vm654, 256.0, 0.0
      %v719 = vsel %vm655, 256.0, 0.0
      %v720 = vsel %vm656, 256.0, 0.0
      %v721 = vsel %vm657, 256.0, 0.0
      %v722 = vsel %vm658, 256.0, 0.0
      %v723 = vsel %vm659, 256.0, 0.0
      %v724 = vsel %vm660, 256.0, 0.0
      %v725 = vsel %vm661, 256.0, 0.0
      %v726 = vsel %vm662, 256.0, 0.0
      %v727 = vsel %vm663, 256.0, 0.0
      %v728 = vsel %vm664, 256.0, 0.0
      %v729 = vsel %vm665, 256.0, 0.0
      %v730 = vsel %vm666, 256.0, 0.0
      %v731 = vsel %vm667, 256.0, 0.0
      %v732 = vsel %vm668, 256.0, 0.0
      %v733 = vsel %vm669, 256.0, 0.0
      %v734 = vsel %vm670, 256.0, 0.0
      %v735 = vsel %vm671, 256.0, 0.0
      %v736 = vsel %vm672, 256.0, 0.0
      %v737 = vsel %vm673, 256.0, 0.0
      %v738 = vsel %vm674, 256.0, 0.0
      %v739 = vsel %vm675, 256.0, 0.0
      %v740 = vsel %vm676, 256.0, 0.0
      %v741 = vsel %vm677, 256.0, 0.0
      %v742 = vsel %vm678, 256.0, 0.0
      %v743 = vsel %vm679, 256.0, 0.0
      %v744 = vadd.f32 %v552, %v680
      %v745 = vadd.f32 %v553, %v681
      %v746 = vadd.f32 %v554, %v682
      %v747 = vadd.f32 %v555, %v683
      %v748 = vadd.f32 %v556, %v684
      %v749 = vadd.f32 %v557, %v685
      %v750 = vadd.f32 %v558, %v686
      %v751 = vadd.f32 %v559, %v687
      %v752 = vadd.f32 %v560, %v688
      %v753 = vadd.f32 %v561, %v689
      %v754 = vadd.f32 %v562, %v690
      %v755 = vadd.f32 %v563, %v691
      %v756 = vadd.f32 %v564, %v692
      %v757 = vadd.f32 %v565, %v693
      %v758 = vadd.f32 %v566, %v694
      %v759 = vadd.f32 %v567, %v695
      %v760 = vadd.f32 %v568, %v696
      %v761 = vadd.f32 %v569, %v697
      %v762 = vadd.f32 %v570, %v698
      %v763 = vadd.f32 %v571, %v699
      %v764 = vadd.f32 %v572, %v700
      %v765 = vadd.f32 %v573, %v701
      %v766 = vadd.f32 %v574, %v702
      %v767 = vadd.f32 %v575, %v703
      %v768 = vadd.f32 %v576, %v704
      %v769 = vadd.f32 %v577, %v705
      %v770 = vadd.f32 %v578, %v706
      %v771 = vadd.f32 %v579, %v707
      %v772 = vadd.f32 %v580, %v708
      %v773 = vadd.f32 %v581, %v709
      %v774 = vadd.f32 %v582, %v710
      %v775 = vadd.f32 %v583, %v711
      %v776 = vadd.f32 %v584, %v712
      %v777 = vadd.f32 %v585, %v713
      %v778 = vadd.f32 %v586, %v714
      %v779 = vadd.f32 %v587, %v715
      %v780 = vadd.f32 %v588, %v716
      %v781 = vadd.f32 %v589, %v717
      %v782 = vadd.f32 %v590, %v718
      %v783 = vadd.f32 %v591, %v719
      %v784 = vadd.f32 %v592, %v720
      %v785 = vadd.f32 %v593, %v721
      %v786 = vadd.f32 %v594, %v722
      %v787 = vadd.f32 %v595, %v723
      %v788 = vadd.f32 %v596, %v724
      %v789 = vadd.f32 %v597, %v725
      %v790 = vadd.f32 %v598, %v726
      %v791 = vadd.f32 %v599, %v727
      %v792 = vadd.f32 %v600, %v728
      %v793 = vadd.f32 %v601, %v729
      %v794 = vadd.f32 %v602, %v730
      %v795 = vadd.f32 %v603, %v731
      %v796 = vadd.f32 %v604, %v732
      %v797 = vadd.f32 %v605, %v733
      %v798 = vadd.f32 %v606, %v734
      %v799 = vadd.f32 %v607, %v735
      %v800 = vadd.f32 %v608, %v736
      %v801 = vadd.f32 %v609, %v737
      %v802 = vadd.f32 %v610, %v738
      %v803 = vadd.f32 %v611, %v739
      %v804 = vadd.f32 %v612, %v740
      %v805 = vadd.f32 %v613, %v741
      %v806 = vadd.f32 %v614, %v742
      %v807 = vadd.f32 %v615, %v743
      %v808 = vpack.c.bf16 %v746, %v744
      %v809 = vpack.c.bf16 %v747, %v745
      %v810 = vpack.c.bf16 %v750, %v748
      %v811 = vpack.c.bf16 %v751, %v749
      %v812 = vpack.c.bf16 %v754, %v752
      %v813 = vpack.c.bf16 %v755, %v753
      %v814 = vpack.c.bf16 %v758, %v756
      %v815 = vpack.c.bf16 %v759, %v757
      %v816 = vpack.c.bf16 %v762, %v760
      %v817 = vpack.c.bf16 %v763, %v761
      %v818 = vpack.c.bf16 %v766, %v764
      %v819 = vpack.c.bf16 %v767, %v765
      %v820 = vpack.c.bf16 %v770, %v768
      %v821 = vpack.c.bf16 %v771, %v769
      %v822 = vpack.c.bf16 %v774, %v772
      %v823 = vpack.c.bf16 %v775, %v773
      %v824 = vpack.c.bf16 %v778, %v776
      %v825 = vpack.c.bf16 %v779, %v777
      %v826 = vpack.c.bf16 %v782, %v780
      %v827 = vpack.c.bf16 %v783, %v781
      %v828 = vpack.c.bf16 %v786, %v784
      %v829 = vpack.c.bf16 %v787, %v785
      %v830 = vpack.c.bf16 %v790, %v788
      %v831 = vpack.c.bf16 %v791, %v789
      %v832 = vpack.c.bf16 %v794, %v792
      %v833 = vpack.c.bf16 %v795, %v793
      %v834 = vpack.c.bf16 %v798, %v796
      %v835 = vpack.c.bf16 %v799, %v797
      %v836 = vpack.c.bf16 %v802, %v800
      %v837 = vpack.c.bf16 %v803, %v801
      %v838 = vpack.c.bf16 %v806, %v804
      %v839 = vpack.c.bf16 %v807, %v805
      %v840 = vld [vmem:[%s1] sm:$0xf]
      %v841 = vld [vmem:[%s1 + $0x4] sm:$0xf]
      %v842 = vld [vmem:[%s1 + $0x8] sm:$0xf]
      %v843 = vld [vmem:[%s1 + $0xc] sm:$0xf]
      %v844 = vld [vmem:[%s1 + $0x10] sm:$0xf]
      %v845 = vld [vmem:[%s1 + $0x14] sm:$0xf]
      %v846 = vld [vmem:[%s1 + $0x18] sm:$0xf]
      %v847 = vld [vmem:[%s1 + $0x1c] sm:$0xf]
      %v848 = vld [vmem:[%s1 + $0x20] sm:$0xf]
      %v849 = vld [vmem:[%s1 + $0x24] sm:$0xf]
      %v850 = vld [vmem:[%s1 + $0x28] sm:$0xf]
      %v851 = vld [vmem:[%s1 + $0x2c] sm:$0xf]
      %v852 = vld [vmem:[%s1 + $0x30] sm:$0xf]
      %v853 = vld [vmem:[%s1 + $0x34] sm:$0xf]
      %v854 = vld [vmem:[%s1 + $0x38] sm:$0xf]
      %v855 = vld [vmem:[%s1 + $0x3c] sm:$0xf]
      %v856 = vld [vmem:[%s1 + $0x40] sm:$0xf]
      %v857 = vld [vmem:[%s1 + $0x44] sm:$0xf]
      %v858 = vld [vmem:[%s1 + $0x48] sm:$0xf]
      %v859 = vld [vmem:[%s1 + $0x4c] sm:$0xf]
      %v860 = vld [vmem:[%s1 + $0x50] sm:$0xf]
      %v861 = vld [vmem:[%s1 + $0x54] sm:$0xf]
      %v862 = vld [vmem:[%s1 + $0x58] sm:$0xf]
      %v863 = vld [vmem:[%s1 + $0x5c] sm:$0xf]
      %v864 = vld [vmem:[%s1 + $0x60] sm:$0xf]
      %v865 = vld [vmem:[%s1 + $0x64] sm:$0xf]
      %v866 = vld [vmem:[%s1 + $0x68] sm:$0xf]
      %v867 = vld [vmem:[%s1 + $0x6c] sm:$0xf]
      %v868 = vld [vmem:[%s1 + $0x70] sm:$0xf]
      %v869 = vld [vmem:[%s1 + $0x74] sm:$0xf]
      %v870 = vld [vmem:[%s1 + $0x78] sm:$0xf]
      %v871 = vld [vmem:[%s1 + $0x7c] sm:$0xf]
      %v872 = vld [vmem:[%s2] sm:$0x1]
      %v874 = vperm.slane %v872, 0
      %v908 = vunpack.c.l.b16 %v840
      %v909 = vunpack.c.l.b16 %v841
      %v910 = vunpack.c.l.b16 %v842
      %v911 = vunpack.c.l.b16 %v843
      %v912 = vunpack.c.l.b16 %v844
      %v913 = vunpack.c.l.b16 %v845
      %v914 = vunpack.c.l.b16 %v846
      %v915 = vunpack.c.l.b16 %v847
      %v916 = vunpack.c.l.b16 %v848
      %v917 = vunpack.c.l.b16 %v849
      %v918 = vunpack.c.l.b16 %v850
      %v919 = vunpack.c.l.b16 %v851
      %v920 = vunpack.c.l.b16 %v852
      %v921 = vunpack.c.l.b16 %v853
      %v922 = vunpack.c.l.b16 %v854
      %v923 = vunpack.c.l.b16 %v855
      %v924 = vunpack.c.l.b16 %v856
      %v925 = vunpack.c.l.b16 %v857
      %v926 = vunpack.c.l.b16 %v858
      %v927 = vunpack.c.l.b16 %v859
      %v928 = vunpack.c.l.b16 %v860
      %v929 = vunpack.c.l.b16 %v861
      %v930 = vunpack.c.l.b16 %v862
      %v931 = vunpack.c.l.b16 %v863
      %v932 = vunpack.c.l.b16 %v864
      %v933 = vunpack.c.l.b16 %v865
      %v934 = vunpack.c.l.b16 %v866
      %v935 = vunpack.c.l.b16 %v867
      %v936 = vunpack.c.l.b16 %v868
      %v937 = vunpack.c.l.b16 %v869
      %v938 = vunpack.c.l.b16 %v870
      %v939 = vunpack.c.l.b16 %v871
      %v940 = vpack.c.b16 %v909, %v908
      %v941 = vpack.c.b16 %v911, %v910
      %v942 = vpack.c.b16 %v913, %v912
      %v943 = vpack.c.b16 %v915, %v914
      %v944 = vpack.c.b16 %v917, %v916
      %v945 = vpack.c.b16 %v919, %v918
      %v946 = vpack.c.b16 %v921, %v920
      %v947 = vpack.c.b16 %v923, %v922
      %v948 = vpack.c.b16 %v925, %v924
      %v949 = vpack.c.b16 %v927, %v926
      %v950 = vpack.c.b16 %v929, %v928
      %v951 = vpack.c.b16 %v931, %v930
      %v952 = vpack.c.b16 %v933, %v932
      %v953 = vpack.c.b16 %v935, %v934
      %v954 = vpack.c.b16 %v937, %v936
      %v955 = vpack.c.b16 %v939, %v938
      %972 = vmatpush.bf16.msra.mxu0 %v947
      %973 = vmatpush.bf16.msra.mxu0 %v946
      %974 = vmatpush.bf16.msra.mxu0 %v945
      %975 = vmatpush.bf16.msra.mxu0 %v944
      %976 = vmatpush.bf16.msra.mxu0 %v943
      %977 = vmatpush.bf16.msra.mxu0 %v942
      %978 = vmatpush.bf16.msra.mxu0 %v941
      %979 = vmatpush.bf16.msra.mxu0 %v940
      %980 = vmatmul.bf16.gmra.mxu0 %v808
      %v981 = vpop.f32.mrf.mxu0
      %v982 = vadd.f32 %v874, %v981
      %v983 = vpop.f32.mrf.mxu0
      %v984 = vadd.f32 %v874, %v983
      %985 = vmatmul.bf16.gmra.mxu0 %v810
      %v986 = vpop.f32.mrf.mxu0
      %v987 = vadd.f32 %v874, %v986
      %v988 = vpop.f32.mrf.mxu0
      %v989 = vadd.f32 %v874, %v988
      %990 = vmatmul.bf16.gmra.mxu0 %v812
      %v991 = vpop.f32.mrf.mxu0
      %v992 = vadd.f32 %v874, %v991
      %v993 = vpop.f32.mrf.mxu0
      %v994 = vadd.f32 %v874, %v993
      %995 = vmatmul.bf16.gmra.mxu0 %v814
      %v996 = vpop.f32.mrf.mxu0
      %v997 = vadd.f32 %v874, %v996
      %v998 = vpop.f32.mrf.mxu0
      %v999 = vadd.f32 %v874, %v998
      %1000 = vmatmul.bf16.gmra.mxu0 %v816
      %v1001 = vpop.f32.mrf.mxu0
      %v1002 = vadd.f32 %v874, %v1001
      %v1003 = vpop.f32.mrf.mxu0
      %v1004 = vadd.f32 %v874, %v1003
      %1005 = vmatmul.bf16.gmra.mxu0 %v818
      %v1006 = vpop.f32.mrf.mxu0
      %v1007 = vadd.f32 %v874, %v1006
      %v1008 = vpop.f32.mrf.mxu0
      %v1009 = vadd.f32 %v874, %v1008
      %1010 = vmatmul.bf16.gmra.mxu0 %v820
      %v1011 = vpop.f32.mrf.mxu0
      %v1012 = vadd.f32 %v874, %v1011
      %v1013 = vpop.f32.mrf.mxu0
      %v1014 = vadd.f32 %v874, %v1013
      %1015 = vmatmul.bf16.gmra.mxu0 %v822
      %v1016 = vpop.f32.mrf.mxu0
      %v1017 = vadd.f32 %v874, %v1016
      %v1018 = vpop.f32.mrf.mxu0
      %v1019 = vadd.f32 %v874, %v1018
      %1020 = vmatmul.bf16.gmra.mxu0 %v824
      %v1021 = vpop.f32.mrf.mxu0
      %v1022 = vadd.f32 %v874, %v1021
      %v1023 = vpop.f32.mrf.mxu0
      %v1024 = vadd.f32 %v874, %v1023
      %1025 = vmatmul.bf16.gmra.mxu0 %v826
      %v1026 = vpop.f32.mrf.mxu0
      %v1027 = vadd.f32 %v874, %v1026
      %v1028 = vpop.f32.mrf.mxu0
      %v1029 = vadd.f32 %v874, %v1028
      %1030 = vmatmul.bf16.gmra.mxu0 %v828
      %v1031 = vpop.f32.mrf.mxu0
      %v1032 = vadd.f32 %v874, %v1031
      %v1033 = vpop.f32.mrf.mxu0
      %v1034 = vadd.f32 %v874, %v1033
      %1035 = vmatmul.bf16.gmra.mxu0 %v830
      %v1036 = vpop.f32.mrf.mxu0
      %v1037 = vadd.f32 %v874, %v1036
      %v1038 = vpop.f32.mrf.mxu0
      %v1039 = vadd.f32 %v874, %v1038
      %1040 = vmatmul.bf16.gmra.mxu0 %v832
      %v1041 = vpop.f32.mrf.mxu0
      %v1042 = vadd.f32 %v874, %v1041
      %v1043 = vpop.f32.mrf.mxu0
      %v1044 = vadd.f32 %v874, %v1043
      %1045 = vmatmul.bf16.gmra.mxu0 %v834
      %v1046 = vpop.f32.mrf.mxu0
      %v1047 = vadd.f32 %v874, %v1046
      %v1048 = vpop.f32.mrf.mxu0
      %v1049 = vadd.f32 %v874, %v1048
      %1050 = vmatmul.bf16.gmra.mxu0 %v836
      %v1051 = vpop.f32.mrf.mxu0
      %v1052 = vadd.f32 %v874, %v1051
      %v1053 = vpop.f32.mrf.mxu0
      %v1054 = vadd.f32 %v874, %v1053
      %1055 = vmatmul.bf16.gmra.mxu0 %v838
      %v1056 = vpop.f32.mrf.mxu0
      %v1057 = vadd.f32 %v874, %v1056
      %v1058 = vpop.f32.mrf.mxu0
      %v1059 = vadd.f32 %v874, %v1058
      %1060 = vdwg.mxu0
      %1061 = vmatpush.bf16.msra.mxu0 %v955
      %1062 = vmatpush.bf16.msra.mxu0 %v954
      %1063 = vmatpush.bf16.msra.mxu0 %v953
      %1064 = vmatpush.bf16.msra.mxu0 %v952
      %1065 = vmatpush.bf16.msra.mxu0 %v951
      %1066 = vmatpush.bf16.msra.mxu0 %v950
      %1067 = vmatpush.bf16.msra.mxu0 %v949
      %1068 = vmatpush.bf16.msra.mxu0 %v948
      %1069 = vmatmul.bf16.gmra.mxu0 %v809
      %v1070 = vpop.f32.mrf.mxu0
      %v1071 = vadd.f32 %v982, %v1070
      %v1072 = vpop.f32.mrf.mxu0
      %v1073 = vadd.f32 %v984, %v1072
      %1074 = vmatmul.bf16.gmra.mxu0 %v811
      %v1075 = vpop.f32.mrf.mxu0
      %v1076 = vadd.f32 %v987, %v1075
      %v1077 = vpop.f32.mrf.mxu0
      %v1078 = vadd.f32 %v989, %v1077
      %1079 = vmatmul.bf16.gmra.mxu0 %v813
      %v1080 = vpop.f32.mrf.mxu0
      %v1081 = vadd.f32 %v992, %v1080
      %v1082 = vpop.f32.mrf.mxu0
      %v1083 = vadd.f32 %v994, %v1082
      %1084 = vmatmul.bf16.gmra.mxu0 %v815
      %v1085 = vpop.f32.mrf.mxu0
      %v1086 = vadd.f32 %v997, %v1085
      %v1087 = vpop.f32.mrf.mxu0
      %v1088 = vadd.f32 %v999, %v1087
      %1089 = vmatmul.bf16.gmra.mxu0 %v817
      %v1090 = vpop.f32.mrf.mxu0
      %v1091 = vadd.f32 %v1002, %v1090
      %v1092 = vpop.f32.mrf.mxu0
      %v1093 = vadd.f32 %v1004, %v1092
      %1094 = vmatmul.bf16.gmra.mxu0 %v819
      %v1095 = vpop.f32.mrf.mxu0
      %v1096 = vadd.f32 %v1007, %v1095
      %v1097 = vpop.f32.mrf.mxu0
      %v1098 = vadd.f32 %v1009, %v1097
      %1099 = vmatmul.bf16.gmra.mxu0 %v821
      %v1100 = vpop.f32.mrf.mxu0
      %v1101 = vadd.f32 %v1012, %v1100
      %v1102 = vpop.f32.mrf.mxu0
      %v1103 = vadd.f32 %v1014, %v1102
      %1104 = vmatmul.bf16.gmra.mxu0 %v823
      %v1105 = vpop.f32.mrf.mxu0
      %v1106 = vadd.f32 %v1017, %v1105
      %v1107 = vpop.f32.mrf.mxu0
      %v1108 = vadd.f32 %v1019, %v1107
      %1109 = vmatmul.bf16.gmra.mxu0 %v825
      %v1110 = vpop.f32.mrf.mxu0
      %v1111 = vadd.f32 %v1022, %v1110
      %v1112 = vpop.f32.mrf.mxu0
      %v1113 = vadd.f32 %v1024, %v1112
      %1114 = vmatmul.bf16.gmra.mxu0 %v827
      %v1115 = vpop.f32.mrf.mxu0
      %v1116 = vadd.f32 %v1027, %v1115
      %v1117 = vpop.f32.mrf.mxu0
      %v1118 = vadd.f32 %v1029, %v1117
      %1119 = vmatmul.bf16.gmra.mxu0 %v829
      %v1120 = vpop.f32.mrf.mxu0
      %v1121 = vadd.f32 %v1032, %v1120
      %v1122 = vpop.f32.mrf.mxu0
      %v1123 = vadd.f32 %v1034, %v1122
      %1124 = vmatmul.bf16.gmra.mxu0 %v831
      %v1125 = vpop.f32.mrf.mxu0
      %v1126 = vadd.f32 %v1037, %v1125
      %v1127 = vpop.f32.mrf.mxu0
      %v1128 = vadd.f32 %v1039, %v1127
      %1129 = vmatmul.bf16.gmra.mxu0 %v833
      %v1130 = vpop.f32.mrf.mxu0
      %v1131 = vadd.f32 %v1042, %v1130
      %v1132 = vpop.f32.mrf.mxu0
      %v1133 = vadd.f32 %v1044, %v1132
      %1134 = vmatmul.bf16.gmra.mxu0 %v835
      %v1135 = vpop.f32.mrf.mxu0
      %v1136 = vadd.f32 %v1047, %v1135
      %v1137 = vpop.f32.mrf.mxu0
      %v1138 = vadd.f32 %v1049, %v1137
      %1139 = vmatmul.bf16.gmra.mxu0 %v837
      %v1140 = vpop.f32.mrf.mxu0
      %v1141 = vadd.f32 %v1052, %v1140
      %v1142 = vpop.f32.mrf.mxu0
      %v1143 = vadd.f32 %v1054, %v1142
      %1144 = vmatmul.bf16.gmra.mxu0 %v839
      %v1145 = vpop.f32.mrf.mxu0
      %v1146 = vadd.f32 %v1057, %v1145
      %v1147 = vpop.f32.mrf.mxu0
      %v1148 = vadd.f32 %v1059, %v1147
      %1149 = vdwg.mxu0
      %v1150 = vmax.f32 %v1071, 0.0
      %v1151 = vmax.f32 %v1073, 0.0
      %v1152 = vmax.f32 %v1076, 0.0
      %v1153 = vmax.f32 %v1078, 0.0
      %v1154 = vmax.f32 %v1081, 0.0
      %v1155 = vmax.f32 %v1083, 0.0
      %v1156 = vmax.f32 %v1086, 0.0
      %v1157 = vmax.f32 %v1088, 0.0
      %v1158 = vmax.f32 %v1091, 0.0
      %v1159 = vmax.f32 %v1093, 0.0
      %v1160 = vmax.f32 %v1096, 0.0
      %v1161 = vmax.f32 %v1098, 0.0
      %v1162 = vmax.f32 %v1101, 0.0
      %v1163 = vmax.f32 %v1103, 0.0
      %v1164 = vmax.f32 %v1106, 0.0
      %v1165 = vmax.f32 %v1108, 0.0
      %v1166 = vmax.f32 %v1111, 0.0
      %v1167 = vmax.f32 %v1113, 0.0
      %v1168 = vmax.f32 %v1116, 0.0
      %v1169 = vmax.f32 %v1118, 0.0
      %v1170 = vmax.f32 %v1121, 0.0
      %v1171 = vmax.f32 %v1123, 0.0
      %v1172 = vmax.f32 %v1126, 0.0
      %v1173 = vmax.f32 %v1128, 0.0
      %v1174 = vmax.f32 %v1131, 0.0
      %v1175 = vmax.f32 %v1133, 0.0
      %v1176 = vmax.f32 %v1136, 0.0
      %v1177 = vmax.f32 %v1138, 0.0
      %v1178 = vmax.f32 %v1141, 0.0
      %v1179 = vmax.f32 %v1143, 0.0
      %v1180 = vmax.f32 %v1146, 0.0
      %v1181 = vmax.f32 %v1148, 0.0
      %v1182 = vpack.c.bf16 %v1151, %v1150
      %v1183 = vpack.c.bf16 %v1153, %v1152
      %v1184 = vpack.c.bf16 %v1155, %v1154
      %v1185 = vpack.c.bf16 %v1157, %v1156
      %v1186 = vpack.c.bf16 %v1159, %v1158
      %v1187 = vpack.c.bf16 %v1161, %v1160
      %v1188 = vpack.c.bf16 %v1163, %v1162
      %v1189 = vpack.c.bf16 %v1165, %v1164
      %v1190 = vpack.c.bf16 %v1167, %v1166
      %v1191 = vpack.c.bf16 %v1169, %v1168
      %v1192 = vpack.c.bf16 %v1171, %v1170
      %v1193 = vpack.c.bf16 %v1173, %v1172
      %v1194 = vpack.c.bf16 %v1175, %v1174
      %v1195 = vpack.c.bf16 %v1177, %v1176
      %v1196 = vpack.c.bf16 %v1179, %v1178
      %v1197 = vpack.c.bf16 %v1181, %v1180
      %v1198 = vld [vmem:[%s3] sm:$0xff]
      %v1199 = vld [vmem:[%s3 + $0x8] sm:$0xff]
      %v1200 = vld [vmem:[%s3 + $0x10] sm:$0xff]
      %v1201 = vld [vmem:[%s3 + $0x18] sm:$0xff]
      %v1202 = vld [vmem:[%s3 + $0x20] sm:$0xff]
      %v1203 = vld [vmem:[%s3 + $0x28] sm:$0xff]
      %v1204 = vld [vmem:[%s3 + $0x30] sm:$0xff]
      %v1205 = vld [vmem:[%s3 + $0x38] sm:$0xff]
      %v1206 = vld [vmem:[%s3 + $0x40] sm:$0xff]
      %v1207 = vld [vmem:[%s3 + $0x48] sm:$0xff]
      %v1208 = vld [vmem:[%s3 + $0x50] sm:$0xff]
      %v1209 = vld [vmem:[%s3 + $0x58] sm:$0xff]
      %v1210 = vld [vmem:[%s3 + $0x60] sm:$0xff]
      %v1211 = vld [vmem:[%s3 + $0x68] sm:$0xff]
      %v1212 = vld [vmem:[%s3 + $0x70] sm:$0xff]
      %v1213 = vld [vmem:[%s3 + $0x78] sm:$0xff]
      %v1214 = vld [vmem:[%s3 + $0x80] sm:$0xff]
      %v1215 = vld [vmem:[%s3 + $0x88] sm:$0xff]
      %v1216 = vld [vmem:[%s3 + $0x90] sm:$0xff]
      %v1217 = vld [vmem:[%s3 + $0x98] sm:$0xff]
      %v1218 = vld [vmem:[%s3 + $0xa0] sm:$0xff]
      %v1219 = vld [vmem:[%s3 + $0xa8] sm:$0xff]
      %v1220 = vld [vmem:[%s3 + $0xb0] sm:$0xff]
      %v1221 = vld [vmem:[%s3 + $0xb8] sm:$0xff]
      %v1222 = vld [vmem:[%s3 + $0xc0] sm:$0xff]
      %v1223 = vld [vmem:[%s3 + $0xc8] sm:$0xff]
      %v1224 = vld [vmem:[%s3 + $0xd0] sm:$0xff]
      %v1225 = vld [vmem:[%s3 + $0xd8] sm:$0xff]
      %v1226 = vld [vmem:[%s3 + $0xe0] sm:$0xff]
      %v1227 = vld [vmem:[%s3 + $0xe8] sm:$0xff]
      %v1228 = vld [vmem:[%s3 + $0xf0] sm:$0xff]
      %v1229 = vld [vmem:[%s3 + $0xf8] sm:$0xff]
      %v1230 = vld [vmem:[%s3 + $0x100] sm:$0xff]
      %v1231 = vld [vmem:[%s3 + $0x108] sm:$0xff]
      %v1232 = vld [vmem:[%s3 + $0x110] sm:$0xff]
      %v1233 = vld [vmem:[%s3 + $0x118] sm:$0xff]
      %v1234 = vld [vmem:[%s3 + $0x120] sm:$0xff]
      %v1235 = vld [vmem:[%s3 + $0x128] sm:$0xff]
      %v1236 = vld [vmem:[%s3 + $0x130] sm:$0xff]
      %v1237 = vld [vmem:[%s3 + $0x138] sm:$0xff]
      %v1238 = vld [vmem:[%s3 + $0x140] sm:$0xff]
      %v1239 = vld [vmem:[%s3 + $0x148] sm:$0xff]
      %v1240 = vld [vmem:[%s3 + $0x150] sm:$0xff]
      %v1241 = vld [vmem:[%s3 + $0x158] sm:$0xff]
      %v1242 = vld [vmem:[%s3 + $0x160] sm:$0xff]
      %v1243 = vld [vmem:[%s3 + $0x168] sm:$0xff]
      %v1244 = vld [vmem:[%s3 + $0x170] sm:$0xff]
      %v1245 = vld [vmem:[%s3 + $0x178] sm:$0xff]
      %v1246 = vld [vmem:[%s3 + $0x180] sm:$0xff]
      %v1247 = vld [vmem:[%s3 + $0x188] sm:$0xff]
      %v1248 = vld [vmem:[%s3 + $0x190] sm:$0xff]
      %v1249 = vld [vmem:[%s3 + $0x198] sm:$0xff]
      %v1250 = vld [vmem:[%s3 + $0x1a0] sm:$0xff]
      %v1251 = vld [vmem:[%s3 + $0x1a8] sm:$0xff]
      %v1252 = vld [vmem:[%s3 + $0x1b0] sm:$0xff]
      %v1253 = vld [vmem:[%s3 + $0x1b8] sm:$0xff]
      %v1254 = vld [vmem:[%s3 + $0x1c0] sm:$0xff]
      %v1255 = vld [vmem:[%s3 + $0x1c8] sm:$0xff]
      %v1256 = vld [vmem:[%s3 + $0x1d0] sm:$0xff]
      %v1257 = vld [vmem:[%s3 + $0x1d8] sm:$0xff]
      %v1258 = vld [vmem:[%s3 + $0x1e0] sm:$0xff]
      %v1259 = vld [vmem:[%s3 + $0x1e8] sm:$0xff]
      %v1260 = vld [vmem:[%s3 + $0x1f0] sm:$0xff]
      %v1261 = vld [vmem:[%s3 + $0x1f8] sm:$0xff]
      %v1262 = vld [vmem:[%s3 + $0x200] sm:$0xff]
      %v1263 = vld [vmem:[%s3 + $0x208] sm:$0xff]
      %v1264 = vld [vmem:[%s3 + $0x210] sm:$0xff]
      %v1265 = vld [vmem:[%s3 + $0x218] sm:$0xff]
      %v1266 = vld [vmem:[%s3 + $0x220] sm:$0xff]
      %v1267 = vld [vmem:[%s3 + $0x228] sm:$0xff]
      %v1268 = vld [vmem:[%s3 + $0x230] sm:$0xff]
      %v1269 = vld [vmem:[%s3 + $0x238] sm:$0xff]
      %v1270 = vld [vmem:[%s3 + $0x240] sm:$0xff]
      %v1271 = vld [vmem:[%s3 + $0x248] sm:$0xff]
      %v1272 = vld [vmem:[%s3 + $0x250] sm:$0xff]
      %v1273 = vld [vmem:[%s3 + $0x258] sm:$0xff]
      %v1274 = vld [vmem:[%s3 + $0x260] sm:$0xff]
      %v1275 = vld [vmem:[%s3 + $0x268] sm:$0xff]
      %v1276 = vld [vmem:[%s3 + $0x270] sm:$0xff]
      %v1277 = vld [vmem:[%s3 + $0x278] sm:$0xff]
      %v1358 = vunpack.c.l.b16 %v1198
      %v1359 = vunpack.c.h.b16 %v1198
      %v1360 = vunpack.c.l.b16 %v1199
      %v1361 = vunpack.c.h.b16 %v1199
      %v1362 = vunpack.c.l.b16 %v1200
      %v1363 = vunpack.c.h.b16 %v1200
      %v1364 = vunpack.c.l.b16 %v1201
      %v1365 = vunpack.c.h.b16 %v1201
      %v1366 = vunpack.c.l.b16 %v1202
      %v1367 = vunpack.c.h.b16 %v1202
      %v1368 = vunpack.c.l.b16 %v1203
      %v1369 = vunpack.c.h.b16 %v1203
      %v1370 = vunpack.c.l.b16 %v1204
      %v1371 = vunpack.c.h.b16 %v1204
      %v1372 = vunpack.c.l.b16 %v1205
      %v1373 = vunpack.c.h.b16 %v1205
      %v1374 = vunpack.c.l.b16 %v1206
      %v1375 = vunpack.c.h.b16 %v1206
      %v1376 = vunpack.c.l.b16 %v1207
      %v1377 = vunpack.c.h.b16 %v1207
      %v1378 = vunpack.c.l.b16 %v1208
      %v1379 = vunpack.c.h.b16 %v1208
      %v1380 = vunpack.c.l.b16 %v1209
      %v1381 = vunpack.c.h.b16 %v1209
      %v1382 = vunpack.c.l.b16 %v1210
      %v1383 = vunpack.c.h.b16 %v1210
      %v1384 = vunpack.c.l.b16 %v1211
      %v1385 = vunpack.c.h.b16 %v1211
      %v1386 = vunpack.c.l.b16 %v1212
      %v1387 = vunpack.c.h.b16 %v1212
      %v1388 = vunpack.c.l.b16 %v1213
      %v1389 = vunpack.c.h.b16 %v1213
      %v1390 = vunpack.c.l.b16 %v1214
      %v1391 = vunpack.c.h.b16 %v1214
      %v1392 = vunpack.c.l.b16 %v1215
      %v1393 = vunpack.c.h.b16 %v1215
      %v1394 = vunpack.c.l.b16 %v1216
      %v1395 = vunpack.c.h.b16 %v1216
      %v1396 = vunpack.c.l.b16 %v1217
      %v1397 = vunpack.c.h.b16 %v1217
      %v1398 = vunpack.c.l.b16 %v1218
      %v1399 = vunpack.c.h.b16 %v1218
      %v1400 = vunpack.c.l.b16 %v1219
      %v1401 = vunpack.c.h.b16 %v1219
      %v1402 = vunpack.c.l.b16 %v1220
      %v1403 = vunpack.c.h.b16 %v1220
      %v1404 = vunpack.c.l.b16 %v1221
      %v1405 = vunpack.c.h.b16 %v1221
      %v1406 = vunpack.c.l.b16 %v1222
      %v1407 = vunpack.c.h.b16 %v1222
      %v1408 = vunpack.c.l.b16 %v1223
      %v1409 = vunpack.c.h.b16 %v1223
      %v1410 = vunpack.c.l.b16 %v1224
      %v1411 = vunpack.c.h.b16 %v1224
      %v1412 = vunpack.c.l.b16 %v1225
      %v1413 = vunpack.c.h.b16 %v1225
      %v1414 = vunpack.c.l.b16 %v1226
      %v1415 = vunpack.c.h.b16 %v1226
      %v1416 = vunpack.c.l.b16 %v1227
      %v1417 = vunpack.c.h.b16 %v1227
      %v1418 = vunpack.c.l.b16 %v1228
      %v1419 = vunpack.c.h.b16 %v1228
      %v1420 = vunpack.c.l.b16 %v1229
      %v1421 = vunpack.c.h.b16 %v1229
      %v1422 = vunpack.c.l.b16 %v1230
      %v1423 = vunpack.c.h.b16 %v1230
      %v1424 = vunpack.c.l.b16 %v1231
      %v1425 = vunpack.c.h.b16 %v1231
      %v1426 = vunpack.c.l.b16 %v1232
      %v1427 = vunpack.c.h.b16 %v1232
      %v1428 = vunpack.c.l.b16 %v1233
      %v1429 = vunpack.c.h.b16 %v1233
      %v1430 = vunpack.c.l.b16 %v1234
      %v1431 = vunpack.c.h.b16 %v1234
      %v1432 = vunpack.c.l.b16 %v1235
      %v1433 = vunpack.c.h.b16 %v1235
      %v1434 = vunpack.c.l.b16 %v1236
      %v1435 = vunpack.c.h.b16 %v1236
      %v1436 = vunpack.c.l.b16 %v1237
      %v1437 = vunpack.c.h.b16 %v1237
      %v1438 = vunpack.c.l.b16 %v1238
      %v1439 = vunpack.c.h.b16 %v1238
      %v1440 = vunpack.c.l.b16 %v1239
      %v1441 = vunpack.c.h.b16 %v1239
      %v1442 = vunpack.c.l.b16 %v1240
      %v1443 = vunpack.c.h.b16 %v1240
      %v1444 = vunpack.c.l.b16 %v1241
      %v1445 = vunpack.c.h.b16 %v1241
      %v1446 = vunpack.c.l.b16 %v1242
      %v1447 = vunpack.c.h.b16 %v1242
      %v1448 = vunpack.c.l.b16 %v1243
      %v1449 = vunpack.c.h.b16 %v1243
      %v1450 = vunpack.c.l.b16 %v1244
      %v1451 = vunpack.c.h.b16 %v1244
      %v1452 = vunpack.c.l.b16 %v1245
      %v1453 = vunpack.c.h.b16 %v1245
      %v1454 = vunpack.c.l.b16 %v1246
      %v1455 = vunpack.c.h.b16 %v1246
      %v1456 = vunpack.c.l.b16 %v1247
      %v1457 = vunpack.c.h.b16 %v1247
      %v1458 = vunpack.c.l.b16 %v1248
      %v1459 = vunpack.c.h.b16 %v1248
      %v1460 = vunpack.c.l.b16 %v1249
      %v1461 = vunpack.c.h.b16 %v1249
      %v1462 = vunpack.c.l.b16 %v1250
      %v1463 = vunpack.c.h.b16 %v1250
      %v1464 = vunpack.c.l.b16 %v1251
      %v1465 = vunpack.c.h.b16 %v1251
      %v1466 = vunpack.c.l.b16 %v1252
      %v1467 = vunpack.c.h.b16 %v1252
      %v1468 = vunpack.c.l.b16 %v1253
      %v1469 = vunpack.c.h.b16 %v1253
      %v1470 = vunpack.c.l.b16 %v1254
      %v1471 = vunpack.c.h.b16 %v1254
      %v1472 = vunpack.c.l.b16 %v1255
      %v1473 = vunpack.c.h.b16 %v1255
      %v1474 = vunpack.c.l.b16 %v1256
      %v1475 = vunpack.c.h.b16 %v1256
      %v1476 = vunpack.c.l.b16 %v1257
      %v1477 = vunpack.c.h.b16 %v1257
      %v1478 = vunpack.c.l.b16 %v1258
      %v1479 = vunpack.c.h.b16 %v1258
      %v1480 = vunpack.c.l.b16 %v1259
      %v1481 = vunpack.c.h.b16 %v1259
      %v1482 = vunpack.c.l.b16 %v1260
      %v1483 = vunpack.c.h.b16 %v1260
      %v1484 = vunpack.c.l.b16 %v1261
      %v1485 = vunpack.c.h.b16 %v1261
      %v1486 = vunpack.c.l.b16 %v1262
      %v1487 = vunpack.c.h.b16 %v1262
      %v1488 = vunpack.c.l.b16 %v1263
      %v1489 = vunpack.c.h.b16 %v1263
      %v1490 = vunpack.c.l.b16 %v1264
      %v1491 = vunpack.c.h.b16 %v1264
      %v1492 = vunpack.c.l.b16 %v1265
      %v1493 = vunpack.c.h.b16 %v1265
      %v1494 = vunpack.c.l.b16 %v1266
      %v1495 = vunpack.c.h.b16 %v1266
      %v1496 = vunpack.c.l.b16 %v1267
      %v1497 = vunpack.c.h.b16 %v1267
      %v1498 = vunpack.c.l.b16 %v1268
      %v1499 = vunpack.c.h.b16 %v1268
      %v1500 = vunpack.c.l.b16 %v1269
      %v1501 = vunpack.c.h.b16 %v1269
      %v1502 = vunpack.c.l.b16 %v1270
      %v1503 = vunpack.c.h.b16 %v1270
      %v1504 = vunpack.c.l.b16 %v1271
      %v1505 = vunpack.c.h.b16 %v1271
      %v1506 = vunpack.c.l.b16 %v1272
      %v1507 = vunpack.c.h.b16 %v1272
      %v1508 = vunpack.c.l.b16 %v1273
      %v1509 = vunpack.c.h.b16 %v1273
      %v1510 = vunpack.c.l.b16 %v1274
      %v1511 = vunpack.c.h.b16 %v1274
      %v1512 = vunpack.c.l.b16 %v1275
      %v1513 = vunpack.c.h.b16 %v1275
      %v1514 = vunpack.c.l.b16 %v1276
      %v1515 = vunpack.c.h.b16 %v1276
      %v1516 = vunpack.c.l.b16 %v1277
      %v1517 = vunpack.c.h.b16 %v1277
      %v1518 = vpack.c.b16 %v1360, %v1358
      %v1519 = vpack.c.b16 %v1361, %v1359
      %v1520 = vpack.c.b16 %v1364, %v1362
      %v1521 = vpack.c.b16 %v1365, %v1363
      %v1522 = vpack.c.b16 %v1368, %v1366
      %v1523 = vpack.c.b16 %v1369, %v1367
      %v1524 = vpack.c.b16 %v1372, %v1370
      %v1525 = vpack.c.b16 %v1373, %v1371
      %v1526 = vpack.c.b16 %v1376, %v1374
      %v1527 = vpack.c.b16 %v1377, %v1375
      %v1528 = vpack.c.b16 %v1380, %v1378
      %v1529 = vpack.c.b16 %v1381, %v1379
      %v1530 = vpack.c.b16 %v1384, %v1382
      %v1531 = vpack.c.b16 %v1385, %v1383
      %v1532 = vpack.c.b16 %v1388, %v1386
      %v1533 = vpack.c.b16 %v1389, %v1387
      %v1534 = vpack.c.b16 %v1392, %v1390
      %v1535 = vpack.c.b16 %v1393, %v1391
      %v1536 = vpack.c.b16 %v1396, %v1394
      %v1537 = vpack.c.b16 %v1397, %v1395
      %v1538 = vpack.c.b16 %v1400, %v1398
      %v1539 = vpack.c.b16 %v1401, %v1399
      %v1540 = vpack.c.b16 %v1404, %v1402
      %v1541 = vpack.c.b16 %v1405, %v1403
      %v1542 = vpack.c.b16 %v1408, %v1406
      %v1543 = vpack.c.b16 %v1409, %v1407
      %v1544 = vpack.c.b16 %v1412, %v1410
      %v1545 = vpack.c.b16 %v1413, %v1411
      %v1546 = vpack.c.b16 %v1416, %v1414
      %v1547 = vpack.c.b16 %v1417, %v1415
      %v1548 = vpack.c.b16 %v1420, %v1418
      %v1549 = vpack.c.b16 %v1421, %v1419
      %v1550 = vpack.c.b16 %v1424, %v1422
      %v1551 = vpack.c.b16 %v1425, %v1423
      %v1552 = vpack.c.b16 %v1428, %v1426
      %v1553 = vpack.c.b16 %v1429, %v1427
      %v1554 = vpack.c.b16 %v1432, %v1430
      %v1555 = vpack.c.b16 %v1433, %v1431
      %v1556 = vpack.c.b16 %v1436, %v1434
      %v1557 = vpack.c.b16 %v1437, %v1435
      %v1558 = vpack.c.b16 %v1440, %v1438
      %v1559 = vpack.c.b16 %v1441, %v1439
      %v1560 = vpack.c.b16 %v1444, %v1442
      %v1561 = vpack.c.b16 %v1445, %v1443
      %v1562 = vpack.c.b16 %v1448, %v1446
      %v1563 = vpack.c.b16 %v1449, %v1447
      %v1564 = vpack.c.b16 %v1452, %v1450
      %v1565 = vpack.c.b16 %v1453, %v1451
      %v1566 = vpack.c.b16 %v1456, %v1454
      %v1567 = vpack.c.b16 %v1457, %v1455
      %v1568 = vpack.c.b16 %v1460, %v1458
      %v1569 = vpack.c.b16 %v1461, %v1459
      %v1570 = vpack.c.b16 %v1464, %v1462
      %v1571 = vpack.c.b16 %v1465, %v1463
      %v1572 = vpack.c.b16 %v1468, %v1466
      %v1573 = vpack.c.b16 %v1469, %v1467
      %v1574 = vpack.c.b16 %v1472, %v1470
      %v1575 = vpack.c.b16 %v1473, %v1471
      %v1576 = vpack.c.b16 %v1476, %v1474
      %v1577 = vpack.c.b16 %v1477, %v1475
      %v1578 = vpack.c.b16 %v1480, %v1478
      %v1579 = vpack.c.b16 %v1481, %v1479
      %v1580 = vpack.c.b16 %v1484, %v1482
      %v1581 = vpack.c.b16 %v1485, %v1483
      %v1582 = vpack.c.b16 %v1488, %v1486
      %v1583 = vpack.c.b16 %v1489, %v1487
      %v1584 = vpack.c.b16 %v1492, %v1490
      %v1585 = vpack.c.b16 %v1493, %v1491
      %v1586 = vpack.c.b16 %v1496, %v1494
      %v1587 = vpack.c.b16 %v1497, %v1495
      %v1588 = vpack.c.b16 %v1500, %v1498
      %v1589 = vpack.c.b16 %v1501, %v1499
      %v1590 = vpack.c.b16 %v1504, %v1502
      %v1591 = vpack.c.b16 %v1505, %v1503
      %v1592 = vpack.c.b16 %v1508, %v1506
      %v1593 = vpack.c.b16 %v1509, %v1507
      %v1594 = vpack.c.b16 %v1512, %v1510
      %v1595 = vpack.c.b16 %v1513, %v1511
      %v1596 = vpack.c.b16 %v1516, %v1514
      %v1597 = vpack.c.b16 %v1517, %v1515
      %1678 = vmatpush.bf16.msra.mxu0 %v1189
      %1679 = vmatpush.bf16.msra.mxu0 %v1188
      %1680 = vmatpush.bf16.msra.mxu0 %v1187
      %1681 = vmatpush.bf16.msra.mxu0 %v1186
      %1682 = vmatpush.bf16.msra.mxu0 %v1185
      %1683 = vmatpush.bf16.msra.mxu0 %v1184
      %1684 = vmatpush.bf16.msra.mxu0 %v1183
      %1685 = vmatpush.bf16.msra.mxu0 %v1182
      %1686 = vmatmul.bf16.gmra.mxu0 %v1518
      %v1687 = vpop.f32.mrf.mxu0
      %v1688 = vadd.f32 0.0, %v1687
      %v1689 = vpop.f32.mrf.mxu0
      %v1690 = vadd.f32 0.0, %v1689
      %1691 = vmatmul.bf16.gmra.mxu0 %v1520
      %v1692 = vpop.f32.mrf.mxu0
      %v1693 = vadd.f32 0.0, %v1692
      %v1694 = vpop.f32.mrf.mxu0
      %v1695 = vadd.f32 0.0, %v1694
      %1696 = vmatmul.bf16.gmra.mxu0 %v1522
      %v1697 = vpop.f32.mrf.mxu0
      %v1698 = vadd.f32 0.0, %v1697
      %v1699 = vpop.f32.mrf.mxu0
      %v1700 = vadd.f32 0.0, %v1699
      %1701 = vmatmul.bf16.gmra.mxu0 %v1524
      %v1702 = vpop.f32.mrf.mxu0
      %v1703 = vadd.f32 0.0, %v1702
      %v1704 = vpop.f32.mrf.mxu0
      %v1705 = vadd.f32 0.0, %v1704
      %1706 = vmatmul.bf16.gmra.mxu0 %v1526
      %v1707 = vpop.f32.mrf.mxu0
      %v1708 = vadd.f32 0.0, %v1707
      %v1709 = vpop.f32.mrf.mxu0
      %v1710 = vadd.f32 0.0, %v1709
      %1711 = vmatmul.bf16.gmra.mxu0 %v1528
      %v1712 = vpop.f32.mrf.mxu0
      %v1713 = vadd.f32 0.0, %v1712
      %v1714 = vpop.f32.mrf.mxu0
      %v1715 = vadd.f32 0.0, %v1714
      %1716 = vmatmul.bf16.gmra.mxu0 %v1530
      %v1717 = vpop.f32.mrf.mxu0
      %v1718 = vadd.f32 0.0, %v1717
      %v1719 = vpop.f32.mrf.mxu0
      %v1720 = vadd.f32 0.0, %v1719
      %1721 = vmatmul.bf16.gmra.mxu0 %v1532
      %v1722 = vpop.f32.mrf.mxu0
      %v1723 = vadd.f32 0.0, %v1722
      %v1724 = vpop.f32.mrf.mxu0
      %v1725 = vadd.f32 0.0, %v1724
      %1726 = vmatmul.bf16.gmra.mxu0 %v1534
      %v1727 = vpop.f32.mrf.mxu0
      %v1728 = vadd.f32 0.0, %v1727
      %v1729 = vpop.f32.mrf.mxu0
      %v1730 = vadd.f32 0.0, %v1729
      %1731 = vmatmul.bf16.gmra.mxu0 %v1536
      %v1732 = vpop.f32.mrf.mxu0
      %v1733 = vadd.f32 0.0, %v1732
      %v1734 = vpop.f32.mrf.mxu0
      %v1735 = vadd.f32 0.0, %v1734
      %1736 = vmatmul.bf16.gmra.mxu0 %v1538
      %v1737 = vpop.f32.mrf.mxu0
      %v1738 = vadd.f32 0.0, %v1737
      %v1739 = vpop.f32.mrf.mxu0
      %v1740 = vadd.f32 0.0, %v1739
      %1741 = vmatmul.bf16.gmra.mxu0 %v1540
      %v1742 = vpop.f32.mrf.mxu0
      %v1743 = vadd.f32 0.0, %v1742
      %v1744 = vpop.f32.mrf.mxu0
      %v1745 = vadd.f32 0.0, %v1744
      %1746 = vmatmul.bf16.gmra.mxu0 %v1542
      %v1747 = vpop.f32.mrf.mxu0
      %v1748 = vadd.f32 0.0, %v1747
      %v1749 = vpop.f32.mrf.mxu0
      %v1750 = vadd.f32 0.0, %v1749
      %1751 = vmatmul.bf16.gmra.mxu0 %v1544
      %v1752 = vpop.f32.mrf.mxu0
      %v1753 = vadd.f32 0.0, %v1752
      %v1754 = vpop.f32.mrf.mxu0
      %v1755 = vadd.f32 0.0, %v1754
      %1756 = vmatmul.bf16.gmra.mxu0 %v1546
      %v1757 = vpop.f32.mrf.mxu0
      %v1758 = vadd.f32 0.0, %v1757
      %v1759 = vpop.f32.mrf.mxu0
      %v1760 = vadd.f32 0.0, %v1759
      %1761 = vmatmul.bf16.gmra.mxu0 %v1548
      %v1762 = vpop.f32.mrf.mxu0
      %v1763 = vadd.f32 0.0, %v1762
      %v1764 = vpop.f32.mrf.mxu0
      %v1765 = vadd.f32 0.0, %v1764
      %1766 = vmatmul.bf16.gmra.mxu0 %v1550
      %v1767 = vpop.f32.mrf.mxu0
      %v1768 = vadd.f32 0.0, %v1767
      %v1769 = vpop.f32.mrf.mxu0
      %v1770 = vadd.f32 0.0, %v1769
      %1771 = vmatmul.bf16.gmra.mxu0 %v1552
      %v1772 = vpop.f32.mrf.mxu0
      %v1773 = vadd.f32 0.0, %v1772
      %v1774 = vpop.f32.mrf.mxu0
      %v1775 = vadd.f32 0.0, %v1774
      %1776 = vmatmul.bf16.gmra.mxu0 %v1554
      %v1777 = vpop.f32.mrf.mxu0
      %v1778 = vadd.f32 0.0, %v1777
      %v1779 = vpop.f32.mrf.mxu0
      %v1780 = vadd.f32 0.0, %v1779
      %1781 = vmatmul.bf16.gmra.mxu0 %v1556
      %v1782 = vpop.f32.mrf.mxu0
      %v1783 = vadd.f32 0.0, %v1782
      %v1784 = vpop.f32.mrf.mxu0
      %v1785 = vadd.f32 0.0, %v1784
      %1786 = vmatmul.bf16.gmra.mxu0 %v1558
      %v1787 = vpop.f32.mrf.mxu0
      %v1788 = vadd.f32 0.0, %v1787
      %v1789 = vpop.f32.mrf.mxu0
      %v1790 = vadd.f32 0.0, %v1789
      %1791 = vmatmul.bf16.gmra.mxu0 %v1560
      %v1792 = vpop.f32.mrf.mxu0
      %v1793 = vadd.f32 0.0, %v1792
      %v1794 = vpop.f32.mrf.mxu0
      %v1795 = vadd.f32 0.0, %v1794
      %1796 = vmatmul.bf16.gmra.mxu0 %v1562
      %v1797 = vpop.f32.mrf.mxu0
      %v1798 = vadd.f32 0.0, %v1797
      %v1799 = vpop.f32.mrf.mxu0
      %v1800 = vadd.f32 0.0, %v1799
      %1801 = vmatmul.bf16.gmra.mxu0 %v1564
      %v1802 = vpop.f32.mrf.mxu0
      %v1803 = vadd.f32 0.0, %v1802
      %v1804 = vpop.f32.mrf.mxu0
      %v1805 = vadd.f32 0.0, %v1804
      %1806 = vmatmul.bf16.gmra.mxu0 %v1566
      %v1807 = vpop.f32.mrf.mxu0
      %v1808 = vadd.f32 0.0, %v1807
      %v1809 = vpop.f32.mrf.mxu0
      %v1810 = vadd.f32 0.0, %v1809
      %1811 = vmatmul.bf16.gmra.mxu0 %v1568
      %v1812 = vpop.f32.mrf.mxu0
      %v1813 = vadd.f32 0.0, %v1812
      %v1814 = vpop.f32.mrf.mxu0
      %v1815 = vadd.f32 0.0, %v1814
      %1816 = vmatmul.bf16.gmra.mxu0 %v1570
      %v1817 = vpop.f32.mrf.mxu0
      %v1818 = vadd.f32 0.0, %v1817
      %v1819 = vpop.f32.mrf.mxu0
      %v1820 = vadd.f32 0.0, %v1819
      %1821 = vmatmul.bf16.gmra.mxu0 %v1572
      %v1822 = vpop.f32.mrf.mxu0
      %v1823 = vadd.f32 0.0, %v1822
      %v1824 = vpop.f32.mrf.mxu0
      %v1825 = vadd.f32 0.0, %v1824
      %1826 = vmatmul.bf16.gmra.mxu0 %v1574
      %v1827 = vpop.f32.mrf.mxu0
      %v1828 = vadd.f32 0.0, %v1827
      %v1829 = vpop.f32.mrf.mxu0
      %v1830 = vadd.f32 0.0, %v1829
      %1831 = vmatmul.bf16.gmra.mxu0 %v1576
      %v1832 = vpop.f32.mrf.mxu0
      %v1833 = vadd.f32 0.0, %v1832
      %v1834 = vpop.f32.mrf.mxu0
      %v1835 = vadd.f32 0.0, %v1834
      %1836 = vmatmul.bf16.gmra.mxu0 %v1578
      %v1837 = vpop.f32.mrf.mxu0
      %v1838 = vadd.f32 0.0, %v1837
      %v1839 = vpop.f32.mrf.mxu0
      %v1840 = vadd.f32 0.0, %v1839
      %1841 = vmatmul.bf16.gmra.mxu0 %v1580
      %v1842 = vpop.f32.mrf.mxu0
      %v1843 = vadd.f32 0.0, %v1842
      %v1844 = vpop.f32.mrf.mxu0
      %v1845 = vadd.f32 0.0, %v1844
      %1846 = vmatmul.bf16.gmra.mxu0 %v1582
      %v1847 = vpop.f32.mrf.mxu0
      %v1848 = vadd.f32 0.0, %v1847
      %v1849 = vpop.f32.mrf.mxu0
      %v1850 = vadd.f32 0.0, %v1849
      %1851 = vmatmul.bf16.gmra.mxu0 %v1584
      %v1852 = vpop.f32.mrf.mxu0
      %v1853 = vadd.f32 0.0, %v1852
      %v1854 = vpop.f32.mrf.mxu0
      %v1855 = vadd.f32 0.0, %v1854
      %1856 = vmatmul.bf16.gmra.mxu0 %v1586
      %v1857 = vpop.f32.mrf.mxu0
      %v1858 = vadd.f32 0.0, %v1857
      %v1859 = vpop.f32.mrf.mxu0
      %v1860 = vadd.f32 0.0, %v1859
      %1861 = vmatmul.bf16.gmra.mxu0 %v1588
      %v1862 = vpop.f32.mrf.mxu0
      %v1863 = vadd.f32 0.0, %v1862
      %v1864 = vpop.f32.mrf.mxu0
      %v1865 = vadd.f32 0.0, %v1864
      %1866 = vmatmul.bf16.gmra.mxu0 %v1590
      %v1867 = vpop.f32.mrf.mxu0
      %v1868 = vadd.f32 0.0, %v1867
      %v1869 = vpop.f32.mrf.mxu0
      %v1870 = vadd.f32 0.0, %v1869
      %1871 = vmatmul.bf16.gmra.mxu0 %v1592
      %v1872 = vpop.f32.mrf.mxu0
      %v1873 = vadd.f32 0.0, %v1872
      %v1874 = vpop.f32.mrf.mxu0
      %v1875 = vadd.f32 0.0, %v1874
      %1876 = vmatmul.bf16.gmra.mxu0 %v1594
      %v1877 = vpop.f32.mrf.mxu0
      %v1878 = vadd.f32 0.0, %v1877
      %v1879 = vpop.f32.mrf.mxu0
      %v1880 = vadd.f32 0.0, %v1879
      %1881 = vmatmul.bf16.gmra.mxu0 %v1596
      %v1882 = vpop.f32.mrf.mxu0
      %v1883 = vadd.f32 0.0, %v1882
      %v1884 = vpop.f32.mrf.mxu0
      %v1885 = vadd.f32 0.0, %v1884
      %1886 = vdwg.mxu0
      %1887 = vmatpush.bf16.msra.mxu0 %v1197
      %1888 = vmatpush.bf16.msra.mxu0 %v1196
      %1889 = vmatpush.bf16.msra.mxu0 %v1195
      %1890 = vmatpush.bf16.msra.mxu0 %v1194
      %1891 = vmatpush.bf16.msra.mxu0 %v1193
      %1892 = vmatpush.bf16.msra.mxu0 %v1192
      %1893 = vmatpush.bf16.msra.mxu0 %v1191
      %1894 = vmatpush.bf16.msra.mxu0 %v1190
      %1895 = vmatmul.bf16.gmra.mxu0 %v1519
      %v1896 = vpop.f32.mrf.mxu0
      %v1897 = vadd.f32 %v1688, %v1896
      %v1898 = vpop.f32.mrf.mxu0
      %v1899 = vadd.f32 %v1690, %v1898
      %1900 = vmatmul.bf16.gmra.mxu0 %v1521
      %v1901 = vpop.f32.mrf.mxu0
      %v1902 = vadd.f32 %v1693, %v1901
      %v1903 = vpop.f32.mrf.mxu0
      %v1904 = vadd.f32 %v1695, %v1903
      %1905 = vmatmul.bf16.gmra.mxu0 %v1523
      %v1906 = vpop.f32.mrf.mxu0
      %v1907 = vadd.f32 %v1698, %v1906
      %v1908 = vpop.f32.mrf.mxu0
      %v1909 = vadd.f32 %v1700, %v1908
      %1910 = vmatmul.bf16.gmra.mxu0 %v1525
      %v1911 = vpop.f32.mrf.mxu0
      %v1912 = vadd.f32 %v1703, %v1911
      %v1913 = vpop.f32.mrf.mxu0
      %v1914 = vadd.f32 %v1705, %v1913
      %1915 = vmatmul.bf16.gmra.mxu0 %v1527
      %v1916 = vpop.f32.mrf.mxu0
      %v1917 = vadd.f32 %v1708, %v1916
      %v1918 = vpop.f32.mrf.mxu0
      %v1919 = vadd.f32 %v1710, %v1918
      %1920 = vmatmul.bf16.gmra.mxu0 %v1529
      %v1921 = vpop.f32.mrf.mxu0
      %v1922 = vadd.f32 %v1713, %v1921
      %v1923 = vpop.f32.mrf.mxu0
      %v1924 = vadd.f32 %v1715, %v1923
      %1925 = vmatmul.bf16.gmra.mxu0 %v1531
      %v1926 = vpop.f32.mrf.mxu0
      %v1927 = vadd.f32 %v1718, %v1926
      %v1928 = vpop.f32.mrf.mxu0
      %v1929 = vadd.f32 %v1720, %v1928
      %1930 = vmatmul.bf16.gmra.mxu0 %v1533
      %v1931 = vpop.f32.mrf.mxu0
      %v1932 = vadd.f32 %v1723, %v1931
      %v1933 = vpop.f32.mrf.mxu0
      %v1934 = vadd.f32 %v1725, %v1933
      %1935 = vmatmul.bf16.gmra.mxu0 %v1535
      %v1936 = vpop.f32.mrf.mxu0
      %v1937 = vadd.f32 %v1728, %v1936
      %v1938 = vpop.f32.mrf.mxu0
      %v1939 = vadd.f32 %v1730, %v1938
      %1940 = vmatmul.bf16.gmra.mxu0 %v1537
      %v1941 = vpop.f32.mrf.mxu0
      %v1942 = vadd.f32 %v1733, %v1941
      %v1943 = vpop.f32.mrf.mxu0
      %v1944 = vadd.f32 %v1735, %v1943
      %1945 = vmatmul.bf16.gmra.mxu0 %v1539
      %v1946 = vpop.f32.mrf.mxu0
      %v1947 = vadd.f32 %v1738, %v1946
      %v1948 = vpop.f32.mrf.mxu0
      %v1949 = vadd.f32 %v1740, %v1948
      %1950 = vmatmul.bf16.gmra.mxu0 %v1541
      %v1951 = vpop.f32.mrf.mxu0
      %v1952 = vadd.f32 %v1743, %v1951
      %v1953 = vpop.f32.mrf.mxu0
      %v1954 = vadd.f32 %v1745, %v1953
      %1955 = vmatmul.bf16.gmra.mxu0 %v1543
      %v1956 = vpop.f32.mrf.mxu0
      %v1957 = vadd.f32 %v1748, %v1956
      %v1958 = vpop.f32.mrf.mxu0
      %v1959 = vadd.f32 %v1750, %v1958
      %1960 = vmatmul.bf16.gmra.mxu0 %v1545
      %v1961 = vpop.f32.mrf.mxu0
      %v1962 = vadd.f32 %v1753, %v1961
      %v1963 = vpop.f32.mrf.mxu0
      %v1964 = vadd.f32 %v1755, %v1963
      %1965 = vmatmul.bf16.gmra.mxu0 %v1547
      %v1966 = vpop.f32.mrf.mxu0
      %v1967 = vadd.f32 %v1758, %v1966
      %v1968 = vpop.f32.mrf.mxu0
      %v1969 = vadd.f32 %v1760, %v1968
      %1970 = vmatmul.bf16.gmra.mxu0 %v1549
      %v1971 = vpop.f32.mrf.mxu0
      %v1972 = vadd.f32 %v1763, %v1971
      %v1973 = vpop.f32.mrf.mxu0
      %v1974 = vadd.f32 %v1765, %v1973
      %1975 = vmatmul.bf16.gmra.mxu0 %v1551
      %v1976 = vpop.f32.mrf.mxu0
      %v1977 = vadd.f32 %v1768, %v1976
      %v1978 = vpop.f32.mrf.mxu0
      %v1979 = vadd.f32 %v1770, %v1978
      %1980 = vmatmul.bf16.gmra.mxu0 %v1553
      %v1981 = vpop.f32.mrf.mxu0
      %v1982 = vadd.f32 %v1773, %v1981
      %v1983 = vpop.f32.mrf.mxu0
      %v1984 = vadd.f32 %v1775, %v1983
      %1985 = vmatmul.bf16.gmra.mxu0 %v1555
      %v1986 = vpop.f32.mrf.mxu0
      %v1987 = vadd.f32 %v1778, %v1986
      %v1988 = vpop.f32.mrf.mxu0
      %v1989 = vadd.f32 %v1780, %v1988
      %1990 = vmatmul.bf16.gmra.mxu0 %v1557
      %v1991 = vpop.f32.mrf.mxu0
      %v1992 = vadd.f32 %v1783, %v1991
      %v1993 = vpop.f32.mrf.mxu0
      %v1994 = vadd.f32 %v1785, %v1993
      %1995 = vmatmul.bf16.gmra.mxu0 %v1559
      %v1996 = vpop.f32.mrf.mxu0
      %v1997 = vadd.f32 %v1788, %v1996
      %v1998 = vpop.f32.mrf.mxu0
      %v1999 = vadd.f32 %v1790, %v1998
      %2000 = vmatmul.bf16.gmra.mxu0 %v1561
      %v2001 = vpop.f32.mrf.mxu0
      %v2002 = vadd.f32 %v1793, %v2001
      %v2003 = vpop.f32.mrf.mxu0
      %v2004 = vadd.f32 %v1795, %v2003
      %2005 = vmatmul.bf16.gmra.mxu0 %v1563
      %v2006 = vpop.f32.mrf.mxu0
      %v2007 = vadd.f32 %v1798, %v2006
      %v2008 = vpop.f32.mrf.mxu0
      %v2009 = vadd.f32 %v1800, %v2008
      %2010 = vmatmul.bf16.gmra.mxu0 %v1565
      %v2011 = vpop.f32.mrf.mxu0
      %v2012 = vadd.f32 %v1803, %v2011
      %v2013 = vpop.f32.mrf.mxu0
      %v2014 = vadd.f32 %v1805, %v2013
      %2015 = vmatmul.bf16.gmra.mxu0 %v1567
      %v2016 = vpop.f32.mrf.mxu0
      %v2017 = vadd.f32 %v1808, %v2016
      %v2018 = vpop.f32.mrf.mxu0
      %v2019 = vadd.f32 %v1810, %v2018
      %2020 = vmatmul.bf16.gmra.mxu0 %v1569
      %v2021 = vpop.f32.mrf.mxu0
      %v2022 = vadd.f32 %v1813, %v2021
      %v2023 = vpop.f32.mrf.mxu0
      %v2024 = vadd.f32 %v1815, %v2023
      %2025 = vmatmul.bf16.gmra.mxu0 %v1571
      %v2026 = vpop.f32.mrf.mxu0
      %v2027 = vadd.f32 %v1818, %v2026
      %v2028 = vpop.f32.mrf.mxu0
      %v2029 = vadd.f32 %v1820, %v2028
      %2030 = vmatmul.bf16.gmra.mxu0 %v1573
      %v2031 = vpop.f32.mrf.mxu0
      %v2032 = vadd.f32 %v1823, %v2031
      %v2033 = vpop.f32.mrf.mxu0
      %v2034 = vadd.f32 %v1825, %v2033
      %2035 = vmatmul.bf16.gmra.mxu0 %v1575
      %v2036 = vpop.f32.mrf.mxu0
      %v2037 = vadd.f32 %v1828, %v2036
      %v2038 = vpop.f32.mrf.mxu0
      %v2039 = vadd.f32 %v1830, %v2038
      %2040 = vmatmul.bf16.gmra.mxu0 %v1577
      %v2041 = vpop.f32.mrf.mxu0
      %v2042 = vadd.f32 %v1833, %v2041
      %v2043 = vpop.f32.mrf.mxu0
      %v2044 = vadd.f32 %v1835, %v2043
      %2045 = vmatmul.bf16.gmra.mxu0 %v1579
      %v2046 = vpop.f32.mrf.mxu0
      %v2047 = vadd.f32 %v1838, %v2046
      %v2048 = vpop.f32.mrf.mxu0
      %v2049 = vadd.f32 %v1840, %v2048
      %2050 = vmatmul.bf16.gmra.mxu0 %v1581
      %v2051 = vpop.f32.mrf.mxu0
      %v2052 = vadd.f32 %v1843, %v2051
      %v2053 = vpop.f32.mrf.mxu0
      %v2054 = vadd.f32 %v1845, %v2053
      %2055 = vmatmul.bf16.gmra.mxu0 %v1583
      %v2056 = vpop.f32.mrf.mxu0
      %v2057 = vadd.f32 %v1848, %v2056
      %v2058 = vpop.f32.mrf.mxu0
      %v2059 = vadd.f32 %v1850, %v2058
      %2060 = vmatmul.bf16.gmra.mxu0 %v1585
      %v2061 = vpop.f32.mrf.mxu0
      %v2062 = vadd.f32 %v1853, %v2061
      %v2063 = vpop.f32.mrf.mxu0
      %v2064 = vadd.f32 %v1855, %v2063
      %2065 = vmatmul.bf16.gmra.mxu0 %v1587
      %v2066 = vpop.f32.mrf.mxu0
      %v2067 = vadd.f32 %v1858, %v2066
      %v2068 = vpop.f32.mrf.mxu0
      %v2069 = vadd.f32 %v1860, %v2068
      %2070 = vmatmul.bf16.gmra.mxu0 %v1589
      %v2071 = vpop.f32.mrf.mxu0
      %v2072 = vadd.f32 %v1863, %v2071
      %v2073 = vpop.f32.mrf.mxu0
      %v2074 = vadd.f32 %v1865, %v2073
      %2075 = vmatmul.bf16.gmra.mxu0 %v1591
      %v2076 = vpop.f32.mrf.mxu0
      %v2077 = vadd.f32 %v1868, %v2076
      %v2078 = vpop.f32.mrf.mxu0
      %v2079 = vadd.f32 %v1870, %v2078
      %2080 = vmatmul.bf16.gmra.mxu0 %v1593
      %v2081 = vpop.f32.mrf.mxu0
      %v2082 = vadd.f32 %v1873, %v2081
      %v2083 = vpop.f32.mrf.mxu0
      %v2084 = vadd.f32 %v1875, %v2083
      %2085 = vmatmul.bf16.gmra.mxu0 %v1595
      %v2086 = vpop.f32.mrf.mxu0
      %v2087 = vadd.f32 %v1878, %v2086
      %v2088 = vpop.f32.mrf.mxu0
      %v2089 = vadd.f32 %v1880, %v2088
      %2090 = vmatmul.bf16.gmra.mxu0 %v1597
      %v2091 = vpop.f32.mrf.mxu0
      %v2092 = vadd.f32 %v1883, %v2091
      %v2093 = vpop.f32.mrf.mxu0
      %v2094 = vadd.f32 %v1885, %v2093
      %2095 = vdwg.mxu0
      %v2096 = vpack.c.bf16 %v1897, %v1897
      %v2097 = vpack.c.bf16 %v1899, %v1899
      %v2098 = vpack.c.bf16 %v1902, %v1902
      %v2099 = vpack.c.bf16 %v1904, %v1904
      %v2100 = vpack.c.bf16 %v1907, %v1907
      %v2101 = vpack.c.bf16 %v1909, %v1909
      %v2102 = vpack.c.bf16 %v1912, %v1912
      %v2103 = vpack.c.bf16 %v1914, %v1914
      %v2104 = vpack.c.bf16 %v1917, %v1917
      %v2105 = vpack.c.bf16 %v1919, %v1919
      %v2106 = vpack.c.bf16 %v1922, %v1922
      %v2107 = vpack.c.bf16 %v1924, %v1924
      %v2108 = vpack.c.bf16 %v1927, %v1927
      %v2109 = vpack.c.bf16 %v1929, %v1929
      %v2110 = vpack.c.bf16 %v1932, %v1932
      %v2111 = vpack.c.bf16 %v1934, %v1934
      %v2112 = vpack.c.bf16 %v1937, %v1937
      %v2113 = vpack.c.bf16 %v1939, %v1939
      %v2114 = vpack.c.bf16 %v1942, %v1942
      %v2115 = vpack.c.bf16 %v1944, %v1944
      %v2116 = vpack.c.bf16 %v1947, %v1947
      %v2117 = vpack.c.bf16 %v1949, %v1949
      %v2118 = vpack.c.bf16 %v1952, %v1952
      %v2119 = vpack.c.bf16 %v1954, %v1954
      %v2120 = vpack.c.bf16 %v1957, %v1957
      %v2121 = vpack.c.bf16 %v1959, %v1959
      %v2122 = vpack.c.bf16 %v1962, %v1962
      %v2123 = vpack.c.bf16 %v1964, %v1964
      %v2124 = vpack.c.bf16 %v1967, %v1967
      %v2125 = vpack.c.bf16 %v1969, %v1969
      %v2126 = vpack.c.bf16 %v1972, %v1972
      %v2127 = vpack.c.bf16 %v1974, %v1974
      %v2128 = vpack.c.bf16 %v1977, %v1977
      %v2129 = vpack.c.bf16 %v1979, %v1979
      %v2130 = vpack.c.bf16 %v1982, %v1982
      %v2131 = vpack.c.bf16 %v1984, %v1984
      %v2132 = vpack.c.bf16 %v1987, %v1987
      %v2133 = vpack.c.bf16 %v1989, %v1989
      %v2134 = vpack.c.bf16 %v1992, %v1992
      %v2135 = vpack.c.bf16 %v1994, %v1994
      %v2136 = vpack.c.bf16 %v1997, %v1997
      %v2137 = vpack.c.bf16 %v1999, %v1999
      %v2138 = vpack.c.bf16 %v2002, %v2002
      %v2139 = vpack.c.bf16 %v2004, %v2004
      %v2140 = vpack.c.bf16 %v2007, %v2007
      %v2141 = vpack.c.bf16 %v2009, %v2009
      %v2142 = vpack.c.bf16 %v2012, %v2012
      %v2143 = vpack.c.bf16 %v2014, %v2014
      %v2144 = vpack.c.bf16 %v2017, %v2017
      %v2145 = vpack.c.bf16 %v2019, %v2019
      %v2146 = vpack.c.bf16 %v2022, %v2022
      %v2147 = vpack.c.bf16 %v2024, %v2024
      %v2148 = vpack.c.bf16 %v2027, %v2027
      %v2149 = vpack.c.bf16 %v2029, %v2029
      %v2150 = vpack.c.bf16 %v2032, %v2032
      %v2151 = vpack.c.bf16 %v2034, %v2034
      %v2152 = vpack.c.bf16 %v2037, %v2037
      %v2153 = vpack.c.bf16 %v2039, %v2039
      %v2154 = vpack.c.bf16 %v2042, %v2042
      %v2155 = vpack.c.bf16 %v2044, %v2044
      %v2156 = vpack.c.bf16 %v2047, %v2047
      %v2157 = vpack.c.bf16 %v2049, %v2049
      %v2158 = vpack.c.bf16 %v2052, %v2052
      %v2159 = vpack.c.bf16 %v2054, %v2054
      %v2160 = vpack.c.bf16 %v2057, %v2057
      %v2161 = vpack.c.bf16 %v2059, %v2059
      %v2162 = vpack.c.bf16 %v2062, %v2062
      %v2163 = vpack.c.bf16 %v2064, %v2064
      %v2164 = vpack.c.bf16 %v2067, %v2067
      %v2165 = vpack.c.bf16 %v2069, %v2069
      %v2166 = vpack.c.bf16 %v2072, %v2072
      %v2167 = vpack.c.bf16 %v2074, %v2074
      %v2168 = vpack.c.bf16 %v2077, %v2077
      %v2169 = vpack.c.bf16 %v2079, %v2079
      %v2170 = vpack.c.bf16 %v2082, %v2082
      %v2171 = vpack.c.bf16 %v2084, %v2084
      %v2172 = vpack.c.bf16 %v2087, %v2087
      %v2173 = vpack.c.bf16 %v2089, %v2089
      %v2174 = vpack.c.bf16 %v2092, %v2092
      %v2175 = vpack.c.bf16 %v2094, %v2094
      %v2176 = vld [vmem:[%s4] sm:$0xf]
      %v2177 = vld [vmem:[%s4 + $0x4] sm:$0xf]
      %v2178 = vld [vmem:[%s4 + $0x8] sm:$0xf]
      %v2179 = vld [vmem:[%s4 + $0xc] sm:$0xf]
      %v2180 = vld [vmem:[%s4 + $0x10] sm:$0xf]
      %v2181 = vld [vmem:[%s4 + $0x14] sm:$0xf]
      %v2182 = vld [vmem:[%s4 + $0x18] sm:$0xf]
      %v2183 = vld [vmem:[%s4 + $0x1c] sm:$0xf]
      %v2184 = vld [vmem:[%s4 + $0x20] sm:$0xf]
      %v2185 = vld [vmem:[%s4 + $0x24] sm:$0xf]
      %v2186 = vld [vmem:[%s4 + $0x28] sm:$0xf]
      %v2187 = vld [vmem:[%s4 + $0x2c] sm:$0xf]
      %v2188 = vld [vmem:[%s4 + $0x30] sm:$0xf]
      %v2189 = vld [vmem:[%s4 + $0x34] sm:$0xf]
      %v2190 = vld [vmem:[%s4 + $0x38] sm:$0xf]
      %v2191 = vld [vmem:[%s4 + $0x3c] sm:$0xf]
      %s2192 = scalar_lea.vmem %s4, 64
      %v2193 = vld [vmem:[%s2192] sm:$0xf]
      %v2194 = vld [vmem:[%s2192 + $0x4] sm:$0xf]
      %v2195 = vld [vmem:[%s2192 + $0x8] sm:$0xf]
      %v2196 = vld [vmem:[%s2192 + $0xc] sm:$0xf]
      %v2197 = vld [vmem:[%s2192 + $0x10] sm:$0xf]
      %v2198 = vld [vmem:[%s2192 + $0x14] sm:$0xf]
      %v2199 = vld [vmem:[%s2192 + $0x18] sm:$0xf]
      %v2200 = vld [vmem:[%s2192 + $0x1c] sm:$0xf]
      %v2201 = vld [vmem:[%s2192 + $0x20] sm:$0xf]
      %v2202 = vld [vmem:[%s2192 + $0x24] sm:$0xf]
      %v2203 = vld [vmem:[%s2192 + $0x28] sm:$0xf]
      %v2204 = vld [vmem:[%s2192 + $0x2c] sm:$0xf]
      %v2205 = vld [vmem:[%s2192 + $0x30] sm:$0xf]
      %v2206 = vld [vmem:[%s2192 + $0x34] sm:$0xf]
      %v2207 = vld [vmem:[%s2192 + $0x38] sm:$0xf]
      %v2208 = vld [vmem:[%s2192 + $0x3c] sm:$0xf]
      %v2214 = vunpack.c.l.b16 %v2101
      %v2215 = vunpack.c.l.b16 %v2102
      %v2216 = vunpack.c.l.b16 %v2103
      %v2217 = vunpack.c.l.b16 %v2104
      %v2218 = vunpack.c.l.b16 %v2105
      %v2219 = vpack.c.b16 %v2215, %v2214
      %v2220 = vpack.c.b16 %v2217, %v2216
      %v2221 = vpack.c.b16 %v2218, %v2218
      %v2241 = vunpack.c.l.b16 %v2193
      %v2242 = vunpack.c.l.b16 %v2194
      %v2243 = vunpack.c.l.b16 %v2195
      %v2244 = vunpack.c.l.b16 %v2196
      %v2245 = vunpack.c.l.b16 %v2197
      %v2246 = vunpack.c.l.b16 %v2198
      %v2247 = vunpack.c.l.b16 %v2199
      %v2248 = vunpack.c.l.b16 %v2200
      %v2249 = vunpack.c.l.b16 %v2201
      %v2250 = vunpack.c.l.b16 %v2202
      %v2251 = vunpack.c.l.b16 %v2203
      %v2252 = vunpack.c.l.b16 %v2204
      %v2253 = vunpack.c.l.b16 %v2205
      %v2254 = vunpack.c.l.b16 %v2206
      %v2255 = vunpack.c.l.b16 %v2207
      %v2256 = vunpack.c.l.b16 %v2208
      %v2257 = vpack.c.b16 %v2242, %v2241
      %v2258 = vpack.c.b16 %v2244, %v2243
      %v2259 = vpack.c.b16 %v2246, %v2245
      %v2260 = vpack.c.b16 %v2248, %v2247
      %v2261 = vpack.c.b16 %v2250, %v2249
      %v2262 = vpack.c.b16 %v2252, %v2251
      %v2263 = vpack.c.b16 %v2254, %v2253
      %v2264 = vpack.c.b16 %v2256, %v2255
      %2273 = vmatpush.bf16.msra.mxu0 %v2264
      %2274 = vmatpush.bf16.msra.mxu0 %v2263
      %2275 = vmatpush.bf16.msra.mxu0 %v2262
      %2276 = vmatpush.bf16.msra.mxu0 %v2261
      %2277 = vmatpush.bf16.msra.mxu0 %v2260
      %2278 = vmatpush.bf16.msra.mxu0 %v2259
      %2279 = vmatpush.bf16.msra.mxu0 %v2258
      %2280 = vmatpush.bf16.msra.mxu0 %v2257
      %2281 = vmatmul.bf16.gmra.mxu0 %v2219
      %v2282 = vpop.f32.mrf.mxu0
      %v2283 = vadd.f32 0.0, %v2282
      %v2284 = vpop.f32.mrf.mxu0
      %v2285 = vadd.f32 0.0, %v2284
      %2286 = vmatmul.bf16.gmra.mxu0 %v2220
      %v2287 = vpop.f32.mrf.mxu0
      %v2288 = vadd.f32 0.0, %v2287
      %v2289 = vpop.f32.mrf.mxu0
      %v2290 = vadd.f32 0.0, %v2289
      %2291 = vmatmul.bf16.gmra.mxu0 %v2221
      %v2292 = vpop.f32.mrf.mxu0
      %v2293 = vadd.f32 0.0, %v2292
      %v2294 = vpop.f32.mrf.mxu0
      %2295 = vdwg.mxu0
      %v2301 = vunpack.c.l.b16 %v2096
      %v2302 = vunpack.c.l.b16 %v2097
      %v2303 = vunpack.c.l.b16 %v2098
      %v2304 = vunpack.c.l.b16 %v2099
      %v2305 = vunpack.c.l.b16 %v2100
      %v2306 = vpack.c.b16 %v2302, %v2301
      %v2307 = vpack.c.b16 %v2304, %v2303
      %v2308 = vpack.c.b16 %v2305, %v2305
      %v2328 = vunpack.c.l.b16 %v2176
      %v2329 = vunpack.c.l.b16 %v2177
      %v2330 = vunpack.c.l.b16 %v2178
      %v2331 = vunpack.c.l.b16 %v2179
      %v2332 = vunpack.c.l.b16 %v2180
      %v2333 = vunpack.c.l.b16 %v2181
      %v2334 = vunpack.c.l.b16 %v2182
      %v2335 = vunpack.c.l.b16 %v2183
      %v2336 = vunpack.c.l.b16 %v2184
      %v2337 = vunpack.c.l.b16 %v2185
      %v2338 = vunpack.c.l.b16 %v2186
      %v2339 = vunpack.c.l.b16 %v2187
      %v2340 = vunpack.c.l.b16 %v2188
      %v2341 = vunpack.c.l.b16 %v2189
      %v2342 = vunpack.c.l.b16 %v2190
      %v2343 = vunpack.c.l.b16 %v2191
      %v2344 = vpack.c.b16 %v2329, %v2328
      %v2345 = vpack.c.b16 %v2331, %v2330
      %v2346 = vpack.c.b16 %v2333, %v2332
      %v2347 = vpack.c.b16 %v2335, %v2334
      %v2348 = vpack.c.b16 %v2337, %v2336
      %v2349 = vpack.c.b16 %v2339, %v2338
      %v2350 = vpack.c.b16 %v2341, %v2340
      %v2351 = vpack.c.b16 %v2343, %v2342
      %2360 = vmatpush.bf16.msra.mxu0 %v2351
      %2361 = vmatpush.bf16.msra.mxu0 %v2350
      %2362 = vmatpush.bf16.msra.mxu0 %v2349
      %2363 = vmatpush.bf16.msra.mxu0 %v2348
      %2364 = vmatpush.bf16.msra.mxu0 %v2347
      %2365 = vmatpush.bf16.msra.mxu0 %v2346
      %2366 = vmatpush.bf16.msra.mxu0 %v2345
      %2367 = vmatpush.bf16.msra.mxu0 %v2344
      %2368 = vmatmul.bf16.gmra.mxu0 %v2306
      %v2369 = vpop.f32.mrf.mxu0
      %v2370 = vadd.f32 %v2283, %v2369
      %v2371 = vpop.f32.mrf.mxu0
      %v2372 = vadd.f32 %v2285, %v2371
      %2373 = vmatmul.bf16.gmra.mxu0 %v2307
      %v2374 = vpop.f32.mrf.mxu0
      %v2375 = vadd.f32 %v2288, %v2374
      %v2376 = vpop.f32.mrf.mxu0
      %v2377 = vadd.f32 %v2290, %v2376
      %2378 = vmatmul.bf16.gmra.mxu0 %v2308
      %v2379 = vpop.f32.mrf.mxu0
      %v2380 = vadd.f32 %v2293, %v2379
      %v2381 = vpop.f32.mrf.mxu0
      %2382 = vdwg.mxu0
      %s2383 = scalar_lea.vmem %s4, 128
      %v2384 = vld [vmem:[%s2383] sm:$0xf]
      %v2385 = vld [vmem:[%s2383 + $0x4] sm:$0xf]
      %v2386 = vld [vmem:[%s2383 + $0x8] sm:$0xf]
      %v2387 = vld [vmem:[%s2383 + $0xc] sm:$0xf]
      %v2388 = vld [vmem:[%s2383 + $0x10] sm:$0xf]
      %v2389 = vld [vmem:[%s2383 + $0x14] sm:$0xf]
      %v2390 = vld [vmem:[%s2383 + $0x18] sm:$0xf]
      %v2391 = vld [vmem:[%s2383 + $0x1c] sm:$0xf]
      %v2392 = vld [vmem:[%s2383 + $0x20] sm:$0xf]
      %v2393 = vld [vmem:[%s2383 + $0x24] sm:$0xf]
      %v2394 = vld [vmem:[%s2383 + $0x28] sm:$0xf]
      %v2395 = vld [vmem:[%s2383 + $0x2c] sm:$0xf]
      %v2396 = vld [vmem:[%s2383 + $0x30] sm:$0xf]
      %v2397 = vld [vmem:[%s2383 + $0x34] sm:$0xf]
      %v2398 = vld [vmem:[%s2383 + $0x38] sm:$0xf]
      %v2399 = vld [vmem:[%s2383 + $0x3c] sm:$0xf]
      %v2405 = vunpack.c.l.b16 %v2106
      %v2406 = vunpack.c.l.b16 %v2107
      %v2407 = vunpack.c.l.b16 %v2108
      %v2408 = vunpack.c.l.b16 %v2109
      %v2409 = vunpack.c.l.b16 %v2110
      %v2410 = vpack.c.b16 %v2406, %v2405
      %v2411 = vpack.c.b16 %v2408, %v2407
      %v2412 = vpack.c.b16 %v2409, %v2409
      %v2432 = vunpack.c.l.b16 %v2384
      %v2433 = vunpack.c.l.b16 %v2385
      %v2434 = vunpack.c.l.b16 %v2386
      %v2435 = vunpack.c.l.b16 %v2387
      %v2436 = vunpack.c.l.b16 %v2388
      %v2437 = vunpack.c.l.b16 %v2389
      %v2438 = vunpack.c.l.b16 %v2390
      %v2439 = vunpack.c.l.b16 %v2391
      %v2440 = vunpack.c.l.b16 %v2392
      %v2441 = vunpack.c.l.b16 %v2393
      %v2442 = vunpack.c.l.b16 %v2394
      %v2443 = vunpack.c.l.b16 %v2395
      %v2444 = vunpack.c.l.b16 %v2396
      %v2445 = vunpack.c.l.b16 %v2397
      %v2446 = vunpack.c.l.b16 %v2398
      %v2447 = vunpack.c.l.b16 %v2399
      %v2448 = vpack.c.b16 %v2433, %v2432
      %v2449 = vpack.c.b16 %v2435, %v2434
      %v2450 = vpack.c.b16 %v2437, %v2436
      %v2451 = vpack.c.b16 %v2439, %v2438
      %v2452 = vpack.c.b16 %v2441, %v2440
      %v2453 = vpack.c.b16 %v2443, %v2442
      %v2454 = vpack.c.b16 %v2445, %v2444
      %v2455 = vpack.c.b16 %v2447, %v2446
      %2464 = vmatpush.bf16.msra.mxu0 %v2455
      %2465 = vmatpush.bf16.msra.mxu0 %v2454
      %2466 = vmatpush.bf16.msra.mxu0 %v2453
      %2467 = vmatpush.bf16.msra.mxu0 %v2452
      %2468 = vmatpush.bf16.msra.mxu0 %v2451
      %2469 = vmatpush.bf16.msra.mxu0 %v2450
      %2470 = vmatpush.bf16.msra.mxu0 %v2449
      %2471 = vmatpush.bf16.msra.mxu0 %v2448
      %2472 = vmatmul.bf16.gmra.mxu0 %v2410
      %v2473 = vpop.f32.mrf.mxu0
      %v2474 = vadd.f32 0.0, %v2473
      %v2475 = vpop.f32.mrf.mxu0
      %v2476 = vadd.f32 0.0, %v2475
      %2477 = vmatmul.bf16.gmra.mxu0 %v2411
      %v2478 = vpop.f32.mrf.mxu0
      %v2479 = vadd.f32 0.0, %v2478
      %v2480 = vpop.f32.mrf.mxu0
      %v2481 = vadd.f32 0.0, %v2480
      %2482 = vmatmul.bf16.gmra.mxu0 %v2412
      %v2483 = vpop.f32.mrf.mxu0
      %v2484 = vadd.f32 0.0, %v2483
      %v2485 = vpop.f32.mrf.mxu0
      %2486 = vdwg.mxu0
      %v2487 = vadd.f32 %v2370, %v2474
      %v2488 = vadd.f32 %v2372, %v2476
      %v2489 = vadd.f32 %v2375, %v2479
      %v2490 = vadd.f32 %v2377, %v2481
      %v2491 = vadd.f32 %v2380, %v2484
      %s2492 = scalar_lea.vmem %s4, 192
      %v2493 = vld [vmem:[%s2492] sm:$0xf]
      %v2494 = vld [vmem:[%s2492 + $0x4] sm:$0xf]
      %v2495 = vld [vmem:[%s2492 + $0x8] sm:$0xf]
      %v2496 = vld [vmem:[%s2492 + $0xc] sm:$0xf]
      %v2497 = vld [vmem:[%s2492 + $0x10] sm:$0xf]
      %v2498 = vld [vmem:[%s2492 + $0x14] sm:$0xf]
      %v2499 = vld [vmem:[%s2492 + $0x18] sm:$0xf]
      %v2500 = vld [vmem:[%s2492 + $0x1c] sm:$0xf]
      %v2501 = vld [vmem:[%s2492 + $0x20] sm:$0xf]
      %v2502 = vld [vmem:[%s2492 + $0x24] sm:$0xf]
      %v2503 = vld [vmem:[%s2492 + $0x28] sm:$0xf]
      %v2504 = vld [vmem:[%s2492 + $0x2c] sm:$0xf]
      %v2505 = vld [vmem:[%s2492 + $0x30] sm:$0xf]
      %v2506 = vld [vmem:[%s2492 + $0x34] sm:$0xf]
      %v2507 = vld [vmem:[%s2492 + $0x38] sm:$0xf]
      %v2508 = vld [vmem:[%s2492 + $0x3c] sm:$0xf]
      %v2514 = vunpack.c.l.b16 %v2111
      %v2515 = vunpack.c.l.b16 %v2112
      %v2516 = vunpack.c.l.b16 %v2113
      %v2517 = vunpack.c.l.b16 %v2114
      %v2518 = vunpack.c.l.b16 %v2115
      %v2519 = vpack.c.b16 %v2515, %v2514
      %v2520 = vpack.c.b16 %v2517, %v2516
      %v2521 = vpack.c.b16 %v2518, %v2518
      %v2541 = vunpack.c.l.b16 %v2493
      %v2542 = vunpack.c.l.b16 %v2494
      %v2543 = vunpack.c.l.b16 %v2495
      %v2544 = vunpack.c.l.b16 %v2496
      %v2545 = vunpack.c.l.b16 %v2497
      %v2546 = vunpack.c.l.b16 %v2498
      %v2547 = vunpack.c.l.b16 %v2499
      %v2548 = vunpack.c.l.b16 %v2500
      %v2549 = vunpack.c.l.b16 %v2501
      %v2550 = vunpack.c.l.b16 %v2502
      %v2551 = vunpack.c.l.b16 %v2503
      %v2552 = vunpack.c.l.b16 %v2504
      %v2553 = vunpack.c.l.b16 %v2505
      %v2554 = vunpack.c.l.b16 %v2506
      %v2555 = vunpack.c.l.b16 %v2507
      %v2556 = vunpack.c.l.b16 %v2508
      %v2557 = vpack.c.b16 %v2542, %v2541
      %v2558 = vpack.c.b16 %v2544, %v2543
      %v2559 = vpack.c.b16 %v2546, %v2545
      %v2560 = vpack.c.b16 %v2548, %v2547
      %v2561 = vpack.c.b16 %v2550, %v2549
      %v2562 = vpack.c.b16 %v2552, %v2551
      %v2563 = vpack.c.b16 %v2554, %v2553
      %v2564 = vpack.c.b16 %v2556, %v2555
      %2573 = vmatpush.bf16.msra.mxu0 %v2564
      %2574 = vmatpush.bf16.msra.mxu0 %v2563
      %2575 = vmatpush.bf16.msra.mxu0 %v2562
      %2576 = vmatpush.bf16.msra.mxu0 %v2561
      %2577 = vmatpush.bf16.msra.mxu0 %v2560
      %2578 = vmatpush.bf16.msra.mxu0 %v2559
      %2579 = vmatpush.bf16.msra.mxu0 %v2558
      %2580 = vmatpush.bf16.msra.mxu0 %v2557
      %2581 = vmatmul.bf16.gmra.mxu0 %v2519
      %v2582 = vpop.f32.mrf.mxu0
      %v2583 = vadd.f32 0.0, %v2582
      %v2584 = vpop.f32.mrf.mxu0
      %v2585 = vadd.f32 0.0, %v2584
      %2586 = vmatmul.bf16.gmra.mxu0 %v2520
      %v2587 = vpop.f32.mrf.mxu0
      %v2588 = vadd.f32 0.0, %v2587
      %v2589 = vpop.f32.mrf.mxu0
      %v2590 = vadd.f32 0.0, %v2589
      %2591 = vmatmul.bf16.gmra.mxu0 %v2521
      %v2592 = vpop.f32.mrf.mxu0
      %v2593 = vadd.f32 0.0, %v2592
      %v2594 = vpop.f32.mrf.mxu0
      %2595 = vdwg.mxu0
      %v2596 = vadd.f32 %v2487, %v2583
      %v2597 = vadd.f32 %v2488, %v2585
      %v2598 = vadd.f32 %v2489, %v2588
      %v2599 = vadd.f32 %v2490, %v2590
      %v2600 = vadd.f32 %v2491, %v2593
      %s2601 = scalar_lea.vmem %s4, 256
      %v2602 = vld [vmem:[%s2601] sm:$0xf]
      %v2603 = vld [vmem:[%s2601 + $0x4] sm:$0xf]
      %v2604 = vld [vmem:[%s2601 + $0x8] sm:$0xf]
      %v2605 = vld [vmem:[%s2601 + $0xc] sm:$0xf]
      %v2606 = vld [vmem:[%s2601 + $0x10] sm:$0xf]
      %v2607 = vld [vmem:[%s2601 + $0x14] sm:$0xf]
      %v2608 = vld [vmem:[%s2601 + $0x18] sm:$0xf]
      %v2609 = vld [vmem:[%s2601 + $0x1c] sm:$0xf]
      %v2610 = vld [vmem:[%s2601 + $0x20] sm:$0xf]
      %v2611 = vld [vmem:[%s2601 + $0x24] sm:$0xf]
      %v2612 = vld [vmem:[%s2601 + $0x28] sm:$0xf]
      %v2613 = vld [vmem:[%s2601 + $0x2c] sm:$0xf]
      %v2614 = vld [vmem:[%s2601 + $0x30] sm:$0xf]
      %v2615 = vld [vmem:[%s2601 + $0x34] sm:$0xf]
      %v2616 = vld [vmem:[%s2601 + $0x38] sm:$0xf]
      %v2617 = vld [vmem:[%s2601 + $0x3c] sm:$0xf]
      %v2623 = vunpack.c.l.b16 %v2116
      %v2624 = vunpack.c.l.b16 %v2117
      %v2625 = vunpack.c.l.b16 %v2118
      %v2626 = vunpack.c.l.b16 %v2119
      %v2627 = vunpack.c.l.b16 %v2120
      %v2628 = vpack.c.b16 %v2624, %v2623
      %v2629 = vpack.c.b16 %v2626, %v2625
      %v2630 = vpack.c.b16 %v2627, %v2627
      %v2650 = vunpack.c.l.b16 %v2602
      %v2651 = vunpack.c.l.b16 %v2603
      %v2652 = vunpack.c.l.b16 %v2604
      %v2653 = vunpack.c.l.b16 %v2605
      %v2654 = vunpack.c.l.b16 %v2606
      %v2655 = vunpack.c.l.b16 %v2607
      %v2656 = vunpack.c.l.b16 %v2608
      %v2657 = vunpack.c.l.b16 %v2609
      %v2658 = vunpack.c.l.b16 %v2610
      %v2659 = vunpack.c.l.b16 %v2611
      %v2660 = vunpack.c.l.b16 %v2612
      %v2661 = vunpack.c.l.b16 %v2613
      %v2662 = vunpack.c.l.b16 %v2614
      %v2663 = vunpack.c.l.b16 %v2615
      %v2664 = vunpack.c.l.b16 %v2616
      %v2665 = vunpack.c.l.b16 %v2617
      %v2666 = vpack.c.b16 %v2651, %v2650
      %v2667 = vpack.c.b16 %v2653, %v2652
      %v2668 = vpack.c.b16 %v2655, %v2654
      %v2669 = vpack.c.b16 %v2657, %v2656
      %v2670 = vpack.c.b16 %v2659, %v2658
      %v2671 = vpack.c.b16 %v2661, %v2660
      %v2672 = vpack.c.b16 %v2663, %v2662
      %v2673 = vpack.c.b16 %v2665, %v2664
      %2682 = vmatpush.bf16.msra.mxu0 %v2673
      %2683 = vmatpush.bf16.msra.mxu0 %v2672
      %2684 = vmatpush.bf16.msra.mxu0 %v2671
      %2685 = vmatpush.bf16.msra.mxu0 %v2670
      %2686 = vmatpush.bf16.msra.mxu0 %v2669
      %2687 = vmatpush.bf16.msra.mxu0 %v2668
      %2688 = vmatpush.bf16.msra.mxu0 %v2667
      %2689 = vmatpush.bf16.msra.mxu0 %v2666
      %2690 = vmatmul.bf16.gmra.mxu0 %v2628
      %v2691 = vpop.f32.mrf.mxu0
      %v2692 = vadd.f32 0.0, %v2691
      %v2693 = vpop.f32.mrf.mxu0
      %v2694 = vadd.f32 0.0, %v2693
      %2695 = vmatmul.bf16.gmra.mxu0 %v2629
      %v2696 = vpop.f32.mrf.mxu0
      %v2697 = vadd.f32 0.0, %v2696
      %v2698 = vpop.f32.mrf.mxu0
      %v2699 = vadd.f32 0.0, %v2698
      %2700 = vmatmul.bf16.gmra.mxu0 %v2630
      %v2701 = vpop.f32.mrf.mxu0
      %v2702 = vadd.f32 0.0, %v2701
      %v2703 = vpop.f32.mrf.mxu0
      %2704 = vdwg.mxu0
      %v2705 = vadd.f32 %v2596, %v2692
      %v2706 = vadd.f32 %v2597, %v2694
      %v2707 = vadd.f32 %v2598, %v2697
      %v2708 = vadd.f32 %v2599, %v2699
      %v2709 = vadd.f32 %v2600, %v2702
      %s2710 = scalar_lea.vmem %s4, 320
      %v2711 = vld [vmem:[%s2710] sm:$0xf]
      %v2712 = vld [vmem:[%s2710 + $0x4] sm:$0xf]
      %v2713 = vld [vmem:[%s2710 + $0x8] sm:$0xf]
      %v2714 = vld [vmem:[%s2710 + $0xc] sm:$0xf]
      %v2715 = vld [vmem:[%s2710 + $0x10] sm:$0xf]
      %v2716 = vld [vmem:[%s2710 + $0x14] sm:$0xf]
      %v2717 = vld [vmem:[%s2710 + $0x18] sm:$0xf]
      %v2718 = vld [vmem:[%s2710 + $0x1c] sm:$0xf]
      %v2719 = vld [vmem:[%s2710 + $0x20] sm:$0xf]
      %v2720 = vld [vmem:[%s2710 + $0x24] sm:$0xf]
      %v2721 = vld [vmem:[%s2710 + $0x28] sm:$0xf]
      %v2722 = vld [vmem:[%s2710 + $0x2c] sm:$0xf]
      %v2723 = vld [vmem:[%s2710 + $0x30] sm:$0xf]
      %v2724 = vld [vmem:[%s2710 + $0x34] sm:$0xf]
      %v2725 = vld [vmem:[%s2710 + $0x38] sm:$0xf]
      %v2726 = vld [vmem:[%s2710 + $0x3c] sm:$0xf]
      %v2732 = vunpack.c.l.b16 %v2121
      %v2733 = vunpack.c.l.b16 %v2122
      %v2734 = vunpack.c.l.b16 %v2123
      %v2735 = vunpack.c.l.b16 %v2124
      %v2736 = vunpack.c.l.b16 %v2125
      %v2737 = vpack.c.b16 %v2733, %v2732
      %v2738 = vpack.c.b16 %v2735, %v2734
      %v2739 = vpack.c.b16 %v2736, %v2736
      %v2759 = vunpack.c.l.b16 %v2711
      %v2760 = vunpack.c.l.b16 %v2712
      %v2761 = vunpack.c.l.b16 %v2713
      %v2762 = vunpack.c.l.b16 %v2714
      %v2763 = vunpack.c.l.b16 %v2715
      %v2764 = vunpack.c.l.b16 %v2716
      %v2765 = vunpack.c.l.b16 %v2717
      %v2766 = vunpack.c.l.b16 %v2718
      %v2767 = vunpack.c.l.b16 %v2719
      %v2768 = vunpack.c.l.b16 %v2720
      %v2769 = vunpack.c.l.b16 %v2721
      %v2770 = vunpack.c.l.b16 %v2722
      %v2771 = vunpack.c.l.b16 %v2723
      %v2772 = vunpack.c.l.b16 %v2724
      %v2773 = vunpack.c.l.b16 %v2725
      %v2774 = vunpack.c.l.b16 %v2726
      %v2775 = vpack.c.b16 %v2760, %v2759
      %v2776 = vpack.c.b16 %v2762, %v2761
      %v2777 = vpack.c.b16 %v2764, %v2763
      %v2778 = vpack.c.b16 %v2766, %v2765
      %v2779 = vpack.c.b16 %v2768, %v2767
      %v2780 = vpack.c.b16 %v2770, %v2769
      %v2781 = vpack.c.b16 %v2772, %v2771
      %v2782 = vpack.c.b16 %v2774, %v2773
      %2791 = vmatpush.bf16.msra.mxu0 %v2782
      %2792 = vmatpush.bf16.msra.mxu0 %v2781
      %2793 = vmatpush.bf16.msra.mxu0 %v2780
      %2794 = vmatpush.bf16.msra.mxu0 %v2779
      %2795 = vmatpush.bf16.msra.mxu0 %v2778
      %2796 = vmatpush.bf16.msra.mxu0 %v2777
      %2797 = vmatpush.bf16.msra.mxu0 %v2776
      %2798 = vmatpush.bf16.msra.mxu0 %v2775
      %2799 = vmatmul.bf16.gmra.mxu0 %v2737
      %v2800 = vpop.f32.mrf.mxu0
      %v2801 = vadd.f32 0.0, %v2800
      %v2802 = vpop.f32.mrf.mxu0
      %v2803 = vadd.f32 0.0, %v2802
      %2804 = vmatmul.bf16.gmra.mxu0 %v2738
      %v2805 = vpop.f32.mrf.mxu0
      %v2806 = vadd.f32 0.0, %v2805
      %v2807 = vpop.f32.mrf.mxu0
      %v2808 = vadd.f32 0.0, %v2807
      %2809 = vmatmul.bf16.gmra.mxu0 %v2739
      %v2810 = vpop.f32.mrf.mxu0
      %v2811 = vadd.f32 0.0, %v2810
      %v2812 = vpop.f32.mrf.mxu0
      %2813 = vdwg.mxu0
      %v2814 = vadd.f32 %v2705, %v2801
      %v2815 = vadd.f32 %v2706, %v2803
      %v2816 = vadd.f32 %v2707, %v2806
      %v2817 = vadd.f32 %v2708, %v2808
      %v2818 = vadd.f32 %v2709, %v2811
      %s2819 = scalar_lea.vmem %s4, 384
      %v2820 = vld [vmem:[%s2819] sm:$0xf]
      %v2821 = vld [vmem:[%s2819 + $0x4] sm:$0xf]
      %v2822 = vld [vmem:[%s2819 + $0x8] sm:$0xf]
      %v2823 = vld [vmem:[%s2819 + $0xc] sm:$0xf]
      %v2824 = vld [vmem:[%s2819 + $0x10] sm:$0xf]
      %v2825 = vld [vmem:[%s2819 + $0x14] sm:$0xf]
      %v2826 = vld [vmem:[%s2819 + $0x18] sm:$0xf]
      %v2827 = vld [vmem:[%s2819 + $0x1c] sm:$0xf]
      %v2828 = vld [vmem:[%s2819 + $0x20] sm:$0xf]
      %v2829 = vld [vmem:[%s2819 + $0x24] sm:$0xf]
      %v2830 = vld [vmem:[%s2819 + $0x28] sm:$0xf]
      %v2831 = vld [vmem:[%s2819 + $0x2c] sm:$0xf]
      %v2832 = vld [vmem:[%s2819 + $0x30] sm:$0xf]
      %v2833 = vld [vmem:[%s2819 + $0x34] sm:$0xf]
      %v2834 = vld [vmem:[%s2819 + $0x38] sm:$0xf]
      %v2835 = vld [vmem:[%s2819 + $0x3c] sm:$0xf]
      %v2841 = vunpack.c.l.b16 %v2126
      %v2842 = vunpack.c.l.b16 %v2127
      %v2843 = vunpack.c.l.b16 %v2128
      %v2844 = vunpack.c.l.b16 %v2129
      %v2845 = vunpack.c.l.b16 %v2130
      %v2846 = vpack.c.b16 %v2842, %v2841
      %v2847 = vpack.c.b16 %v2844, %v2843
      %v2848 = vpack.c.b16 %v2845, %v2845
      %v2868 = vunpack.c.l.b16 %v2820
      %v2869 = vunpack.c.l.b16 %v2821
      %v2870 = vunpack.c.l.b16 %v2822
      %v2871 = vunpack.c.l.b16 %v2823
      %v2872 = vunpack.c.l.b16 %v2824
      %v2873 = vunpack.c.l.b16 %v2825
      %v2874 = vunpack.c.l.b16 %v2826
      %v2875 = vunpack.c.l.b16 %v2827
      %v2876 = vunpack.c.l.b16 %v2828
      %v2877 = vunpack.c.l.b16 %v2829
      %v2878 = vunpack.c.l.b16 %v2830
      %v2879 = vunpack.c.l.b16 %v2831
      %v2880 = vunpack.c.l.b16 %v2832
      %v2881 = vunpack.c.l.b16 %v2833
      %v2882 = vunpack.c.l.b16 %v2834
      %v2883 = vunpack.c.l.b16 %v2835
      %v2884 = vpack.c.b16 %v2869, %v2868
      %v2885 = vpack.c.b16 %v2871, %v2870
      %v2886 = vpack.c.b16 %v2873, %v2872
      %v2887 = vpack.c.b16 %v2875, %v2874
      %v2888 = vpack.c.b16 %v2877, %v2876
      %v2889 = vpack.c.b16 %v2879, %v2878
      %v2890 = vpack.c.b16 %v2881, %v2880
      %v2891 = vpack.c.b16 %v2883, %v2882
      %2900 = vmatpush.bf16.msra.mxu0 %v2891
      %2901 = vmatpush.bf16.msra.mxu0 %v2890
      %2902 = vmatpush.bf16.msra.mxu0 %v2889
      %2903 = vmatpush.bf16.msra.mxu0 %v2888
      %2904 = vmatpush.bf16.msra.mxu0 %v2887
      %2905 = vmatpush.bf16.msra.mxu0 %v2886
      %2906 = vmatpush.bf16.msra.mxu0 %v2885
      %2907 = vmatpush.bf16.msra.mxu0 %v2884
      %2908 = vmatmul.bf16.gmra.mxu0 %v2846
      %v2909 = vpop.f32.mrf.mxu0
      %v2910 = vadd.f32 0.0, %v2909
      %v2911 = vpop.f32.mrf.mxu0
      %v2912 = vadd.f32 0.0, %v2911
      %2913 = vmatmul.bf16.gmra.mxu0 %v2847
      %v2914 = vpop.f32.mrf.mxu0
      %v2915 = vadd.f32 0.0, %v2914
      %v2916 = vpop.f32.mrf.mxu0
      %v2917 = vadd.f32 0.0, %v2916
      %2918 = vmatmul.bf16.gmra.mxu0 %v2848
      %v2919 = vpop.f32.mrf.mxu0
      %v2920 = vadd.f32 0.0, %v2919
      %v2921 = vpop.f32.mrf.mxu0
      %2922 = vdwg.mxu0
      %v2923 = vadd.f32 %v2814, %v2910
      %v2924 = vadd.f32 %v2815, %v2912
      %v2925 = vadd.f32 %v2816, %v2915
      %v2926 = vadd.f32 %v2817, %v2917
      %v2927 = vadd.f32 %v2818, %v2920
      %s2928 = scalar_lea.vmem %s4, 448
      %v2929 = vld [vmem:[%s2928] sm:$0xf]
      %v2930 = vld [vmem:[%s2928 + $0x4] sm:$0xf]
      %v2931 = vld [vmem:[%s2928 + $0x8] sm:$0xf]
      %v2932 = vld [vmem:[%s2928 + $0xc] sm:$0xf]
      %v2933 = vld [vmem:[%s2928 + $0x10] sm:$0xf]
      %v2934 = vld [vmem:[%s2928 + $0x14] sm:$0xf]
      %v2935 = vld [vmem:[%s2928 + $0x18] sm:$0xf]
      %v2936 = vld [vmem:[%s2928 + $0x1c] sm:$0xf]
      %v2937 = vld [vmem:[%s2928 + $0x20] sm:$0xf]
      %v2938 = vld [vmem:[%s2928 + $0x24] sm:$0xf]
      %v2939 = vld [vmem:[%s2928 + $0x28] sm:$0xf]
      %v2940 = vld [vmem:[%s2928 + $0x2c] sm:$0xf]
      %v2941 = vld [vmem:[%s2928 + $0x30] sm:$0xf]
      %v2942 = vld [vmem:[%s2928 + $0x34] sm:$0xf]
      %v2943 = vld [vmem:[%s2928 + $0x38] sm:$0xf]
      %v2944 = vld [vmem:[%s2928 + $0x3c] sm:$0xf]
      %v2950 = vunpack.c.l.b16 %v2131
      %v2951 = vunpack.c.l.b16 %v2132
      %v2952 = vunpack.c.l.b16 %v2133
      %v2953 = vunpack.c.l.b16 %v2134
      %v2954 = vunpack.c.l.b16 %v2135
      %v2955 = vpack.c.b16 %v2951, %v2950
      %v2956 = vpack.c.b16 %v2953, %v2952
      %v2957 = vpack.c.b16 %v2954, %v2954
      %v2977 = vunpack.c.l.b16 %v2929
      %v2978 = vunpack.c.l.b16 %v2930
      %v2979 = vunpack.c.l.b16 %v2931
      %v2980 = vunpack.c.l.b16 %v2932
      %v2981 = vunpack.c.l.b16 %v2933
      %v2982 = vunpack.c.l.b16 %v2934
      %v2983 = vunpack.c.l.b16 %v2935
      %v2984 = vunpack.c.l.b16 %v2936
      %v2985 = vunpack.c.l.b16 %v2937
      %v2986 = vunpack.c.l.b16 %v2938
      %v2987 = vunpack.c.l.b16 %v2939
      %v2988 = vunpack.c.l.b16 %v2940
      %v2989 = vunpack.c.l.b16 %v2941
      %v2990 = vunpack.c.l.b16 %v2942
      %v2991 = vunpack.c.l.b16 %v2943
      %v2992 = vunpack.c.l.b16 %v2944
      %v2993 = vpack.c.b16 %v2978, %v2977
      %v2994 = vpack.c.b16 %v2980, %v2979
      %v2995 = vpack.c.b16 %v2982, %v2981
      %v2996 = vpack.c.b16 %v2984, %v2983
      %v2997 = vpack.c.b16 %v2986, %v2985
      %v2998 = vpack.c.b16 %v2988, %v2987
      %v2999 = vpack.c.b16 %v2990, %v2989
      %v3000 = vpack.c.b16 %v2992, %v2991
      %3009 = vmatpush.bf16.msra.mxu0 %v3000
      %3010 = vmatpush.bf16.msra.mxu0 %v2999
      %3011 = vmatpush.bf16.msra.mxu0 %v2998
      %3012 = vmatpush.bf16.msra.mxu0 %v2997
      %3013 = vmatpush.bf16.msra.mxu0 %v2996
      %3014 = vmatpush.bf16.msra.mxu0 %v2995
      %3015 = vmatpush.bf16.msra.mxu0 %v2994
      %3016 = vmatpush.bf16.msra.mxu0 %v2993
      %3017 = vmatmul.bf16.gmra.mxu0 %v2955
      %v3018 = vpop.f32.mrf.mxu0
      %v3019 = vadd.f32 0.0, %v3018
      %v3020 = vpop.f32.mrf.mxu0
      %v3021 = vadd.f32 0.0, %v3020
      %3022 = vmatmul.bf16.gmra.mxu0 %v2956
      %v3023 = vpop.f32.mrf.mxu0
      %v3024 = vadd.f32 0.0, %v3023
      %v3025 = vpop.f32.mrf.mxu0
      %v3026 = vadd.f32 0.0, %v3025
      %3027 = vmatmul.bf16.gmra.mxu0 %v2957
      %v3028 = vpop.f32.mrf.mxu0
      %v3029 = vadd.f32 0.0, %v3028
      %v3030 = vpop.f32.mrf.mxu0
      %3031 = vdwg.mxu0
      %v3032 = vadd.f32 %v2923, %v3019
      %v3033 = vadd.f32 %v2924, %v3021
      %v3034 = vadd.f32 %v2925, %v3024
      %v3035 = vadd.f32 %v2926, %v3026
      %v3036 = vadd.f32 %v2927, %v3029
      %s3037 = scalar_lea.vmem %s4, 512
      %v3038 = vld [vmem:[%s3037] sm:$0xf]
      %v3039 = vld [vmem:[%s3037 + $0x4] sm:$0xf]
      %v3040 = vld [vmem:[%s3037 + $0x8] sm:$0xf]
      %v3041 = vld [vmem:[%s3037 + $0xc] sm:$0xf]
      %v3042 = vld [vmem:[%s3037 + $0x10] sm:$0xf]
      %v3043 = vld [vmem:[%s3037 + $0x14] sm:$0xf]
      %v3044 = vld [vmem:[%s3037 + $0x18] sm:$0xf]
      %v3045 = vld [vmem:[%s3037 + $0x1c] sm:$0xf]
      %v3046 = vld [vmem:[%s3037 + $0x20] sm:$0xf]
      %v3047 = vld [vmem:[%s3037 + $0x24] sm:$0xf]
      %v3048 = vld [vmem:[%s3037 + $0x28] sm:$0xf]
      %v3049 = vld [vmem:[%s3037 + $0x2c] sm:$0xf]
      %v3050 = vld [vmem:[%s3037 + $0x30] sm:$0xf]
      %v3051 = vld [vmem:[%s3037 + $0x34] sm:$0xf]
      %v3052 = vld [vmem:[%s3037 + $0x38] sm:$0xf]
      %v3053 = vld [vmem:[%s3037 + $0x3c] sm:$0xf]
      %v3059 = vunpack.c.l.b16 %v2136
      %v3060 = vunpack.c.l.b16 %v2137
      %v3061 = vunpack.c.l.b16 %v2138
      %v3062 = vunpack.c.l.b16 %v2139
      %v3063 = vunpack.c.l.b16 %v2140
      %v3064 = vpack.c.b16 %v3060, %v3059
      %v3065 = vpack.c.b16 %v3062, %v3061
      %v3066 = vpack.c.b16 %v3063, %v3063
      %v3086 = vunpack.c.l.b16 %v3038
      %v3087 = vunpack.c.l.b16 %v3039
      %v3088 = vunpack.c.l.b16 %v3040
      %v3089 = vunpack.c.l.b16 %v3041
      %v3090 = vunpack.c.l.b16 %v3042
      %v3091 = vunpack.c.l.b16 %v3043
      %v3092 = vunpack.c.l.b16 %v3044
      %v3093 = vunpack.c.l.b16 %v3045
      %v3094 = vunpack.c.l.b16 %v3046
      %v3095 = vunpack.c.l.b16 %v3047
      %v3096 = vunpack.c.l.b16 %v3048
      %v3097 = vunpack.c.l.b16 %v3049
      %v3098 = vunpack.c.l.b16 %v3050
      %v3099 = vunpack.c.l.b16 %v3051
      %v3100 = vunpack.c.l.b16 %v3052
      %v3101 = vunpack.c.l.b16 %v3053
      %v3102 = vpack.c.b16 %v3087, %v3086
      %v3103 = vpack.c.b16 %v3089, %v3088
      %v3104 = vpack.c.b16 %v3091, %v3090
      %v3105 = vpack.c.b16 %v3093, %v3092
      %v3106 = vpack.c.b16 %v3095, %v3094
      %v3107 = vpack.c.b16 %v3097, %v3096
      %v3108 = vpack.c.b16 %v3099, %v3098
      %v3109 = vpack.c.b16 %v3101, %v3100
      %3118 = vmatpush.bf16.msra.mxu0 %v3109
      %3119 = vmatpush.bf16.msra.mxu0 %v3108
      %3120 = vmatpush.bf16.msra.mxu0 %v3107
      %3121 = vmatpush.bf16.msra.mxu0 %v3106
      %3122 = vmatpush.bf16.msra.mxu0 %v3105
      %3123 = vmatpush.bf16.msra.mxu0 %v3104
      %3124 = vmatpush.bf16.msra.mxu0 %v3103
      %3125 = vmatpush.bf16.msra.mxu0 %v3102
      %3126 = vmatmul.bf16.gmra.mxu0 %v3064
      %v3127 = vpop.f32.mrf.mxu0
      %v3128 = vadd.f32 0.0, %v3127
      %v3129 = vpop.f32.mrf.mxu0
      %v3130 = vadd.f32 0.0, %v3129
      %3131 = vmatmul.bf16.gmra.mxu0 %v3065
      %v3132 = vpop.f32.mrf.mxu0
      %v3133 = vadd.f32 0.0, %v3132
      %v3134 = vpop.f32.mrf.mxu0
      %v3135 = vadd.f32 0.0, %v3134
      %3136 = vmatmul.bf16.gmra.mxu0 %v3066
      %v3137 = vpop.f32.mrf.mxu0
      %v3138 = vadd.f32 0.0, %v3137
      %v3139 = vpop.f32.mrf.mxu0
      %3140 = vdwg.mxu0
      %v3141 = vadd.f32 %v3032, %v3128
      %v3142 = vadd.f32 %v3033, %v3130
      %v3143 = vadd.f32 %v3034, %v3133
      %v3144 = vadd.f32 %v3035, %v3135
      %v3145 = vadd.f32 %v3036, %v3138
      %s3146 = scalar_lea.vmem %s4, 576
      %v3147 = vld [vmem:[%s3146] sm:$0xf]
      %v3148 = vld [vmem:[%s3146 + $0x4] sm:$0xf]
      %v3149 = vld [vmem:[%s3146 + $0x8] sm:$0xf]
      %v3150 = vld [vmem:[%s3146 + $0xc] sm:$0xf]
      %v3151 = vld [vmem:[%s3146 + $0x10] sm:$0xf]
      %v3152 = vld [vmem:[%s3146 + $0x14] sm:$0xf]
      %v3153 = vld [vmem:[%s3146 + $0x18] sm:$0xf]
      %v3154 = vld [vmem:[%s3146 + $0x1c] sm:$0xf]
      %v3155 = vld [vmem:[%s3146 + $0x20] sm:$0xf]
      %v3156 = vld [vmem:[%s3146 + $0x24] sm:$0xf]
      %v3157 = vld [vmem:[%s3146 + $0x28] sm:$0xf]
      %v3158 = vld [vmem:[%s3146 + $0x2c] sm:$0xf]
      %v3159 = vld [vmem:[%s3146 + $0x30] sm:$0xf]
      %v3160 = vld [vmem:[%s3146 + $0x34] sm:$0xf]
      %v3161 = vld [vmem:[%s3146 + $0x38] sm:$0xf]
      %v3162 = vld [vmem:[%s3146 + $0x3c] sm:$0xf]
      %v3168 = vunpack.c.l.b16 %v2141
      %v3169 = vunpack.c.l.b16 %v2142
      %v3170 = vunpack.c.l.b16 %v2143
      %v3171 = vunpack.c.l.b16 %v2144
      %v3172 = vunpack.c.l.b16 %v2145
      %v3173 = vpack.c.b16 %v3169, %v3168
      %v3174 = vpack.c.b16 %v3171, %v3170
      %v3175 = vpack.c.b16 %v3172, %v3172
      %v3195 = vunpack.c.l.b16 %v3147
      %v3196 = vunpack.c.l.b16 %v3148
      %v3197 = vunpack.c.l.b16 %v3149
      %v3198 = vunpack.c.l.b16 %v3150
      %v3199 = vunpack.c.l.b16 %v3151
      %v3200 = vunpack.c.l.b16 %v3152
      %v3201 = vunpack.c.l.b16 %v3153
      %v3202 = vunpack.c.l.b16 %v3154
      %v3203 = vunpack.c.l.b16 %v3155
      %v3204 = vunpack.c.l.b16 %v3156
      %v3205 = vunpack.c.l.b16 %v3157
      %v3206 = vunpack.c.l.b16 %v3158
      %v3207 = vunpack.c.l.b16 %v3159
      %v3208 = vunpack.c.l.b16 %v3160
      %v3209 = vunpack.c.l.b16 %v3161
      %v3210 = vunpack.c.l.b16 %v3162
      %v3211 = vpack.c.b16 %v3196, %v3195
      %v3212 = vpack.c.b16 %v3198, %v3197
      %v3213 = vpack.c.b16 %v3200, %v3199
      %v3214 = vpack.c.b16 %v3202, %v3201
      %v3215 = vpack.c.b16 %v3204, %v3203
      %v3216 = vpack.c.b16 %v3206, %v3205
      %v3217 = vpack.c.b16 %v3208, %v3207
      %v3218 = vpack.c.b16 %v3210, %v3209
      %3227 = vmatpush.bf16.msra.mxu0 %v3218
      %3228 = vmatpush.bf16.msra.mxu0 %v3217
      %3229 = vmatpush.bf16.msra.mxu0 %v3216
      %3230 = vmatpush.bf16.msra.mxu0 %v3215
      %3231 = vmatpush.bf16.msra.mxu0 %v3214
      %3232 = vmatpush.bf16.msra.mxu0 %v3213
      %3233 = vmatpush.bf16.msra.mxu0 %v3212
      %3234 = vmatpush.bf16.msra.mxu0 %v3211
      %3235 = vmatmul.bf16.gmra.mxu0 %v3173
      %v3236 = vpop.f32.mrf.mxu0
      %v3237 = vadd.f32 0.0, %v3236
      %v3238 = vpop.f32.mrf.mxu0
      %v3239 = vadd.f32 0.0, %v3238
      %3240 = vmatmul.bf16.gmra.mxu0 %v3174
      %v3241 = vpop.f32.mrf.mxu0
      %v3242 = vadd.f32 0.0, %v3241
      %v3243 = vpop.f32.mrf.mxu0
      %v3244 = vadd.f32 0.0, %v3243
      %3245 = vmatmul.bf16.gmra.mxu0 %v3175
      %v3246 = vpop.f32.mrf.mxu0
      %v3247 = vadd.f32 0.0, %v3246
      %v3248 = vpop.f32.mrf.mxu0
      %3249 = vdwg.mxu0
      %v3250 = vadd.f32 %v3141, %v3237
      %v3251 = vadd.f32 %v3142, %v3239
      %v3252 = vadd.f32 %v3143, %v3242
      %v3253 = vadd.f32 %v3144, %v3244
      %v3254 = vadd.f32 %v3145, %v3247
      %s3255 = scalar_lea.vmem %s4, 640
      %v3256 = vld [vmem:[%s3255] sm:$0xf]
      %v3257 = vld [vmem:[%s3255 + $0x4] sm:$0xf]
      %v3258 = vld [vmem:[%s3255 + $0x8] sm:$0xf]
      %v3259 = vld [vmem:[%s3255 + $0xc] sm:$0xf]
      %v3260 = vld [vmem:[%s3255 + $0x10] sm:$0xf]
      %v3261 = vld [vmem:[%s3255 + $0x14] sm:$0xf]
      %v3262 = vld [vmem:[%s3255 + $0x18] sm:$0xf]
      %v3263 = vld [vmem:[%s3255 + $0x1c] sm:$0xf]
      %v3264 = vld [vmem:[%s3255 + $0x20] sm:$0xf]
      %v3265 = vld [vmem:[%s3255 + $0x24] sm:$0xf]
      %v3266 = vld [vmem:[%s3255 + $0x28] sm:$0xf]
      %v3267 = vld [vmem:[%s3255 + $0x2c] sm:$0xf]
      %v3268 = vld [vmem:[%s3255 + $0x30] sm:$0xf]
      %v3269 = vld [vmem:[%s3255 + $0x34] sm:$0xf]
      %v3270 = vld [vmem:[%s3255 + $0x38] sm:$0xf]
      %v3271 = vld [vmem:[%s3255 + $0x3c] sm:$0xf]
      %v3277 = vunpack.c.l.b16 %v2146
      %v3278 = vunpack.c.l.b16 %v2147
      %v3279 = vunpack.c.l.b16 %v2148
      %v3280 = vunpack.c.l.b16 %v2149
      %v3281 = vunpack.c.l.b16 %v2150
      %v3282 = vpack.c.b16 %v3278, %v3277
      %v3283 = vpack.c.b16 %v3280, %v3279
      %v3284 = vpack.c.b16 %v3281, %v3281
      %v3304 = vunpack.c.l.b16 %v3256
      %v3305 = vunpack.c.l.b16 %v3257
      %v3306 = vunpack.c.l.b16 %v3258
      %v3307 = vunpack.c.l.b16 %v3259
      %v3308 = vunpack.c.l.b16 %v3260
      %v3309 = vunpack.c.l.b16 %v3261
      %v3310 = vunpack.c.l.b16 %v3262
      %v3311 = vunpack.c.l.b16 %v3263
      %v3312 = vunpack.c.l.b16 %v3264
      %v3313 = vunpack.c.l.b16 %v3265
      %v3314 = vunpack.c.l.b16 %v3266
      %v3315 = vunpack.c.l.b16 %v3267
      %v3316 = vunpack.c.l.b16 %v3268
      %v3317 = vunpack.c.l.b16 %v3269
      %v3318 = vunpack.c.l.b16 %v3270
      %v3319 = vunpack.c.l.b16 %v3271
      %v3320 = vpack.c.b16 %v3305, %v3304
      %v3321 = vpack.c.b16 %v3307, %v3306
      %v3322 = vpack.c.b16 %v3309, %v3308
      %v3323 = vpack.c.b16 %v3311, %v3310
      %v3324 = vpack.c.b16 %v3313, %v3312
      %v3325 = vpack.c.b16 %v3315, %v3314
      %v3326 = vpack.c.b16 %v3317, %v3316
      %v3327 = vpack.c.b16 %v3319, %v3318
      %3336 = vmatpush.bf16.msra.mxu0 %v3327
      %3337 = vmatpush.bf16.msra.mxu0 %v3326
      %3338 = vmatpush.bf16.msra.mxu0 %v3325
      %3339 = vmatpush.bf16.msra.mxu0 %v3324
      %3340 = vmatpush.bf16.msra.mxu0 %v3323
      %3341 = vmatpush.bf16.msra.mxu0 %v3322
      %3342 = vmatpush.bf16.msra.mxu0 %v3321
      %3343 = vmatpush.bf16.msra.mxu0 %v3320
      %3344 = vmatmul.bf16.gmra.mxu0 %v3282
      %v3345 = vpop.f32.mrf.mxu0
      %v3346 = vadd.f32 0.0, %v3345
      %v3347 = vpop.f32.mrf.mxu0
      %v3348 = vadd.f32 0.0, %v3347
      %3349 = vmatmul.bf16.gmra.mxu0 %v3283
      %v3350 = vpop.f32.mrf.mxu0
      %v3351 = vadd.f32 0.0, %v3350
      %v3352 = vpop.f32.mrf.mxu0
      %v3353 = vadd.f32 0.0, %v3352
      %3354 = vmatmul.bf16.gmra.mxu0 %v3284
      %v3355 = vpop.f32.mrf.mxu0
      %v3356 = vadd.f32 0.0, %v3355
      %v3357 = vpop.f32.mrf.mxu0
      %3358 = vdwg.mxu0
      %v3359 = vadd.f32 %v3250, %v3346
      %v3360 = vadd.f32 %v3251, %v3348
      %v3361 = vadd.f32 %v3252, %v3351
      %v3362 = vadd.f32 %v3253, %v3353
      %v3363 = vadd.f32 %v3254, %v3356
      %s3364 = scalar_lea.vmem %s4, 704
      %v3365 = vld [vmem:[%s3364] sm:$0xf]
      %v3366 = vld [vmem:[%s3364 + $0x4] sm:$0xf]
      %v3367 = vld [vmem:[%s3364 + $0x8] sm:$0xf]
      %v3368 = vld [vmem:[%s3364 + $0xc] sm:$0xf]
      %v3369 = vld [vmem:[%s3364 + $0x10] sm:$0xf]
      %v3370 = vld [vmem:[%s3364 + $0x14] sm:$0xf]
      %v3371 = vld [vmem:[%s3364 + $0x18] sm:$0xf]
      %v3372 = vld [vmem:[%s3364 + $0x1c] sm:$0xf]
      %v3373 = vld [vmem:[%s3364 + $0x20] sm:$0xf]
      %v3374 = vld [vmem:[%s3364 + $0x24] sm:$0xf]
      %v3375 = vld [vmem:[%s3364 + $0x28] sm:$0xf]
      %v3376 = vld [vmem:[%s3364 + $0x2c] sm:$0xf]
      %v3377 = vld [vmem:[%s3364 + $0x30] sm:$0xf]
      %v3378 = vld [vmem:[%s3364 + $0x34] sm:$0xf]
      %v3379 = vld [vmem:[%s3364 + $0x38] sm:$0xf]
      %v3380 = vld [vmem:[%s3364 + $0x3c] sm:$0xf]
      %v3386 = vunpack.c.l.b16 %v2151
      %v3387 = vunpack.c.l.b16 %v2152
      %v3388 = vunpack.c.l.b16 %v2153
      %v3389 = vunpack.c.l.b16 %v2154
      %v3390 = vunpack.c.l.b16 %v2155
      %v3391 = vpack.c.b16 %v3387, %v3386
      %v3392 = vpack.c.b16 %v3389, %v3388
      %v3393 = vpack.c.b16 %v3390, %v3390
      %v3413 = vunpack.c.l.b16 %v3365
      %v3414 = vunpack.c.l.b16 %v3366
      %v3415 = vunpack.c.l.b16 %v3367
      %v3416 = vunpack.c.l.b16 %v3368
      %v3417 = vunpack.c.l.b16 %v3369
      %v3418 = vunpack.c.l.b16 %v3370
      %v3419 = vunpack.c.l.b16 %v3371
      %v3420 = vunpack.c.l.b16 %v3372
      %v3421 = vunpack.c.l.b16 %v3373
      %v3422 = vunpack.c.l.b16 %v3374
      %v3423 = vunpack.c.l.b16 %v3375
      %v3424 = vunpack.c.l.b16 %v3376
      %v3425 = vunpack.c.l.b16 %v3377
      %v3426 = vunpack.c.l.b16 %v3378
      %v3427 = vunpack.c.l.b16 %v3379
      %v3428 = vunpack.c.l.b16 %v3380
      %v3429 = vpack.c.b16 %v3414, %v3413
      %v3430 = vpack.c.b16 %v3416, %v3415
      %v3431 = vpack.c.b16 %v3418, %v3417
      %v3432 = vpack.c.b16 %v3420, %v3419
      %v3433 = vpack.c.b16 %v3422, %v3421
      %v3434 = vpack.c.b16 %v3424, %v3423
      %v3435 = vpack.c.b16 %v3426, %v3425
      %v3436 = vpack.c.b16 %v3428, %v3427
      %3445 = vmatpush.bf16.msra.mxu0 %v3436
      %3446 = vmatpush.bf16.msra.mxu0 %v3435
      %3447 = vmatpush.bf16.msra.mxu0 %v3434
      %3448 = vmatpush.bf16.msra.mxu0 %v3433
      %3449 = vmatpush.bf16.msra.mxu0 %v3432
      %3450 = vmatpush.bf16.msra.mxu0 %v3431
      %3451 = vmatpush.bf16.msra.mxu0 %v3430
      %3452 = vmatpush.bf16.msra.mxu0 %v3429
      %3453 = vmatmul.bf16.gmra.mxu0 %v3391
      %v3454 = vpop.f32.mrf.mxu0
      %v3455 = vadd.f32 0.0, %v3454
      %v3456 = vpop.f32.mrf.mxu0
      %v3457 = vadd.f32 0.0, %v3456
      %3458 = vmatmul.bf16.gmra.mxu0 %v3392
      %v3459 = vpop.f32.mrf.mxu0
      %v3460 = vadd.f32 0.0, %v3459
      %v3461 = vpop.f32.mrf.mxu0
      %v3462 = vadd.f32 0.0, %v3461
      %3463 = vmatmul.bf16.gmra.mxu0 %v3393
      %v3464 = vpop.f32.mrf.mxu0
      %v3465 = vadd.f32 0.0, %v3464
      %v3466 = vpop.f32.mrf.mxu0
      %3467 = vdwg.mxu0
      %v3468 = vadd.f32 %v3359, %v3455
      %v3469 = vadd.f32 %v3360, %v3457
      %v3470 = vadd.f32 %v3361, %v3460
      %v3471 = vadd.f32 %v3362, %v3462
      %v3472 = vadd.f32 %v3363, %v3465
      %s3473 = scalar_lea.vmem %s4, 768
      %v3474 = vld [vmem:[%s3473] sm:$0xf]
      %v3475 = vld [vmem:[%s3473 + $0x4] sm:$0xf]
      %v3476 = vld [vmem:[%s3473 + $0x8] sm:$0xf]
      %v3477 = vld [vmem:[%s3473 + $0xc] sm:$0xf]
      %v3478 = vld [vmem:[%s3473 + $0x10] sm:$0xf]
      %v3479 = vld [vmem:[%s3473 + $0x14] sm:$0xf]
      %v3480 = vld [vmem:[%s3473 + $0x18] sm:$0xf]
      %v3481 = vld [vmem:[%s3473 + $0x1c] sm:$0xf]
      %v3482 = vld [vmem:[%s3473 + $0x20] sm:$0xf]
      %v3483 = vld [vmem:[%s3473 + $0x24] sm:$0xf]
      %v3484 = vld [vmem:[%s3473 + $0x28] sm:$0xf]
      %v3485 = vld [vmem:[%s3473 + $0x2c] sm:$0xf]
      %v3486 = vld [vmem:[%s3473 + $0x30] sm:$0xf]
      %v3487 = vld [vmem:[%s3473 + $0x34] sm:$0xf]
      %v3488 = vld [vmem:[%s3473 + $0x38] sm:$0xf]
      %v3489 = vld [vmem:[%s3473 + $0x3c] sm:$0xf]
      %v3495 = vunpack.c.l.b16 %v2156
      %v3496 = vunpack.c.l.b16 %v2157
      %v3497 = vunpack.c.l.b16 %v2158
      %v3498 = vunpack.c.l.b16 %v2159
      %v3499 = vunpack.c.l.b16 %v2160
      %v3500 = vpack.c.b16 %v3496, %v3495
      %v3501 = vpack.c.b16 %v3498, %v3497
      %v3502 = vpack.c.b16 %v3499, %v3499
      %v3522 = vunpack.c.l.b16 %v3474
      %v3523 = vunpack.c.l.b16 %v3475
      %v3524 = vunpack.c.l.b16 %v3476
      %v3525 = vunpack.c.l.b16 %v3477
      %v3526 = vunpack.c.l.b16 %v3478
      %v3527 = vunpack.c.l.b16 %v3479
      %v3528 = vunpack.c.l.b16 %v3480
      %v3529 = vunpack.c.l.b16 %v3481
      %v3530 = vunpack.c.l.b16 %v3482
      %v3531 = vunpack.c.l.b16 %v3483
      %v3532 = vunpack.c.l.b16 %v3484
      %v3533 = vunpack.c.l.b16 %v3485
      %v3534 = vunpack.c.l.b16 %v3486
      %v3535 = vunpack.c.l.b16 %v3487
      %v3536 = vunpack.c.l.b16 %v3488
      %v3537 = vunpack.c.l.b16 %v3489
      %v3538 = vpack.c.b16 %v3523, %v3522
      %v3539 = vpack.c.b16 %v3525, %v3524
      %v3540 = vpack.c.b16 %v3527, %v3526
      %v3541 = vpack.c.b16 %v3529, %v3528
      %v3542 = vpack.c.b16 %v3531, %v3530
      %v3543 = vpack.c.b16 %v3533, %v3532
      %v3544 = vpack.c.b16 %v3535, %v3534
      %v3545 = vpack.c.b16 %v3537, %v3536
      %3554 = vmatpush.bf16.msra.mxu0 %v3545
      %3555 = vmatpush.bf16.msra.mxu0 %v3544
      %3556 = vmatpush.bf16.msra.mxu0 %v3543
      %3557 = vmatpush.bf16.msra.mxu0 %v3542
      %3558 = vmatpush.bf16.msra.mxu0 %v3541
      %3559 = vmatpush.bf16.msra.mxu0 %v3540
      %3560 = vmatpush.bf16.msra.mxu0 %v3539
      %3561 = vmatpush.bf16.msra.mxu0 %v3538
      %3562 = vmatmul.bf16.gmra.mxu0 %v3500
      %v3563 = vpop.f32.mrf.mxu0
      %v3564 = vadd.f32 0.0, %v3563
      %v3565 = vpop.f32.mrf.mxu0
      %v3566 = vadd.f32 0.0, %v3565
      %3567 = vmatmul.bf16.gmra.mxu0 %v3501
      %v3568 = vpop.f32.mrf.mxu0
      %v3569 = vadd.f32 0.0, %v3568
      %v3570 = vpop.f32.mrf.mxu0
      %v3571 = vadd.f32 0.0, %v3570
      %3572 = vmatmul.bf16.gmra.mxu0 %v3502
      %v3573 = vpop.f32.mrf.mxu0
      %v3574 = vadd.f32 0.0, %v3573
      %v3575 = vpop.f32.mrf.mxu0
      %3576 = vdwg.mxu0
      %v3577 = vadd.f32 %v3468, %v3564
      %v3578 = vadd.f32 %v3469, %v3566
      %v3579 = vadd.f32 %v3470, %v3569
      %v3580 = vadd.f32 %v3471, %v3571
      %v3581 = vadd.f32 %v3472, %v3574
      %s3582 = scalar_lea.vmem %s4, 832
      %v3583 = vld [vmem:[%s3582] sm:$0xf]
      %v3584 = vld [vmem:[%s3582 + $0x4] sm:$0xf]
      %v3585 = vld [vmem:[%s3582 + $0x8] sm:$0xf]
      %v3586 = vld [vmem:[%s3582 + $0xc] sm:$0xf]
      %v3587 = vld [vmem:[%s3582 + $0x10] sm:$0xf]
      %v3588 = vld [vmem:[%s3582 + $0x14] sm:$0xf]
      %v3589 = vld [vmem:[%s3582 + $0x18] sm:$0xf]
      %v3590 = vld [vmem:[%s3582 + $0x1c] sm:$0xf]
      %v3591 = vld [vmem:[%s3582 + $0x20] sm:$0xf]
      %v3592 = vld [vmem:[%s3582 + $0x24] sm:$0xf]
      %v3593 = vld [vmem:[%s3582 + $0x28] sm:$0xf]
      %v3594 = vld [vmem:[%s3582 + $0x2c] sm:$0xf]
      %v3595 = vld [vmem:[%s3582 + $0x30] sm:$0xf]
      %v3596 = vld [vmem:[%s3582 + $0x34] sm:$0xf]
      %v3597 = vld [vmem:[%s3582 + $0x38] sm:$0xf]
      %v3598 = vld [vmem:[%s3582 + $0x3c] sm:$0xf]
      %v3604 = vunpack.c.l.b16 %v2161
      %v3605 = vunpack.c.l.b16 %v2162
      %v3606 = vunpack.c.l.b16 %v2163
      %v3607 = vunpack.c.l.b16 %v2164
      %v3608 = vunpack.c.l.b16 %v2165
      %v3609 = vpack.c.b16 %v3605, %v3604
      %v3610 = vpack.c.b16 %v3607, %v3606
      %v3611 = vpack.c.b16 %v3608, %v3608
      %v3631 = vunpack.c.l.b16 %v3583
      %v3632 = vunpack.c.l.b16 %v3584
      %v3633 = vunpack.c.l.b16 %v3585
      %v3634 = vunpack.c.l.b16 %v3586
      %v3635 = vunpack.c.l.b16 %v3587
      %v3636 = vunpack.c.l.b16 %v3588
      %v3637 = vunpack.c.l.b16 %v3589
      %v3638 = vunpack.c.l.b16 %v3590
      %v3639 = vunpack.c.l.b16 %v3591
      %v3640 = vunpack.c.l.b16 %v3592
      %v3641 = vunpack.c.l.b16 %v3593
      %v3642 = vunpack.c.l.b16 %v3594
      %v3643 = vunpack.c.l.b16 %v3595
      %v3644 = vunpack.c.l.b16 %v3596
      %v3645 = vunpack.c.l.b16 %v3597
      %v3646 = vunpack.c.l.b16 %v3598
      %v3647 = vpack.c.b16 %v3632, %v3631
      %v3648 = vpack.c.b16 %v3634, %v3633
      %v3649 = vpack.c.b16 %v3636, %v3635
      %v3650 = vpack.c.b16 %v3638, %v3637
      %v3651 = vpack.c.b16 %v3640, %v3639
      %v3652 = vpack.c.b16 %v3642, %v3641
      %v3653 = vpack.c.b16 %v3644, %v3643
      %v3654 = vpack.c.b16 %v3646, %v3645
      %3663 = vmatpush.bf16.msra.mxu0 %v3654
      %3664 = vmatpush.bf16.msra.mxu0 %v3653
      %3665 = vmatpush.bf16.msra.mxu0 %v3652
      %3666 = vmatpush.bf16.msra.mxu0 %v3651
      %3667 = vmatpush.bf16.msra.mxu0 %v3650
      %3668 = vmatpush.bf16.msra.mxu0 %v3649
      %3669 = vmatpush.bf16.msra.mxu0 %v3648
      %3670 = vmatpush.bf16.msra.mxu0 %v3647
      %3671 = vmatmul.bf16.gmra.mxu0 %v3609
      %v3672 = vpop.f32.mrf.mxu0
      %v3673 = vadd.f32 0.0, %v3672
      %v3674 = vpop.f32.mrf.mxu0
      %v3675 = vadd.f32 0.0, %v3674
      %3676 = vmatmul.bf16.gmra.mxu0 %v3610
      %v3677 = vpop.f32.mrf.mxu0
      %v3678 = vadd.f32 0.0, %v3677
      %v3679 = vpop.f32.mrf.mxu0
      %v3680 = vadd.f32 0.0, %v3679
      %3681 = vmatmul.bf16.gmra.mxu0 %v3611
      %v3682 = vpop.f32.mrf.mxu0
      %v3683 = vadd.f32 0.0, %v3682
      %v3684 = vpop.f32.mrf.mxu0
      %3685 = vdwg.mxu0
      %v3686 = vadd.f32 %v3577, %v3673
      %v3687 = vadd.f32 %v3578, %v3675
      %v3688 = vadd.f32 %v3579, %v3678
      %v3689 = vadd.f32 %v3580, %v3680
      %v3690 = vadd.f32 %v3581, %v3683
      %s3691 = scalar_lea.vmem %s4, 896
      %v3692 = vld [vmem:[%s3691] sm:$0xf]
      %v3693 = vld [vmem:[%s3691 + $0x4] sm:$0xf]
      %v3694 = vld [vmem:[%s3691 + $0x8] sm:$0xf]
      %v3695 = vld [vmem:[%s3691 + $0xc] sm:$0xf]
      %v3696 = vld [vmem:[%s3691 + $0x10] sm:$0xf]
      %v3697 = vld [vmem:[%s3691 + $0x14] sm:$0xf]
      %v3698 = vld [vmem:[%s3691 + $0x18] sm:$0xf]
      %v3699 = vld [vmem:[%s3691 + $0x1c] sm:$0xf]
      %v3700 = vld [vmem:[%s3691 + $0x20] sm:$0xf]
      %v3701 = vld [vmem:[%s3691 + $0x24] sm:$0xf]
      %v3702 = vld [vmem:[%s3691 + $0x28] sm:$0xf]
      %v3703 = vld [vmem:[%s3691 + $0x2c] sm:$0xf]
      %v3704 = vld [vmem:[%s3691 + $0x30] sm:$0xf]
      %v3705 = vld [vmem:[%s3691 + $0x34] sm:$0xf]
      %v3706 = vld [vmem:[%s3691 + $0x38] sm:$0xf]
      %v3707 = vld [vmem:[%s3691 + $0x3c] sm:$0xf]
      %v3713 = vunpack.c.l.b16 %v2166
      %v3714 = vunpack.c.l.b16 %v2167
      %v3715 = vunpack.c.l.b16 %v2168
      %v3716 = vunpack.c.l.b16 %v2169
      %v3717 = vunpack.c.l.b16 %v2170
      %v3718 = vpack.c.b16 %v3714, %v3713
      %v3719 = vpack.c.b16 %v3716, %v3715
      %v3720 = vpack.c.b16 %v3717, %v3717
      %v3740 = vunpack.c.l.b16 %v3692
      %v3741 = vunpack.c.l.b16 %v3693
      %v3742 = vunpack.c.l.b16 %v3694
      %v3743 = vunpack.c.l.b16 %v3695
      %v3744 = vunpack.c.l.b16 %v3696
      %v3745 = vunpack.c.l.b16 %v3697
      %v3746 = vunpack.c.l.b16 %v3698
      %v3747 = vunpack.c.l.b16 %v3699
      %v3748 = vunpack.c.l.b16 %v3700
      %v3749 = vunpack.c.l.b16 %v3701
      %v3750 = vunpack.c.l.b16 %v3702
      %v3751 = vunpack.c.l.b16 %v3703
      %v3752 = vunpack.c.l.b16 %v3704
      %v3753 = vunpack.c.l.b16 %v3705
      %v3754 = vunpack.c.l.b16 %v3706
      %v3755 = vunpack.c.l.b16 %v3707
      %v3756 = vpack.c.b16 %v3741, %v3740
      %v3757 = vpack.c.b16 %v3743, %v3742
      %v3758 = vpack.c.b16 %v3745, %v3744
      %v3759 = vpack.c.b16 %v3747, %v3746
      %v3760 = vpack.c.b16 %v3749, %v3748
      %v3761 = vpack.c.b16 %v3751, %v3750
      %v3762 = vpack.c.b16 %v3753, %v3752
      %v3763 = vpack.c.b16 %v3755, %v3754
      %3772 = vmatpush.bf16.msra.mxu0 %v3763
      %3773 = vmatpush.bf16.msra.mxu0 %v3762
      %3774 = vmatpush.bf16.msra.mxu0 %v3761
      %3775 = vmatpush.bf16.msra.mxu0 %v3760
      %3776 = vmatpush.bf16.msra.mxu0 %v3759
      %3777 = vmatpush.bf16.msra.mxu0 %v3758
      %3778 = vmatpush.bf16.msra.mxu0 %v3757
      %3779 = vmatpush.bf16.msra.mxu0 %v3756
      %3780 = vmatmul.bf16.gmra.mxu0 %v3718
      %v3781 = vpop.f32.mrf.mxu0
      %v3782 = vadd.f32 0.0, %v3781
      %v3783 = vpop.f32.mrf.mxu0
      %v3784 = vadd.f32 0.0, %v3783
      %3785 = vmatmul.bf16.gmra.mxu0 %v3719
      %v3786 = vpop.f32.mrf.mxu0
      %v3787 = vadd.f32 0.0, %v3786
      %v3788 = vpop.f32.mrf.mxu0
      %v3789 = vadd.f32 0.0, %v3788
      %3790 = vmatmul.bf16.gmra.mxu0 %v3720
      %v3791 = vpop.f32.mrf.mxu0
      %v3792 = vadd.f32 0.0, %v3791
      %v3793 = vpop.f32.mrf.mxu0
      %3794 = vdwg.mxu0
      %v3795 = vadd.f32 %v3686, %v3782
      %v3796 = vadd.f32 %v3687, %v3784
      %v3797 = vadd.f32 %v3688, %v3787
      %v3798 = vadd.f32 %v3689, %v3789
      %v3799 = vadd.f32 %v3690, %v3792
      %s3800 = scalar_lea.vmem %s4, 960
      %v3801 = vld [vmem:[%s3800] sm:$0xf]
      %v3802 = vld [vmem:[%s3800 + $0x4] sm:$0xf]
      %v3803 = vld [vmem:[%s3800 + $0x8] sm:$0xf]
      %v3804 = vld [vmem:[%s3800 + $0xc] sm:$0xf]
      %v3805 = vld [vmem:[%s3800 + $0x10] sm:$0xf]
      %v3806 = vld [vmem:[%s3800 + $0x14] sm:$0xf]
      %v3807 = vld [vmem:[%s3800 + $0x18] sm:$0xf]
      %v3808 = vld [vmem:[%s3800 + $0x1c] sm:$0xf]
      %v3809 = vld [vmem:[%s3800 + $0x20] sm:$0xf]
      %v3810 = vld [vmem:[%s3800 + $0x24] sm:$0xf]
      %v3811 = vld [vmem:[%s3800 + $0x28] sm:$0xf]
      %v3812 = vld [vmem:[%s3800 + $0x2c] sm:$0xf]
      %v3813 = vld [vmem:[%s3800 + $0x30] sm:$0xf]
      %v3814 = vld [vmem:[%s3800 + $0x34] sm:$0xf]
      %v3815 = vld [vmem:[%s3800 + $0x38] sm:$0xf]
      %v3816 = vld [vmem:[%s3800 + $0x3c] sm:$0xf]
      %v3822 = vunpack.c.l.b16 %v2171
      %v3823 = vunpack.c.l.b16 %v2172
      %v3824 = vunpack.c.l.b16 %v2173
      %v3825 = vunpack.c.l.b16 %v2174
      %v3826 = vunpack.c.l.b16 %v2175
      %v3827 = vpack.c.b16 %v3823, %v3822
      %v3828 = vpack.c.b16 %v3825, %v3824
      %v3829 = vpack.c.b16 %v3826, %v3826
      %v3849 = vunpack.c.l.b16 %v3801
      %v3850 = vunpack.c.l.b16 %v3802
      %v3851 = vunpack.c.l.b16 %v3803
      %v3852 = vunpack.c.l.b16 %v3804
      %v3853 = vunpack.c.l.b16 %v3805
      %v3854 = vunpack.c.l.b16 %v3806
      %v3855 = vunpack.c.l.b16 %v3807
      %v3856 = vunpack.c.l.b16 %v3808
      %v3857 = vunpack.c.l.b16 %v3809
      %v3858 = vunpack.c.l.b16 %v3810
      %v3859 = vunpack.c.l.b16 %v3811
      %v3860 = vunpack.c.l.b16 %v3812
      %v3861 = vunpack.c.l.b16 %v3813
      %v3862 = vunpack.c.l.b16 %v3814
      %v3863 = vunpack.c.l.b16 %v3815
      %v3864 = vunpack.c.l.b16 %v3816
      %v3865 = vpack.c.b16 %v3850, %v3849
      %v3866 = vpack.c.b16 %v3852, %v3851
      %v3867 = vpack.c.b16 %v3854, %v3853
      %v3868 = vpack.c.b16 %v3856, %v3855
      %v3869 = vpack.c.b16 %v3858, %v3857
      %v3870 = vpack.c.b16 %v3860, %v3859
      %v3871 = vpack.c.b16 %v3862, %v3861
      %v3872 = vpack.c.b16 %v3864, %v3863
      %3881 = vmatpush.bf16.msra.mxu0 %v3872
      %3882 = vmatpush.bf16.msra.mxu0 %v3871
      %3883 = vmatpush.bf16.msra.mxu0 %v3870
      %3884 = vmatpush.bf16.msra.mxu0 %v3869
      %3885 = vmatpush.bf16.msra.mxu0 %v3868
      %3886 = vmatpush.bf16.msra.mxu0 %v3867
      %3887 = vmatpush.bf16.msra.mxu0 %v3866
      %3888 = vmatpush.bf16.msra.mxu0 %v3865
      %3889 = vmatmul.bf16.gmra.mxu0 %v3827
      %v3890 = vpop.f32.mrf.mxu0
      %v3891 = vadd.f32 0.0, %v3890
      %v3892 = vpop.f32.mrf.mxu0
      %v3893 = vadd.f32 0.0, %v3892
      %3894 = vmatmul.bf16.gmra.mxu0 %v3828
      %v3895 = vpop.f32.mrf.mxu0
      %v3896 = vadd.f32 0.0, %v3895
      %v3897 = vpop.f32.mrf.mxu0
      %v3898 = vadd.f32 0.0, %v3897
      %3899 = vmatmul.bf16.gmra.mxu0 %v3829
      %v3900 = vpop.f32.mrf.mxu0
      %v3901 = vadd.f32 0.0, %v3900
      %v3902 = vpop.f32.mrf.mxu0
      %3903 = vdwg.mxu0
      %v3904 = vadd.f32 %v3795, %v3891
      %v3905 = vadd.f32 %v3796, %v3893
      %v3906 = vadd.f32 %v3797, %v3896
      %v3907 = vadd.f32 %v3798, %v3898
      %v3908 = vadd.f32 %v3799, %v3901
      %v3909 = vld [vmem:[%s5] sm:$0x1]
      %v3911 = vperm.slane %v3909, 0
      %v3913 = vadd.f32 %v3904, %v3911
      %v3914 = vadd.f32 %v3905, %v3911
      %v3915 = vadd.f32 %v3906, %v3911
      %v3916 = vadd.f32 %v3907, %v3911
      %v3917 = vadd.f32 %v3908, %v3911
      %v3918 = vmax.f32 %v3913, 0.0
      %v3919 = vmax.f32 %v3914, 0.0
      %v3920 = vmax.f32 %v3915, 0.0
      %v3921 = vmax.f32 %v3916, 0.0
      %v3922 = vmax.f32 %v3917, 0.0
      %v3923 = vpack.c.bf16 %v3919, %v3918
      %v3924 = vpack.c.bf16 %v3921, %v3920
      %v3925 = vpack.c.bf16 %v3922, %v3922
      %v3926 = vld [vmem:[%s6] sm:$0xf]
      %v3927 = vld [vmem:[%s6 + $0x4] sm:$0xf]
      %v3928 = vld [vmem:[%s6 + $0x8] sm:$0xf]
      %v3929 = vld [vmem:[%s6 + $0xc] sm:$0xf]
      %v3930 = vld [vmem:[%s6 + $0x10] sm:$0xf]
      %v3931 = vld [vmem:[%s6 + $0x14] sm:$0xf]
      %v3932 = vld [vmem:[%s6 + $0x18] sm:$0xf]
      %v3933 = vld [vmem:[%s6 + $0x1c] sm:$0xf]
      %v3934 = vld [vmem:[%s6 + $0x20] sm:$0xf]
      %v3944 = vunpack.c.l.b16 %v3926
      %v3945 = vunpack.c.l.b16 %v3927
      %v3946 = vunpack.c.l.b16 %v3928
      %v3947 = vunpack.c.l.b16 %v3929
      %v3948 = vunpack.c.l.b16 %v3930
      %v3949 = vunpack.c.l.b16 %v3931
      %v3950 = vunpack.c.l.b16 %v3932
      %v3951 = vunpack.c.l.b16 %v3933
      %v3952 = vunpack.c.l.b16 %v3934
      %v3953 = vpack.c.b16 %v3945, %v3944
      %v3954 = vpack.c.b16 %v3947, %v3946
      %v3955 = vpack.c.b16 %v3949, %v3948
      %v3956 = vpack.c.b16 %v3951, %v3950
      %v3957 = vpack.c.b16 %v3952, %v3952
      %vm3958 = vcmask 326656
      %v3960 = vsel %vm3958, %v3953, 0
      %v3963 = vsel %vm3958, %v3954, 0
      %v3966 = vsel %vm3958, %v3955, 0
      %v3969 = vsel %vm3958, %v3956, 0
      %v3972 = vsel %vm3958, %v3957, 0
      %vm3974 = vcmask 1043456
      %v3976 = vsel %vm3974, %v3925, 0
      %3978 = vmatpush.bf16.msra.mxu0 0
      %3979 = vmatpush.bf16.msra.mxu0 0
      %3980 = vmatpush.bf16.msra.mxu0 0
      %3981 = vmatpush.bf16.msra.mxu0 0
      %3982 = vmatpush.bf16.msra.mxu0 0
      %3983 = vmatpush.bf16.msra.mxu0 %v3976
      %3984 = vmatpush.bf16.msra.mxu0 %v3924
      %3985 = vmatpush.bf16.msra.mxu0 %v3923
      %3986 = vmatmul.bf16.gmra.mxu0 %v3960
      %v3987 = vpop.f32.mrf.mxu0
      %v3988 = vadd.f32 0.0, %v3987
      %v3989 = vpop.f32.mrf.mxu0
      %v3990 = vadd.f32 0.0, %v3989
      %3991 = vmatmul.bf16.gmra.mxu0 %v3963
      %v3992 = vpop.f32.mrf.mxu0
      %v3993 = vadd.f32 0.0, %v3992
      %v3994 = vpop.f32.mrf.mxu0
      %v3995 = vadd.f32 0.0, %v3994
      %3996 = vmatmul.bf16.gmra.mxu0 %v3966
      %v3997 = vpop.f32.mrf.mxu0
      %v3998 = vadd.f32 0.0, %v3997
      %v3999 = vpop.f32.mrf.mxu0
      %v4000 = vadd.f32 0.0, %v3999
      %4001 = vmatmul.bf16.gmra.mxu0 %v3969
      %v4002 = vpop.f32.mrf.mxu0
      %v4003 = vadd.f32 0.0, %v4002
      %v4004 = vpop.f32.mrf.mxu0
      %v4005 = vadd.f32 0.0, %v4004
      %4006 = vmatmul.bf16.gmra.mxu0 %v3972
      %v4007 = vpop.f32.mrf.mxu0
      %v4008 = vadd.f32 0.0, %v4007
      %v4009 = vpop.f32.mrf.mxu0
      %4010 = vdwg.mxu0
      %v4011 = vpack.c.bf16 %v3988, %v3988
      %v4012 = vpack.c.bf16 %v3990, %v3990
      %v4013 = vpack.c.bf16 %v3993, %v3993
      %v4014 = vpack.c.bf16 %v3995, %v3995
      %v4015 = vpack.c.bf16 %v3998, %v3998
      %v4016 = vpack.c.bf16 %v4000, %v4000
      %v4017 = vpack.c.bf16 %v4003, %v4003
      %v4018 = vpack.c.bf16 %v4005, %v4005
      %v4019 = vpack.c.bf16 %v4008, %v4008
      %v4020 = vld [vmem:[%s7] sm:$0xf]
      %v4021 = vld [vmem:[%s7 + $0x4] sm:$0xf]
      %v4022 = vld [vmem:[%s7 + $0x8] sm:$0xf]
      %v4023 = vld [vmem:[%s7 + $0xc] sm:$0xf]
      %v4024 = vld [vmem:[%s7 + $0x10] sm:$0xf]
      %v4025 = vld [vmem:[%s7 + $0x14] sm:$0xf]
      %v4026 = vld [vmem:[%s7 + $0x18] sm:$0xf]
      %v4027 = vld [vmem:[%s7 + $0x1c] sm:$0xf]
      %v4028 = vld [vmem:[%s7 + $0x20] sm:$0xf]
      %v4029 = vld [vmem:[%s7 + $0x24] sm:$0xf]
      %v4030 = vld [vmem:[%s7 + $0x28] sm:$0xf]
      %v4031 = vld [vmem:[%s7 + $0x2c] sm:$0xf]
      %v4032 = vld [vmem:[%s7 + $0x30] sm:$0xf]
      %v4033 = vld [vmem:[%s7 + $0x34] sm:$0xf]
      %v4034 = vld [vmem:[%s7 + $0x38] sm:$0xf]
      %v4035 = vld [vmem:[%s7 + $0x3c] sm:$0xf]
      %s4036 = scalar_lea.vmem %s7, 64
      %v4037 = vld [vmem:[%s4036] sm:$0xf]
      %v4038 = vld [vmem:[%s4036 + $0x4] sm:$0xf]
      %v4039 = vld [vmem:[%s4036 + $0x8] sm:$0xf]
      %v4040 = vld [vmem:[%s4036 + $0xc] sm:$0xf]
      %v4041 = vld [vmem:[%s4036 + $0x10] sm:$0xf]
      %v4042 = vld [vmem:[%s4036 + $0x14] sm:$0xf]
      %v4043 = vld [vmem:[%s4036 + $0x18] sm:$0xf]
      %v4044 = vld [vmem:[%s4036 + $0x1c] sm:$0xf]
      %v4045 = vld [vmem:[%s4036 + $0x20] sm:$0xf]
      %v4046 = vld [vmem:[%s4036 + $0x24] sm:$0xf]
      %v4047 = vld [vmem:[%s4036 + $0x28] sm:$0xf]
      %v4048 = vld [vmem:[%s4036 + $0x2c] sm:$0xf]
      %v4049 = vld [vmem:[%s4036 + $0x30] sm:$0xf]
      %v4050 = vld [vmem:[%s4036 + $0x34] sm:$0xf]
      %v4051 = vld [vmem:[%s4036 + $0x38] sm:$0xf]
      %v4052 = vld [vmem:[%s4036 + $0x3c] sm:$0xf]
      %v4069 = vunpack.c.l.b16 %v4037
      %v4070 = vunpack.c.l.b16 %v4038
      %v4071 = vunpack.c.l.b16 %v4039
      %v4072 = vunpack.c.l.b16 %v4040
      %v4073 = vunpack.c.l.b16 %v4041
      %v4074 = vunpack.c.l.b16 %v4042
      %v4075 = vunpack.c.l.b16 %v4043
      %v4076 = vunpack.c.l.b16 %v4044
      %v4077 = vunpack.c.l.b16 %v4045
      %v4078 = vunpack.c.l.b16 %v4046
      %v4079 = vunpack.c.l.b16 %v4047
      %v4080 = vunpack.c.l.b16 %v4048
      %v4081 = vunpack.c.l.b16 %v4049
      %v4082 = vunpack.c.l.b16 %v4050
      %v4083 = vunpack.c.l.b16 %v4051
      %v4084 = vunpack.c.l.b16 %v4052
      %v4085 = vpack.c.b16 %v4070, %v4069
      %v4086 = vpack.c.b16 %v4072, %v4071
      %v4087 = vpack.c.b16 %v4074, %v4073
      %v4088 = vpack.c.b16 %v4076, %v4075
      %v4089 = vpack.c.b16 %v4078, %v4077
      %v4090 = vpack.c.b16 %v4080, %v4079
      %v4091 = vpack.c.b16 %v4082, %v4081
      %v4092 = vpack.c.b16 %v4084, %v4083
      %4101 = vmatpush.bf16.msra.mxu0 %v4092
      %4102 = vmatpush.bf16.msra.mxu0 %v4091
      %4103 = vmatpush.bf16.msra.mxu0 %v4090
      %4104 = vmatpush.bf16.msra.mxu0 %v4089
      %4105 = vmatpush.bf16.msra.mxu0 %v4088
      %4106 = vmatpush.bf16.msra.mxu0 %v4087
      %4107 = vmatpush.bf16.msra.mxu0 %v4086
      %4108 = vmatpush.bf16.msra.mxu0 %v4085
      %4109 = vmatmul.bf16.gmra.mxu0 %v4012
      %v4110 = vpop.f32.mrf.mxu0
      %v4111 = vadd.f32 0.0, %v4110
      %v4112 = vpop.f32.mrf.mxu0
      %4113 = vdwg.mxu0
      %v4130 = vunpack.c.l.b16 %v4020
      %v4131 = vunpack.c.l.b16 %v4021
      %v4132 = vunpack.c.l.b16 %v4022
      %v4133 = vunpack.c.l.b16 %v4023
      %v4134 = vunpack.c.l.b16 %v4024
      %v4135 = vunpack.c.l.b16 %v4025
      %v4136 = vunpack.c.l.b16 %v4026
      %v4137 = vunpack.c.l.b16 %v4027
      %v4138 = vunpack.c.l.b16 %v4028
      %v4139 = vunpack.c.l.b16 %v4029
      %v4140 = vunpack.c.l.b16 %v4030
      %v4141 = vunpack.c.l.b16 %v4031
      %v4142 = vunpack.c.l.b16 %v4032
      %v4143 = vunpack.c.l.b16 %v4033
      %v4144 = vunpack.c.l.b16 %v4034
      %v4145 = vunpack.c.l.b16 %v4035
      %v4146 = vpack.c.b16 %v4131, %v4130
      %v4147 = vpack.c.b16 %v4133, %v4132
      %v4148 = vpack.c.b16 %v4135, %v4134
      %v4149 = vpack.c.b16 %v4137, %v4136
      %v4150 = vpack.c.b16 %v4139, %v4138
      %v4151 = vpack.c.b16 %v4141, %v4140
      %v4152 = vpack.c.b16 %v4143, %v4142
      %v4153 = vpack.c.b16 %v4145, %v4144
      %4162 = vmatpush.bf16.msra.mxu0 %v4153
      %4163 = vmatpush.bf16.msra.mxu0 %v4152
      %4164 = vmatpush.bf16.msra.mxu0 %v4151
      %4165 = vmatpush.bf16.msra.mxu0 %v4150
      %4166 = vmatpush.bf16.msra.mxu0 %v4149
      %4167 = vmatpush.bf16.msra.mxu0 %v4148
      %4168 = vmatpush.bf16.msra.mxu0 %v4147
      %4169 = vmatpush.bf16.msra.mxu0 %v4146
      %4170 = vmatmul.bf16.gmra.mxu0 %v4011
      %v4171 = vpop.f32.mrf.mxu0
      %v4172 = vadd.f32 %v4111, %v4171
      %v4173 = vpop.f32.mrf.mxu0
      %4174 = vdwg.mxu0
      %s4175 = scalar_lea.vmem %s7, 128
      %v4176 = vld [vmem:[%s4175] sm:$0xf]
      %v4177 = vld [vmem:[%s4175 + $0x4] sm:$0xf]
      %v4178 = vld [vmem:[%s4175 + $0x8] sm:$0xf]
      %v4179 = vld [vmem:[%s4175 + $0xc] sm:$0xf]
      %v4180 = vld [vmem:[%s4175 + $0x10] sm:$0xf]
      %v4181 = vld [vmem:[%s4175 + $0x14] sm:$0xf]
      %v4182 = vld [vmem:[%s4175 + $0x18] sm:$0xf]
      %v4183 = vld [vmem:[%s4175 + $0x1c] sm:$0xf]
      %v4184 = vld [vmem:[%s4175 + $0x20] sm:$0xf]
      %v4185 = vld [vmem:[%s4175 + $0x24] sm:$0xf]
      %v4186 = vld [vmem:[%s4175 + $0x28] sm:$0xf]
      %v4187 = vld [vmem:[%s4175 + $0x2c] sm:$0xf]
      %v4188 = vld [vmem:[%s4175 + $0x30] sm:$0xf]
      %v4189 = vld [vmem:[%s4175 + $0x34] sm:$0xf]
      %v4190 = vld [vmem:[%s4175 + $0x38] sm:$0xf]
      %v4191 = vld [vmem:[%s4175 + $0x3c] sm:$0xf]
      %v4208 = vunpack.c.l.b16 %v4176
      %v4209 = vunpack.c.l.b16 %v4177
      %v4210 = vunpack.c.l.b16 %v4178
      %v4211 = vunpack.c.l.b16 %v4179
      %v4212 = vunpack.c.l.b16 %v4180
      %v4213 = vunpack.c.l.b16 %v4181
      %v4214 = vunpack.c.l.b16 %v4182
      %v4215 = vunpack.c.l.b16 %v4183
      %v4216 = vunpack.c.l.b16 %v4184
      %v4217 = vunpack.c.l.b16 %v4185
      %v4218 = vunpack.c.l.b16 %v4186
      %v4219 = vunpack.c.l.b16 %v4187
      %v4220 = vunpack.c.l.b16 %v4188
      %v4221 = vunpack.c.l.b16 %v4189
      %v4222 = vunpack.c.l.b16 %v4190
      %v4223 = vunpack.c.l.b16 %v4191
      %v4224 = vpack.c.b16 %v4209, %v4208
      %v4225 = vpack.c.b16 %v4211, %v4210
      %v4226 = vpack.c.b16 %v4213, %v4212
      %v4227 = vpack.c.b16 %v4215, %v4214
      %v4228 = vpack.c.b16 %v4217, %v4216
      %v4229 = vpack.c.b16 %v4219, %v4218
      %v4230 = vpack.c.b16 %v4221, %v4220
      %v4231 = vpack.c.b16 %v4223, %v4222
      %4240 = vmatpush.bf16.msra.mxu0 %v4231
      %4241 = vmatpush.bf16.msra.mxu0 %v4230
      %4242 = vmatpush.bf16.msra.mxu0 %v4229
      %4243 = vmatpush.bf16.msra.mxu0 %v4228
      %4244 = vmatpush.bf16.msra.mxu0 %v4227
      %4245 = vmatpush.bf16.msra.mxu0 %v4226
      %4246 = vmatpush.bf16.msra.mxu0 %v4225
      %4247 = vmatpush.bf16.msra.mxu0 %v4224
      %4248 = vmatmul.bf16.gmra.mxu0 %v4013
      %v4249 = vpop.f32.mrf.mxu0
      %v4250 = vadd.f32 0.0, %v4249
      %v4251 = vpop.f32.mrf.mxu0
      %4252 = vdwg.mxu0
      %v4253 = vadd.f32 %v4172, %v4250
      %s4254 = scalar_lea.vmem %s7, 192
      %v4255 = vld [vmem:[%s4254] sm:$0xf]
      %v4256 = vld [vmem:[%s4254 + $0x4] sm:$0xf]
      %v4257 = vld [vmem:[%s4254 + $0x8] sm:$0xf]
      %v4258 = vld [vmem:[%s4254 + $0xc] sm:$0xf]
      %v4259 = vld [vmem:[%s4254 + $0x10] sm:$0xf]
      %v4260 = vld [vmem:[%s4254 + $0x14] sm:$0xf]
      %v4261 = vld [vmem:[%s4254 + $0x18] sm:$0xf]
      %v4262 = vld [vmem:[%s4254 + $0x1c] sm:$0xf]
      %v4263 = vld [vmem:[%s4254 + $0x20] sm:$0xf]
      %v4264 = vld [vmem:[%s4254 + $0x24] sm:$0xf]
      %v4265 = vld [vmem:[%s4254 + $0x28] sm:$0xf]
      %v4266 = vld [vmem:[%s4254 + $0x2c] sm:$0xf]
      %v4267 = vld [vmem:[%s4254 + $0x30] sm:$0xf]
      %v4268 = vld [vmem:[%s4254 + $0x34] sm:$0xf]
      %v4269 = vld [vmem:[%s4254 + $0x38] sm:$0xf]
      %v4270 = vld [vmem:[%s4254 + $0x3c] sm:$0xf]
      %v4287 = vunpack.c.l.b16 %v4255
      %v4288 = vunpack.c.l.b16 %v4256
      %v4289 = vunpack.c.l.b16 %v4257
      %v4290 = vunpack.c.l.b16 %v4258
      %v4291 = vunpack.c.l.b16 %v4259
      %v4292 = vunpack.c.l.b16 %v4260
      %v4293 = vunpack.c.l.b16 %v4261
      %v4294 = vunpack.c.l.b16 %v4262
      %v4295 = vunpack.c.l.b16 %v4263
      %v4296 = vunpack.c.l.b16 %v4264
      %v4297 = vunpack.c.l.b16 %v4265
      %v4298 = vunpack.c.l.b16 %v4266
      %v4299 = vunpack.c.l.b16 %v4267
      %v4300 = vunpack.c.l.b16 %v4268
      %v4301 = vunpack.c.l.b16 %v4269
      %v4302 = vunpack.c.l.b16 %v4270
      %v4303 = vpack.c.b16 %v4288, %v4287
      %v4304 = vpack.c.b16 %v4290, %v4289
      %v4305 = vpack.c.b16 %v4292, %v4291
      %v4306 = vpack.c.b16 %v4294, %v4293
      %v4307 = vpack.c.b16 %v4296, %v4295
      %v4308 = vpack.c.b16 %v4298, %v4297
      %v4309 = vpack.c.b16 %v4300, %v4299
      %v4310 = vpack.c.b16 %v4302, %v4301
      %4319 = vmatpush.bf16.msra.mxu0 %v4310
      %4320 = vmatpush.bf16.msra.mxu0 %v4309
      %4321 = vmatpush.bf16.msra.mxu0 %v4308
      %4322 = vmatpush.bf16.msra.mxu0 %v4307
      %4323 = vmatpush.bf16.msra.mxu0 %v4306
      %4324 = vmatpush.bf16.msra.mxu0 %v4305
      %4325 = vmatpush.bf16.msra.mxu0 %v4304
      %4326 = vmatpush.bf16.msra.mxu0 %v4303
      %4327 = vmatmul.bf16.gmra.mxu0 %v4014
      %v4328 = vpop.f32.mrf.mxu0
      %v4329 = vadd.f32 0.0, %v4328
      %v4330 = vpop.f32.mrf.mxu0
      %4331 = vdwg.mxu0
      %v4332 = vadd.f32 %v4253, %v4329
      %s4333 = scalar_lea.vmem %s7, 256
      %v4334 = vld [vmem:[%s4333] sm:$0xf]
      %v4335 = vld [vmem:[%s4333 + $0x4] sm:$0xf]
      %v4336 = vld [vmem:[%s4333 + $0x8] sm:$0xf]
      %v4337 = vld [vmem:[%s4333 + $0xc] sm:$0xf]
      %v4338 = vld [vmem:[%s4333 + $0x10] sm:$0xf]
      %v4339 = vld [vmem:[%s4333 + $0x14] sm:$0xf]
      %v4340 = vld [vmem:[%s4333 + $0x18] sm:$0xf]
      %v4341 = vld [vmem:[%s4333 + $0x1c] sm:$0xf]
      %v4342 = vld [vmem:[%s4333 + $0x20] sm:$0xf]
      %v4343 = vld [vmem:[%s4333 + $0x24] sm:$0xf]
      %v4344 = vld [vmem:[%s4333 + $0x28] sm:$0xf]
      %v4345 = vld [vmem:[%s4333 + $0x2c] sm:$0xf]
      %v4346 = vld [vmem:[%s4333 + $0x30] sm:$0xf]
      %v4347 = vld [vmem:[%s4333 + $0x34] sm:$0xf]
      %v4348 = vld [vmem:[%s4333 + $0x38] sm:$0xf]
      %v4349 = vld [vmem:[%s4333 + $0x3c] sm:$0xf]
      %v4366 = vunpack.c.l.b16 %v4334
      %v4367 = vunpack.c.l.b16 %v4335
      %v4368 = vunpack.c.l.b16 %v4336
      %v4369 = vunpack.c.l.b16 %v4337
      %v4370 = vunpack.c.l.b16 %v4338
      %v4371 = vunpack.c.l.b16 %v4339
      %v4372 = vunpack.c.l.b16 %v4340
      %v4373 = vunpack.c.l.b16 %v4341
      %v4374 = vunpack.c.l.b16 %v4342
      %v4375 = vunpack.c.l.b16 %v4343
      %v4376 = vunpack.c.l.b16 %v4344
      %v4377 = vunpack.c.l.b16 %v4345
      %v4378 = vunpack.c.l.b16 %v4346
      %v4379 = vunpack.c.l.b16 %v4347
      %v4380 = vunpack.c.l.b16 %v4348
      %v4381 = vunpack.c.l.b16 %v4349
      %v4382 = vpack.c.b16 %v4367, %v4366
      %v4383 = vpack.c.b16 %v4369, %v4368
      %v4384 = vpack.c.b16 %v4371, %v4370
      %v4385 = vpack.c.b16 %v4373, %v4372
      %v4386 = vpack.c.b16 %v4375, %v4374
      %v4387 = vpack.c.b16 %v4377, %v4376
      %v4388 = vpack.c.b16 %v4379, %v4378
      %v4389 = vpack.c.b16 %v4381, %v4380
      %4398 = vmatpush.bf16.msra.mxu0 %v4389
      %4399 = vmatpush.bf16.msra.mxu0 %v4388
      %4400 = vmatpush.bf16.msra.mxu0 %v4387
      %4401 = vmatpush.bf16.msra.mxu0 %v4386
      %4402 = vmatpush.bf16.msra.mxu0 %v4385
      %4403 = vmatpush.bf16.msra.mxu0 %v4384
      %4404 = vmatpush.bf16.msra.mxu0 %v4383
      %4405 = vmatpush.bf16.msra.mxu0 %v4382
      %4406 = vmatmul.bf16.gmra.mxu0 %v4015
      %v4407 = vpop.f32.mrf.mxu0
      %v4408 = vadd.f32 0.0, %v4407
      %v4409 = vpop.f32.mrf.mxu0
      %4410 = vdwg.mxu0
      %v4411 = vadd.f32 %v4332, %v4408
      %s4412 = scalar_lea.vmem %s7, 320
      %v4413 = vld [vmem:[%s4412] sm:$0xf]
      %v4414 = vld [vmem:[%s4412 + $0x4] sm:$0xf]
      %v4415 = vld [vmem:[%s4412 + $0x8] sm:$0xf]
      %v4416 = vld [vmem:[%s4412 + $0xc] sm:$0xf]
      %v4417 = vld [vmem:[%s4412 + $0x10] sm:$0xf]
      %v4418 = vld [vmem:[%s4412 + $0x14] sm:$0xf]
      %v4419 = vld [vmem:[%s4412 + $0x18] sm:$0xf]
      %v4420 = vld [vmem:[%s4412 + $0x1c] sm:$0xf]
      %v4421 = vld [vmem:[%s4412 + $0x20] sm:$0xf]
      %v4422 = vld [vmem:[%s4412 + $0x24] sm:$0xf]
      %v4423 = vld [vmem:[%s4412 + $0x28] sm:$0xf]
      %v4424 = vld [vmem:[%s4412 + $0x2c] sm:$0xf]
      %v4425 = vld [vmem:[%s4412 + $0x30] sm:$0xf]
      %v4426 = vld [vmem:[%s4412 + $0x34] sm:$0xf]
      %v4427 = vld [vmem:[%s4412 + $0x38] sm:$0xf]
      %v4428 = vld [vmem:[%s4412 + $0x3c] sm:$0xf]
      %v4445 = vunpack.c.l.b16 %v4413
      %v4446 = vunpack.c.l.b16 %v4414
      %v4447 = vunpack.c.l.b16 %v4415
      %v4448 = vunpack.c.l.b16 %v4416
      %v4449 = vunpack.c.l.b16 %v4417
      %v4450 = vunpack.c.l.b16 %v4418
      %v4451 = vunpack.c.l.b16 %v4419
      %v4452 = vunpack.c.l.b16 %v4420
      %v4453 = vunpack.c.l.b16 %v4421
      %v4454 = vunpack.c.l.b16 %v4422
      %v4455 = vunpack.c.l.b16 %v4423
      %v4456 = vunpack.c.l.b16 %v4424
      %v4457 = vunpack.c.l.b16 %v4425
      %v4458 = vunpack.c.l.b16 %v4426
      %v4459 = vunpack.c.l.b16 %v4427
      %v4460 = vunpack.c.l.b16 %v4428
      %v4461 = vpack.c.b16 %v4446, %v4445
      %v4462 = vpack.c.b16 %v4448, %v4447
      %v4463 = vpack.c.b16 %v4450, %v4449
      %v4464 = vpack.c.b16 %v4452, %v4451
      %v4465 = vpack.c.b16 %v4454, %v4453
      %v4466 = vpack.c.b16 %v4456, %v4455
      %v4467 = vpack.c.b16 %v4458, %v4457
      %v4468 = vpack.c.b16 %v4460, %v4459
      %4477 = vmatpush.bf16.msra.mxu0 %v4468
      %4478 = vmatpush.bf16.msra.mxu0 %v4467
      %4479 = vmatpush.bf16.msra.mxu0 %v4466
      %4480 = vmatpush.bf16.msra.mxu0 %v4465
      %4481 = vmatpush.bf16.msra.mxu0 %v4464
      %4482 = vmatpush.bf16.msra.mxu0 %v4463
      %4483 = vmatpush.bf16.msra.mxu0 %v4462
      %4484 = vmatpush.bf16.msra.mxu0 %v4461
      %4485 = vmatmul.bf16.gmra.mxu0 %v4016
      %v4486 = vpop.f32.mrf.mxu0
      %v4487 = vadd.f32 0.0, %v4486
      %v4488 = vpop.f32.mrf.mxu0
      %4489 = vdwg.mxu0
      %v4490 = vadd.f32 %v4411, %v4487
      %s4491 = scalar_lea.vmem %s7, 384
      %v4492 = vld [vmem:[%s4491] sm:$0xf]
      %v4493 = vld [vmem:[%s4491 + $0x4] sm:$0xf]
      %v4494 = vld [vmem:[%s4491 + $0x8] sm:$0xf]
      %v4495 = vld [vmem:[%s4491 + $0xc] sm:$0xf]
      %v4496 = vld [vmem:[%s4491 + $0x10] sm:$0xf]
      %v4497 = vld [vmem:[%s4491 + $0x14] sm:$0xf]
      %v4498 = vld [vmem:[%s4491 + $0x18] sm:$0xf]
      %v4499 = vld [vmem:[%s4491 + $0x1c] sm:$0xf]
      %v4500 = vld [vmem:[%s4491 + $0x20] sm:$0xf]
      %v4501 = vld [vmem:[%s4491 + $0x24] sm:$0xf]
      %v4502 = vld [vmem:[%s4491 + $0x28] sm:$0xf]
      %v4503 = vld [vmem:[%s4491 + $0x2c] sm:$0xf]
      %v4504 = vld [vmem:[%s4491 + $0x30] sm:$0xf]
      %v4505 = vld [vmem:[%s4491 + $0x34] sm:$0xf]
      %v4506 = vld [vmem:[%s4491 + $0x38] sm:$0xf]
      %v4507 = vld [vmem:[%s4491 + $0x3c] sm:$0xf]
      %v4524 = vunpack.c.l.b16 %v4492
      %v4525 = vunpack.c.l.b16 %v4493
      %v4526 = vunpack.c.l.b16 %v4494
      %v4527 = vunpack.c.l.b16 %v4495
      %v4528 = vunpack.c.l.b16 %v4496
      %v4529 = vunpack.c.l.b16 %v4497
      %v4530 = vunpack.c.l.b16 %v4498
      %v4531 = vunpack.c.l.b16 %v4499
      %v4532 = vunpack.c.l.b16 %v4500
      %v4533 = vunpack.c.l.b16 %v4501
      %v4534 = vunpack.c.l.b16 %v4502
      %v4535 = vunpack.c.l.b16 %v4503
      %v4536 = vunpack.c.l.b16 %v4504
      %v4537 = vunpack.c.l.b16 %v4505
      %v4538 = vunpack.c.l.b16 %v4506
      %v4539 = vunpack.c.l.b16 %v4507
      %v4540 = vpack.c.b16 %v4525, %v4524
      %v4541 = vpack.c.b16 %v4527, %v4526
      %v4542 = vpack.c.b16 %v4529, %v4528
      %v4543 = vpack.c.b16 %v4531, %v4530
      %v4544 = vpack.c.b16 %v4533, %v4532
      %v4545 = vpack.c.b16 %v4535, %v4534
      %v4546 = vpack.c.b16 %v4537, %v4536
      %v4547 = vpack.c.b16 %v4539, %v4538
      %4556 = vmatpush.bf16.msra.mxu0 %v4547
      %4557 = vmatpush.bf16.msra.mxu0 %v4546
      %4558 = vmatpush.bf16.msra.mxu0 %v4545
      %4559 = vmatpush.bf16.msra.mxu0 %v4544
      %4560 = vmatpush.bf16.msra.mxu0 %v4543
      %4561 = vmatpush.bf16.msra.mxu0 %v4542
      %4562 = vmatpush.bf16.msra.mxu0 %v4541
      %4563 = vmatpush.bf16.msra.mxu0 %v4540
      %4564 = vmatmul.bf16.gmra.mxu0 %v4017
      %v4565 = vpop.f32.mrf.mxu0
      %v4566 = vadd.f32 0.0, %v4565
      %v4567 = vpop.f32.mrf.mxu0
      %4568 = vdwg.mxu0
      %v4569 = vadd.f32 %v4490, %v4566
      %s4570 = scalar_lea.vmem %s7, 448
      %v4571 = vld [vmem:[%s4570] sm:$0xf]
      %v4572 = vld [vmem:[%s4570 + $0x4] sm:$0xf]
      %v4573 = vld [vmem:[%s4570 + $0x8] sm:$0xf]
      %v4574 = vld [vmem:[%s4570 + $0xc] sm:$0xf]
      %v4575 = vld [vmem:[%s4570 + $0x10] sm:$0xf]
      %v4576 = vld [vmem:[%s4570 + $0x14] sm:$0xf]
      %v4577 = vld [vmem:[%s4570 + $0x18] sm:$0xf]
      %v4578 = vld [vmem:[%s4570 + $0x1c] sm:$0xf]
      %v4579 = vld [vmem:[%s4570 + $0x20] sm:$0xf]
      %v4580 = vld [vmem:[%s4570 + $0x24] sm:$0xf]
      %v4581 = vld [vmem:[%s4570 + $0x28] sm:$0xf]
      %v4582 = vld [vmem:[%s4570 + $0x2c] sm:$0xf]
      %v4583 = vld [vmem:[%s4570 + $0x30] sm:$0xf]
      %v4584 = vld [vmem:[%s4570 + $0x34] sm:$0xf]
      %v4585 = vld [vmem:[%s4570 + $0x38] sm:$0xf]
      %v4586 = vld [vmem:[%s4570 + $0x3c] sm:$0xf]
      %v4603 = vunpack.c.l.b16 %v4571
      %v4604 = vunpack.c.l.b16 %v4572
      %v4605 = vunpack.c.l.b16 %v4573
      %v4606 = vunpack.c.l.b16 %v4574
      %v4607 = vunpack.c.l.b16 %v4575
      %v4608 = vunpack.c.l.b16 %v4576
      %v4609 = vunpack.c.l.b16 %v4577
      %v4610 = vunpack.c.l.b16 %v4578
      %v4611 = vunpack.c.l.b16 %v4579
      %v4612 = vunpack.c.l.b16 %v4580
      %v4613 = vunpack.c.l.b16 %v4581
      %v4614 = vunpack.c.l.b16 %v4582
      %v4615 = vunpack.c.l.b16 %v4583
      %v4616 = vunpack.c.l.b16 %v4584
      %v4617 = vunpack.c.l.b16 %v4585
      %v4618 = vunpack.c.l.b16 %v4586
      %v4619 = vpack.c.b16 %v4604, %v4603
      %v4620 = vpack.c.b16 %v4606, %v4605
      %v4621 = vpack.c.b16 %v4608, %v4607
      %v4622 = vpack.c.b16 %v4610, %v4609
      %v4623 = vpack.c.b16 %v4612, %v4611
      %v4624 = vpack.c.b16 %v4614, %v4613
      %v4625 = vpack.c.b16 %v4616, %v4615
      %v4626 = vpack.c.b16 %v4618, %v4617
      %4635 = vmatpush.bf16.msra.mxu0 %v4626
      %4636 = vmatpush.bf16.msra.mxu0 %v4625
      %4637 = vmatpush.bf16.msra.mxu0 %v4624
      %4638 = vmatpush.bf16.msra.mxu0 %v4623
      %4639 = vmatpush.bf16.msra.mxu0 %v4622
      %4640 = vmatpush.bf16.msra.mxu0 %v4621
      %4641 = vmatpush.bf16.msra.mxu0 %v4620
      %4642 = vmatpush.bf16.msra.mxu0 %v4619
      %4643 = vmatmul.bf16.gmra.mxu0 %v4018
      %v4644 = vpop.f32.mrf.mxu0
      %v4645 = vadd.f32 0.0, %v4644
      %v4646 = vpop.f32.mrf.mxu0
      %4647 = vdwg.mxu0
      %v4648 = vadd.f32 %v4569, %v4645
      %s4649 = scalar_lea.vmem %s7, 512
      %v4650 = vld [vmem:[%s4649] sm:$0xf]
      %v4651 = vld [vmem:[%s4649 + $0x4] sm:$0xf]
      %v4652 = vld [vmem:[%s4649 + $0x8] sm:$0xf]
      %v4653 = vld [vmem:[%s4649 + $0xc] sm:$0xf]
      %v4654 = vld [vmem:[%s4649 + $0x10] sm:$0xf]
      %v4655 = vld [vmem:[%s4649 + $0x14] sm:$0xf]
      %v4656 = vld [vmem:[%s4649 + $0x18] sm:$0xf]
      %v4657 = vld [vmem:[%s4649 + $0x1c] sm:$0xf]
      %v4658 = vld [vmem:[%s4649 + $0x20] sm:$0xf]
      %v4659 = vld [vmem:[%s4649 + $0x24] sm:$0xf]
      %v4660 = vld [vmem:[%s4649 + $0x28] sm:$0xf]
      %v4661 = vld [vmem:[%s4649 + $0x2c] sm:$0xf]
      %v4662 = vld [vmem:[%s4649 + $0x30] sm:$0xf]
      %v4663 = vld [vmem:[%s4649 + $0x34] sm:$0xf]
      %v4664 = vld [vmem:[%s4649 + $0x38] sm:$0xf]
      %v4665 = vld [vmem:[%s4649 + $0x3c] sm:$0xf]
      %v4682 = vunpack.c.l.b16 %v4650
      %v4683 = vunpack.c.l.b16 %v4651
      %v4684 = vunpack.c.l.b16 %v4652
      %v4685 = vunpack.c.l.b16 %v4653
      %v4686 = vunpack.c.l.b16 %v4654
      %v4687 = vunpack.c.l.b16 %v4655
      %v4688 = vunpack.c.l.b16 %v4656
      %v4689 = vunpack.c.l.b16 %v4657
      %v4690 = vunpack.c.l.b16 %v4658
      %v4691 = vunpack.c.l.b16 %v4659
      %v4692 = vunpack.c.l.b16 %v4660
      %v4693 = vunpack.c.l.b16 %v4661
      %v4694 = vunpack.c.l.b16 %v4662
      %v4695 = vunpack.c.l.b16 %v4663
      %v4696 = vunpack.c.l.b16 %v4664
      %v4697 = vunpack.c.l.b16 %v4665
      %v4698 = vpack.c.b16 %v4683, %v4682
      %v4699 = vpack.c.b16 %v4685, %v4684
      %v4700 = vpack.c.b16 %v4687, %v4686
      %v4701 = vpack.c.b16 %v4689, %v4688
      %v4702 = vpack.c.b16 %v4691, %v4690
      %v4703 = vpack.c.b16 %v4693, %v4692
      %v4704 = vpack.c.b16 %v4695, %v4694
      %v4705 = vpack.c.b16 %v4697, %v4696
      %4714 = vmatpush.bf16.msra.mxu0 %v4705
      %4715 = vmatpush.bf16.msra.mxu0 %v4704
      %4716 = vmatpush.bf16.msra.mxu0 %v4703
      %4717 = vmatpush.bf16.msra.mxu0 %v4702
      %4718 = vmatpush.bf16.msra.mxu0 %v4701
      %4719 = vmatpush.bf16.msra.mxu0 %v4700
      %4720 = vmatpush.bf16.msra.mxu0 %v4699
      %4721 = vmatpush.bf16.msra.mxu0 %v4698
      %4722 = vmatmul.bf16.gmra.mxu0 %v4019
      %v4723 = vpop.f32.mrf.mxu0
      %v4724 = vadd.f32 0.0, %v4723
      %v4725 = vpop.f32.mrf.mxu0
      %4726 = vdwg.mxu0
      %v4727 = vadd.f32 %v4648, %v4724
      %v4728 = vld [vmem:[%s8] sm:$0x1]
      %v4730 = vperm.slane %v4728, 0
      %v4732 = vadd.f32 %v4727, %v4730
      %v4733 = vmax.f32 %v4732, 0.0
      %v4734 = vpack.c.bf16 %v4733, %v4733
      %v4735 = vld [vmem:[%s10] sm:$0xff]
      %v4736 = vld [vmem:[%s10 + $0x8] sm:$0xff]
      %v4737 = vld [vmem:[%s10 + $0x10] sm:$0xff]
      %v4738 = vld [vmem:[%s10 + $0x18] sm:$0xff]
      %v4739 = vld [vmem:[%s10 + $0x20] sm:$0xff]
      %v4740 = vld [vmem:[%s10 + $0x28] sm:$0xff]
      %v4741 = vld [vmem:[%s10 + $0x30] sm:$0xff]
      %v4742 = vld [vmem:[%s10 + $0x38] sm:$0xff]
      %v4743 = vld [vmem:[%s10 + $0x40] sm:$0xff]
      %v4744 = vld [vmem:[%s10 + $0x48] sm:$0xff]
      %v4745 = vld [vmem:[%s10 + $0x50] sm:$0xff]
      %v4746 = vld [vmem:[%s10 + $0x58] sm:$0xff]
      %v4747 = vld [vmem:[%s10 + $0x60] sm:$0xff]
      %v4748 = vld [vmem:[%s10 + $0x68] sm:$0xff]
      %v4749 = vld [vmem:[%s10 + $0x70] sm:$0xff]
      %v4750 = vld [vmem:[%s10 + $0x78] sm:$0xff]
      %v4751 = vld [vmem:[%s10 + $0x80] sm:$0xff]
      %v4752 = vld [vmem:[%s10 + $0x88] sm:$0xff]
      %v4753 = vld [vmem:[%s10 + $0x90] sm:$0xff]
      %v4754 = vld [vmem:[%s10 + $0x98] sm:$0xff]
      %v4755 = vld [vmem:[%s10 + $0xa0] sm:$0xff]
      %v4756 = vld [vmem:[%s10 + $0xa8] sm:$0xff]
      %v4757 = vld [vmem:[%s10 + $0xb0] sm:$0xff]
      %v4758 = vld [vmem:[%s10 + $0xb8] sm:$0xff]
      %v4759 = vld [vmem:[%s10 + $0xc0] sm:$0xff]
      %v4760 = vld [vmem:[%s10 + $0xc8] sm:$0xff]
      %v4761 = vld [vmem:[%s10 + $0xd0] sm:$0xff]
      %v4762 = vld [vmem:[%s10 + $0xd8] sm:$0xff]
      %v4763 = vld [vmem:[%s10 + $0xe0] sm:$0xff]
      %v4764 = vld [vmem:[%s10 + $0xe8] sm:$0xff]
      %v4765 = vld [vmem:[%s10 + $0xf0] sm:$0xff]
      %v4766 = vld [vmem:[%s10 + $0xf8] sm:$0xff]
      %v4767 = vld [vmem:[%s11] sm:$0xf]
      %v4769 = vperm.slane %v4767, 0
      %v4770 = vperm.slane %v4767, 1
      %v4771 = vperm.slane %v4767, 2
      %v4772 = vperm.slane %v4767, 3
      %v4809 = vunpack.c.l.b16 %v4735
      %v4810 = vunpack.c.h.b16 %v4735
      %v4811 = vunpack.c.l.b16 %v4736
      %v4812 = vunpack.c.h.b16 %v4736
      %v4813 = vunpack.c.l.b16 %v4737
      %v4814 = vunpack.c.h.b16 %v4737
      %v4815 = vunpack.c.l.b16 %v4738
      %v4816 = vunpack.c.h.b16 %v4738
      %v4817 = vunpack.c.l.b16 %v4739
      %v4818 = vunpack.c.h.b16 %v4739
      %v4819 = vunpack.c.l.b16 %v4740
      %v4820 = vunpack.c.h.b16 %v4740
      %v4821 = vunpack.c.l.b16 %v4741
      %v4822 = vunpack.c.h.b16 %v4741
      %v4823 = vunpack.c.l.b16 %v4742
      %v4824 = vunpack.c.h.b16 %v4742
      %v4825 = vunpack.c.l.b16 %v4743
      %v4826 = vunpack.c.h.b16 %v4743
      %v4827 = vunpack.c.l.b16 %v4744
      %v4828 = vunpack.c.h.b16 %v4744
      %v4829 = vunpack.c.l.b16 %v4745
      %v4830 = vunpack.c.h.b16 %v4745
      %v4831 = vunpack.c.l.b16 %v4746
      %v4832 = vunpack.c.h.b16 %v4746
      %v4833 = vunpack.c.l.b16 %v4747
      %v4834 = vunpack.c.h.b16 %v4747
      %v4835 = vunpack.c.l.b16 %v4748
      %v4836 = vunpack.c.h.b16 %v4748
      %v4837 = vunpack.c.l.b16 %v4749
      %v4838 = vunpack.c.h.b16 %v4749
      %v4839 = vunpack.c.l.b16 %v4750
      %v4840 = vunpack.c.h.b16 %v4750
      %v4841 = vunpack.c.l.b16 %v4751
      %v4842 = vunpack.c.h.b16 %v4751
      %v4843 = vunpack.c.l.b16 %v4752
      %v4844 = vunpack.c.h.b16 %v4752
      %v4845 = vunpack.c.l.b16 %v4753
      %v4846 = vunpack.c.h.b16 %v4753
      %v4847 = vunpack.c.l.b16 %v4754
      %v4848 = vunpack.c.h.b16 %v4754
      %v4849 = vunpack.c.l.b16 %v4755
      %v4850 = vunpack.c.h.b16 %v4755
      %v4851 = vunpack.c.l.b16 %v4756
      %v4852 = vunpack.c.h.b16 %v4756
      %v4853 = vunpack.c.l.b16 %v4757
      %v4854 = vunpack.c.h.b16 %v4757
      %v4855 = vunpack.c.l.b16 %v4758
      %v4856 = vunpack.c.h.b16 %v4758
      %v4857 = vunpack.c.l.b16 %v4759
      %v4858 = vunpack.c.h.b16 %v4759
      %v4859 = vunpack.c.l.b16 %v4760
      %v4860 = vunpack.c.h.b16 %v4760
      %v4861 = vunpack.c.l.b16 %v4761
      %v4862 = vunpack.c.h.b16 %v4761
      %v4863 = vunpack.c.l.b16 %v4762
      %v4864 = vunpack.c.h.b16 %v4762
      %v4865 = vunpack.c.l.b16 %v4763
      %v4866 = vunpack.c.h.b16 %v4763
      %v4867 = vunpack.c.l.b16 %v4764
      %v4868 = vunpack.c.h.b16 %v4764
      %v4869 = vunpack.c.l.b16 %v4765
      %v4870 = vunpack.c.h.b16 %v4765
      %v4871 = vunpack.c.l.b16 %v4766
      %v4872 = vunpack.c.h.b16 %v4766
      %v4873 = vpack.c.b16 %v4813, %v4809
      %v4874 = vpack.c.b16 %v4814, %v4810
      %v4875 = vpack.c.b16 %v4815, %v4811
      %v4876 = vpack.c.b16 %v4816, %v4812
      %v4877 = vpack.c.b16 %v4821, %v4817
      %v4878 = vpack.c.b16 %v4822, %v4818
      %v4879 = vpack.c.b16 %v4823, %v4819
      %v4880 = vpack.c.b16 %v4824, %v4820
      %v4881 = vpack.c.b16 %v4829, %v4825
      %v4882 = vpack.c.b16 %v4830, %v4826
      %v4883 = vpack.c.b16 %v4831, %v4827
      %v4884 = vpack.c.b16 %v4832, %v4828
      %v4885 = vpack.c.b16 %v4837, %v4833
      %v4886 = vpack.c.b16 %v4838, %v4834
      %v4887 = vpack.c.b16 %v4839, %v4835
      %v4888 = vpack.c.b16 %v4840, %v4836
      %v4889 = vpack.c.b16 %v4845, %v4841
      %v4890 = vpack.c.b16 %v4846, %v4842
      %v4891 = vpack.c.b16 %v4847, %v4843
      %v4892 = vpack.c.b16 %v4848, %v4844
      %v4893 = vpack.c.b16 %v4853, %v4849
      %v4894 = vpack.c.b16 %v4854, %v4850
      %v4895 = vpack.c.b16 %v4855, %v4851
      %v4896 = vpack.c.b16 %v4856, %v4852
      %v4897 = vpack.c.b16 %v4861, %v4857
      %v4898 = vpack.c.b16 %v4862, %v4858
      %v4899 = vpack.c.b16 %v4863, %v4859
      %v4900 = vpack.c.b16 %v4864, %v4860
      %v4901 = vpack.c.b16 %v4869, %v4865
      %v4902 = vpack.c.b16 %v4870, %v4866
      %v4903 = vpack.c.b16 %v4871, %v4867
      %v4904 = vpack.c.b16 %v4872, %v4868
      %4937 = vmatpush.bf16.msra.mxu0 %v4901
      %4938 = vmatpush.bf16.msra.mxu0 %v4897
      %4939 = vmatpush.bf16.msra.mxu0 %v4893
      %4940 = vmatpush.bf16.msra.mxu0 %v4889
      %4941 = vmatpush.bf16.msra.mxu0 %v4885
      %4942 = vmatpush.bf16.msra.mxu0 %v4881
      %4943 = vmatpush.bf16.msra.mxu0 %v4877
      %4944 = vmatpush.bf16.msra.mxu0 %v4873
      %4945 = vmatmul.bf16.gmra.mxu0 %v4734
      %v4946 = vpop.f32.mrf.mxu0
      %v4947 = vadd.f32 %v4769, %v4946
      %v4948 = vpop.f32.mrf.mxu0
      %4949 = vdwg.mxu0
      %4950 = vmatpush.bf16.msra.mxu0 %v4902
      %4951 = vmatpush.bf16.msra.mxu0 %v4898
      %4952 = vmatpush.bf16.msra.mxu0 %v4894
      %4953 = vmatpush.bf16.msra.mxu0 %v4890
      %4954 = vmatpush.bf16.msra.mxu0 %v4886
      %4955 = vmatpush.bf16.msra.mxu0 %v4882
      %4956 = vmatpush.bf16.msra.mxu0 %v4878
      %4957 = vmatpush.bf16.msra.mxu0 %v4874
      %4958 = vmatmul.bf16.gmra.mxu0 %v4734
      %v4959 = vpop.f32.mrf.mxu0
      %v4960 = vadd.f32 %v4770, %v4959
      %v4961 = vpop.f32.mrf.mxu0
      %4962 = vdwg.mxu0
      %4963 = vmatpush.bf16.msra.mxu0 %v4903
      %4964 = vmatpush.bf16.msra.mxu0 %v4899
      %4965 = vmatpush.bf16.msra.mxu0 %v4895
      %4966 = vmatpush.bf16.msra.mxu0 %v4891
      %4967 = vmatpush.bf16.msra.mxu0 %v4887
      %4968 = vmatpush.bf16.msra.mxu0 %v4883
      %4969 = vmatpush.bf16.msra.mxu0 %v4879
      %4970 = vmatpush.bf16.msra.mxu0 %v4875
      %4971 = vmatmul.bf16.gmra.mxu0 %v4734
      %v4972 = vpop.f32.mrf.mxu0
      %v4973 = vadd.f32 %v4771, %v4972
      %v4974 = vpop.f32.mrf.mxu0
      %4975 = vdwg.mxu0
      %4976 = vmatpush.bf16.msra.mxu0 %v4904
      %4977 = vmatpush.bf16.msra.mxu0 %v4900
      %4978 = vmatpush.bf16.msra.mxu0 %v4896
      %4979 = vmatpush.bf16.msra.mxu0 %v4892
      %4980 = vmatpush.bf16.msra.mxu0 %v4888
      %4981 = vmatpush.bf16.msra.mxu0 %v4884
      %4982 = vmatpush.bf16.msra.mxu0 %v4880
      %4983 = vmatpush.bf16.msra.mxu0 %v4876
      %4984 = vmatmul.bf16.gmra.mxu0 %v4734
      %v4985 = vpop.f32.mrf.mxu0
      %v4986 = vadd.f32 %v4772, %v4985
      %v4987 = vpop.f32.mrf.mxu0
      %4988 = vdwg.mxu0
      %v4989 = vmax.f32 %v4947, 0.0
      %v4990 = vmax.f32 %v4960, 0.0
      %v4991 = vmax.f32 %v4973, 0.0
      %v4992 = vmax.f32 %v4986, 0.0
      %v4993 = vpack.c.bf16 %v4989, %v4989
      %v4994 = vpack.c.bf16 %v4990, %v4990
      %v4995 = vpack.c.bf16 %v4991, %v4991
      %v4996 = vpack.c.bf16 %v4992, %v4992
      %v4997 = vld [vmem:[%s12] sm:$0xf]
      %v4998 = vld [vmem:[%s12 + $0x4] sm:$0xf]
      %v4999 = vld [vmem:[%s12 + $0x8] sm:$0xf]
      %v5000 = vld [vmem:[%s12 + $0xc] sm:$0xf]
      %v5001 = vld [vmem:[%s12 + $0x10] sm:$0xf]
      %v5002 = vld [vmem:[%s12 + $0x14] sm:$0xf]
      %v5003 = vld [vmem:[%s12 + $0x18] sm:$0xf]
      %v5004 = vld [vmem:[%s12 + $0x1c] sm:$0xf]
      %v5005 = vld [vmem:[%s12 + $0x20] sm:$0xf]
      %v5006 = vld [vmem:[%s12 + $0x24] sm:$0xf]
      %v5007 = vld [vmem:[%s12 + $0x28] sm:$0xf]
      %v5008 = vld [vmem:[%s12 + $0x2c] sm:$0xf]
      %v5009 = vld [vmem:[%s12 + $0x30] sm:$0xf]
      %v5010 = vld [vmem:[%s12 + $0x34] sm:$0xf]
      %v5011 = vld [vmem:[%s12 + $0x38] sm:$0xf]
      %v5012 = vld [vmem:[%s12 + $0x3c] sm:$0xf]
      %v5013 = vld [vmem:[%s12 + $0x40] sm:$0xf]
      %v5014 = vld [vmem:[%s12 + $0x44] sm:$0xf]
      %v5015 = vld [vmem:[%s12 + $0x48] sm:$0xf]
      %v5016 = vld [vmem:[%s12 + $0x4c] sm:$0xf]
      %v5017 = vld [vmem:[%s12 + $0x50] sm:$0xf]
      %v5018 = vld [vmem:[%s12 + $0x54] sm:$0xf]
      %v5019 = vld [vmem:[%s12 + $0x58] sm:$0xf]
      %v5020 = vld [vmem:[%s12 + $0x5c] sm:$0xf]
      %v5021 = vld [vmem:[%s12 + $0x60] sm:$0xf]
      %v5022 = vld [vmem:[%s12 + $0x64] sm:$0xf]
      %v5023 = vld [vmem:[%s12 + $0x68] sm:$0xf]
      %v5024 = vld [vmem:[%s12 + $0x6c] sm:$0xf]
      %v5025 = vld [vmem:[%s12 + $0x70] sm:$0xf]
      %v5026 = vld [vmem:[%s12 + $0x74] sm:$0xf]
      %v5027 = vld [vmem:[%s12 + $0x78] sm:$0xf]
      %v5028 = vld [vmem:[%s12 + $0x7c] sm:$0xf]
      %v5029 = vld [vmem:[%s12 + $0x80] sm:$0xf]
      %v5030 = vld [vmem:[%s12 + $0x84] sm:$0xf]
      %v5031 = vld [vmem:[%s12 + $0x88] sm:$0xf]
      %v5032 = vld [vmem:[%s12 + $0x8c] sm:$0xf]
      %v5033 = vld [vmem:[%s12 + $0x90] sm:$0xf]
      %v5034 = vld [vmem:[%s12 + $0x94] sm:$0xf]
      %v5035 = vld [vmem:[%s12 + $0x98] sm:$0xf]
      %v5036 = vld [vmem:[%s12 + $0x9c] sm:$0xf]
      %v5037 = vld [vmem:[%s12 + $0xa0] sm:$0xf]
      %v5038 = vld [vmem:[%s12 + $0xa4] sm:$0xf]
      %v5039 = vld [vmem:[%s12 + $0xa8] sm:$0xf]
      %v5040 = vld [vmem:[%s12 + $0xac] sm:$0xf]
      %v5041 = vld [vmem:[%s12 + $0xb0] sm:$0xf]
      %v5042 = vld [vmem:[%s12 + $0xb4] sm:$0xf]
      %v5043 = vld [vmem:[%s12 + $0xb8] sm:$0xf]
      %v5044 = vld [vmem:[%s12 + $0xbc] sm:$0xf]
      %v5045 = vld [vmem:[%s12 + $0xc0] sm:$0xf]
      %v5046 = vld [vmem:[%s12 + $0xc4] sm:$0xf]
      %v5047 = vld [vmem:[%s12 + $0xc8] sm:$0xf]
      %v5048 = vld [vmem:[%s12 + $0xcc] sm:$0xf]
      %v5049 = vld [vmem:[%s12 + $0xd0] sm:$0xf]
      %v5050 = vld [vmem:[%s12 + $0xd4] sm:$0xf]
      %v5051 = vld [vmem:[%s12 + $0xd8] sm:$0xf]
      %v5052 = vld [vmem:[%s12 + $0xdc] sm:$0xf]
      %v5053 = vld [vmem:[%s12 + $0xe0] sm:$0xf]
      %v5054 = vld [vmem:[%s12 + $0xe4] sm:$0xf]
      %v5055 = vld [vmem:[%s12 + $0xe8] sm:$0xf]
      %v5056 = vld [vmem:[%s12 + $0xec] sm:$0xf]
      %v5057 = vld [vmem:[%s12 + $0xf0] sm:$0xf]
      %v5058 = vld [vmem:[%s12 + $0xf4] sm:$0xf]
      %v5059 = vld [vmem:[%s12 + $0xf8] sm:$0xf]
      %v5060 = vld [vmem:[%s12 + $0xfc] sm:$0xf]
      %v5061 = vld [vmem:[%s13] sm:$0x1]
      %v5063 = vperm.slane %v5061, 0
      %v5129 = vunpack.c.l.b16 %v4997
      %v5130 = vunpack.c.l.b16 %v4998
      %v5131 = vunpack.c.l.b16 %v4999
      %v5132 = vunpack.c.l.b16 %v5000
      %v5133 = vunpack.c.l.b16 %v5001
      %v5134 = vunpack.c.l.b16 %v5002
      %v5135 = vunpack.c.l.b16 %v5003
      %v5136 = vunpack.c.l.b16 %v5004
      %v5137 = vunpack.c.l.b16 %v5005
      %v5138 = vunpack.c.l.b16 %v5006
      %v5139 = vunpack.c.l.b16 %v5007
      %v5140 = vunpack.c.l.b16 %v5008
      %v5141 = vunpack.c.l.b16 %v5009
      %v5142 = vunpack.c.l.b16 %v5010
      %v5143 = vunpack.c.l.b16 %v5011
      %v5144 = vunpack.c.l.b16 %v5012
      %v5145 = vunpack.c.l.b16 %v5013
      %v5146 = vunpack.c.l.b16 %v5014
      %v5147 = vunpack.c.l.b16 %v5015
      %v5148 = vunpack.c.l.b16 %v5016
      %v5149 = vunpack.c.l.b16 %v5017
      %v5150 = vunpack.c.l.b16 %v5018
      %v5151 = vunpack.c.l.b16 %v5019
      %v5152 = vunpack.c.l.b16 %v5020
      %v5153 = vunpack.c.l.b16 %v5021
      %v5154 = vunpack.c.l.b16 %v5022
      %v5155 = vunpack.c.l.b16 %v5023
      %v5156 = vunpack.c.l.b16 %v5024
      %v5157 = vunpack.c.l.b16 %v5025
      %v5158 = vunpack.c.l.b16 %v5026
      %v5159 = vunpack.c.l.b16 %v5027
      %v5160 = vunpack.c.l.b16 %v5028
      %v5161 = vunpack.c.l.b16 %v5029
      %v5162 = vunpack.c.l.b16 %v5030
      %v5163 = vunpack.c.l.b16 %v5031
      %v5164 = vunpack.c.l.b16 %v5032
      %v5165 = vunpack.c.l.b16 %v5033
      %v5166 = vunpack.c.l.b16 %v5034
      %v5167 = vunpack.c.l.b16 %v5035
      %v5168 = vunpack.c.l.b16 %v5036
      %v5169 = vunpack.c.l.b16 %v5037
      %v5170 = vunpack.c.l.b16 %v5038
      %v5171 = vunpack.c.l.b16 %v5039
      %v5172 = vunpack.c.l.b16 %v5040
      %v5173 = vunpack.c.l.b16 %v5041
      %v5174 = vunpack.c.l.b16 %v5042
      %v5175 = vunpack.c.l.b16 %v5043
      %v5176 = vunpack.c.l.b16 %v5044
      %v5177 = vunpack.c.l.b16 %v5045
      %v5178 = vunpack.c.l.b16 %v5046
      %v5179 = vunpack.c.l.b16 %v5047
      %v5180 = vunpack.c.l.b16 %v5048
      %v5181 = vunpack.c.l.b16 %v5049
      %v5182 = vunpack.c.l.b16 %v5050
      %v5183 = vunpack.c.l.b16 %v5051
      %v5184 = vunpack.c.l.b16 %v5052
      %v5185 = vunpack.c.l.b16 %v5053
      %v5186 = vunpack.c.l.b16 %v5054
      %v5187 = vunpack.c.l.b16 %v5055
      %v5188 = vunpack.c.l.b16 %v5056
      %v5189 = vunpack.c.l.b16 %v5057
      %v5190 = vunpack.c.l.b16 %v5058
      %v5191 = vunpack.c.l.b16 %v5059
      %v5192 = vunpack.c.l.b16 %v5060
      %v5193 = vpack.c.b16 %v5130, %v5129
      %v5194 = vpack.c.b16 %v5132, %v5131
      %v5195 = vpack.c.b16 %v5134, %v5133
      %v5196 = vpack.c.b16 %v5136, %v5135
      %v5197 = vpack.c.b16 %v5138, %v5137
      %v5198 = vpack.c.b16 %v5140, %v5139
      %v5199 = vpack.c.b16 %v5142, %v5141
      %v5200 = vpack.c.b16 %v5144, %v5143
      %v5201 = vpack.c.b16 %v5146, %v5145
      %v5202 = vpack.c.b16 %v5148, %v5147
      %v5203 = vpack.c.b16 %v5150, %v5149
      %v5204 = vpack.c.b16 %v5152, %v5151
      %v5205 = vpack.c.b16 %v5154, %v5153
      %v5206 = vpack.c.b16 %v5156, %v5155
      %v5207 = vpack.c.b16 %v5158, %v5157
      %v5208 = vpack.c.b16 %v5160, %v5159
      %v5209 = vpack.c.b16 %v5162, %v5161
      %v5210 = vpack.c.b16 %v5164, %v5163
      %v5211 = vpack.c.b16 %v5166, %v5165
      %v5212 = vpack.c.b16 %v5168, %v5167
      %v5213 = vpack.c.b16 %v5170, %v5169
      %v5214 = vpack.c.b16 %v5172, %v5171
      %v5215 = vpack.c.b16 %v5174, %v5173
      %v5216 = vpack.c.b16 %v5176, %v5175
      %v5217 = vpack.c.b16 %v5178, %v5177
      %v5218 = vpack.c.b16 %v5180, %v5179
      %v5219 = vpack.c.b16 %v5182, %v5181
      %v5220 = vpack.c.b16 %v5184, %v5183
      %v5221 = vpack.c.b16 %v5186, %v5185
      %v5222 = vpack.c.b16 %v5188, %v5187
      %v5223 = vpack.c.b16 %v5190, %v5189
      %v5224 = vpack.c.b16 %v5192, %v5191
      %5257 = vmatpush.bf16.msra.mxu0 %v5200
      %5258 = vmatpush.bf16.msra.mxu0 %v5199
      %5259 = vmatpush.bf16.msra.mxu0 %v5198
      %5260 = vmatpush.bf16.msra.mxu0 %v5197
      %5261 = vmatpush.bf16.msra.mxu0 %v5196
      %5262 = vmatpush.bf16.msra.mxu0 %v5195
      %5263 = vmatpush.bf16.msra.mxu0 %v5194
      %5264 = vmatpush.bf16.msra.mxu0 %v5193
      %5265 = vmatmul.bf16.gmra.mxu0 %v4993
      %v5266 = vpop.f32.mrf.mxu0
      %v5267 = vadd.f32 %v5063, %v5266
      %v5268 = vpop.f32.mrf.mxu0
      %5269 = vdwg.mxu0
      %5270 = vmatpush.bf16.msra.mxu0 %v5208
      %5271 = vmatpush.bf16.msra.mxu0 %v5207
      %5272 = vmatpush.bf16.msra.mxu0 %v5206
      %5273 = vmatpush.bf16.msra.mxu0 %v5205
      %5274 = vmatpush.bf16.msra.mxu0 %v5204
      %5275 = vmatpush.bf16.msra.mxu0 %v5203
      %5276 = vmatpush.bf16.msra.mxu0 %v5202
      %5277 = vmatpush.bf16.msra.mxu0 %v5201
      %5278 = vmatmul.bf16.gmra.mxu0 %v4994
      %v5279 = vpop.f32.mrf.mxu0
      %v5280 = vadd.f32 %v5267, %v5279
      %v5281 = vpop.f32.mrf.mxu0
      %5282 = vdwg.mxu0
      %5283 = vmatpush.bf16.msra.mxu0 %v5216
      %5284 = vmatpush.bf16.msra.mxu0 %v5215
      %5285 = vmatpush.bf16.msra.mxu0 %v5214
      %5286 = vmatpush.bf16.msra.mxu0 %v5213
      %5287 = vmatpush.bf16.msra.mxu0 %v5212
      %5288 = vmatpush.bf16.msra.mxu0 %v5211
      %5289 = vmatpush.bf16.msra.mxu0 %v5210
      %5290 = vmatpush.bf16.msra.mxu0 %v5209
      %5291 = vmatmul.bf16.gmra.mxu0 %v4995
      %v5292 = vpop.f32.mrf.mxu0
      %v5293 = vadd.f32 %v5280, %v5292
      %v5294 = vpop.f32.mrf.mxu0
      %5295 = vdwg.mxu0
      %5296 = vmatpush.bf16.msra.mxu0 %v5224
      %5297 = vmatpush.bf16.msra.mxu0 %v5223
      %5298 = vmatpush.bf16.msra.mxu0 %v5222
      %5299 = vmatpush.bf16.msra.mxu0 %v5221
      %5300 = vmatpush.bf16.msra.mxu0 %v5220
      %5301 = vmatpush.bf16.msra.mxu0 %v5219
      %5302 = vmatpush.bf16.msra.mxu0 %v5218
      %5303 = vmatpush.bf16.msra.mxu0 %v5217
      %5304 = vmatmul.bf16.gmra.mxu0 %v4996
      %v5305 = vpop.f32.mrf.mxu0
      %v5306 = vadd.f32 %v5293, %v5305
      %v5307 = vpop.f32.mrf.mxu0
      %5308 = vdwg.mxu0
      %5309 = vst [vmem:[%s470] sm:$0xff] %v5306
      %p5310 = scmp.lt.s32.totalorder %s25, 1
      %s5311 = scalar_select %p5310, %s25, 1
      %s5312 = smul.addr %s5311, 8
      %s5313 = scalar_lea.vmem %s14, %s5312
      // Predicated region
      $region77: #{dqn_forward.1} parent=75 // pred_check
        %p5314 = pneg %p342
      $region78: #{dqn_forward.1} parent=75 // pred_check_branch
        %5316 = sbr.rel (%p5314) target = $region80
      $region79: #{dqn_forward.1} parent=75 // pred_region
        _
      $region80: #{dqn_forward.1} parent=75 // pred_fallthru
        _
    $region76: #{dqn_forward.1} parent=5 // pred_fallthru
      _
    %p5317 = scmp.le.s32.totalorder 2, %s20
    // Predicated region
    $region81: #{dqn_forward.1} parent=5 // pred_check
      %p5318 = pneg %p5317
    $region82: #{dqn_forward.1} parent=5 // pred_check_branch
      %5320 = sbr.rel (%p5318) target = $region84
    $region83: #{dqn_forward.1} parent=5 // pred_region
      %s5321 = ssub.s32 %s20, 2
      // Predicated region
      $region85: #{dqn_forward.1} parent=83 // pred_check
        %p5322 = pneg %p348
      $region86: #{dqn_forward.1} parent=83 // pred_check_branch
        %5324 = sbr.rel (%p5322) target = $region88
      $region87: #{dqn_forward.1} parent=83 // pred_region
        %p5325 = scmp.lt.s32.totalorder %s26, 1
        %s5326 = scalar_select %p5325, %s26, 1
        %s5327 = smul.addr %s5326, 8
        %s5328 = scalar_lea.vmem %s14, %s5327
      $region88: #{dqn_forward.1} parent=83 // pred_fallthru
        _
    $region84: #{dqn_forward.1} parent=5 // pred_fallthru
      _
  $region6: #{dqn_forward.1} parent=0 // loop_footer
    %s24 = sadd.s32 1, %s20
  $region7: #{dqn_forward.1} parent=0 // loop_footer_branch
    %19 = sbr.rel target = $region3
  $region8: #{dqn_forward.1} parent=0 // loop_exit
    _

</llo_original>
